<compile_context>
chip_gen: v6e
topology: v6e:2x2x1
jax: 0.10.0
libtpu: 0.0.40
codegen_flags: <defaults>
</compile_context>

<pallas_src>
import math

import jax
import jax.numpy as jnp
from jax.experimental import pallas as pl
from jax.experimental.pallas import tpu as pltpu


# ----------------------------------------------------------------------------
# Pallas kernel: per-edge MLP (BN folded) + running-max aggregation over K
# ----------------------------------------------------------------------------
def _pointconv_kernel(feats_ref, negb_ref,
                      w1, b1, w2, b2, w3, b3, s3, t3,
                      out_ref):
    j = pl.program_id(1)                                   # K-chunk (reduction) axis

    @pl.when(j == 0)
    def _():
        out_ref[...] = jnp.full_like(out_ref, -1e30)       # finite "-inf"

    ts, ck, f0 = feats_ref.shape
    x = feats_ref[...].reshape(ts * ck, f0)                # (ts*ck, F0) bf16 edge rows

    # Layer 1/2: Linear (+ folded BN of the previous layer) + ReLU.
    h = jnp.dot(x, w1[...], preferred_element_type=jnp.float32) + b1[...]
    h = jnp.maximum(h, 0.0)
    h = jnp.dot(h.astype(jnp.bfloat16), w2[...],
                preferred_element_type=jnp.float32) + b2[...]
    h = jnp.maximum(h, 0.0)
    # Layer 3: Linear + ReLU, then its own BN affine as one fused mul-add.
    h = jnp.dot(h.astype(jnp.bfloat16), w3[...],
                preferred_element_type=jnp.float32) + b3[...]
    h = jnp.maximum(h, 0.0)
    h = h * s3[...] + t3[...]                              # (ts*ck, C_pad) f32

    c = h.shape[-1]
    # Additive neighbor-validity bias (0 for valid, -1e30 for invalid), then
    # running max into the resident output block ('max' aggregation).
    h = h.reshape(ts, ck, c) + negb_ref[0][:, :, None]
    out_ref[...] = jnp.maximum(out_ref[...], jnp.max(h, axis=1))


def _pick_tiles(S, K, max_tile_s=128, target_rows=4096):
    """Choose (tile_s, ck): tile_s | S (multiple of 8 when possible, grid>=2 for
    megacore), ck | K sized so each step works on ~target_rows edge rows."""
    cands = [d for d in range(1, min(S, max_tile_s) + 1)
             if S % d == 0 and (d % 8 == 0 or d == S)]
    if not cands:
        cands = [d for d in range(1, min(S, max_tile_s) + 1) if S % d == 0] or [1]
    tile_s = max(cands)
    if tile_s == S and S > 1:                              # prefer >=2 grid steps
        smaller = [d for d in cands if d < S]
        if smaller:
            tile_s = max(smaller)
    kcands = [d for d in range(1, K + 1)
              if K % d == 0 and (d % 8 == 0 or d == K)] or [K]
    ok = [d for d in kcands if tile_s * d <= target_rows]
    ck = max(ok) if ok else min(kcands)
    return tile_s, ck


def pointconv_pallas(feats, nbr_valid, folded_params, *, tile_s=None, ck=None):
    """feats: (S, K, F0) edge messages; nbr_valid: (S, K) bool validity mask."""
    S, K, F0 = feats.shape
    w1, b1, w2, b2, w3, b3, s3, t3 = folded_params
    C_out = w3.shape[1]
    C_pad = ((C_out + 127) // 128) * 128                   # lane-dense output width

    if tile_s is None or ck is None:
        ts_auto, ck_auto = _pick_tiles(S, K)
        tile_s = ts_auto if tile_s is None else tile_s
        ck = ck_auto if ck is None else ck
    assert S % tile_s == 0 and K % ck == 0
    n_chunks = K // ck

    # Zero-pad the last layer to a 128-multiple output width (sliced back below).
    pad = C_pad - C_out
    if pad:
        w3 = jnp.pad(w3, ((0, 0), (0, pad)))
        b3 = jnp.pad(b3, ((0, 0), (0, pad)))
        s3 = jnp.pad(s3, ((0, 0), (0, pad)))
        t3 = jnp.pad(t3, ((0, 0), (0, pad)))

    # bf16 matmul inputs / weights; biases & affine stay f32 (f32 accumulation).
    feats_bf = feats.astype(jnp.bfloat16)
    w1, w2, w3 = (w.astype(jnp.bfloat16) for w in (w1, w2, w3))
    b1, b2, b3, s3, t3 = (p.astype(jnp.float32) for p in (b1, b2, b3, s3, t3))

    # Additive neighbor mask, chunk-major so each block is (1, tile_s, ck).
    negb = (nbr_valid.astype(jnp.float32) - 1.0) * 1e30     # 0 valid, -1e30 invalid
    negb = negb.reshape(S, n_chunks, ck).transpose(1, 0, 2)  # (n_chunks, S, ck)

    flat_params = [w1, b1, w2, b2, w3, b3, s3, t3]
    param_specs = [pl.BlockSpec(p.shape, lambda i, j, nd=p.ndim: (0,) * nd)
                   for p in flat_params]

    H1, H2 = w1.shape[1], w2.shape[1]
    flops = 2 * S * K * (F0 * H1 + H1 * H2 + H2 * C_pad)
    bytes_accessed = (feats_bf.size * 2 + negb.size * 4 + S * C_pad * 4
                      + sum(int(p.size) * p.dtype.itemsize for p in flat_params))
    cost = pl.CostEstimate(flops=flops, transcendentals=0,
                           bytes_accessed=int(bytes_accessed))

    out = pl.pallas_call(
        _pointconv_kernel,
        out_shape=jax.ShapeDtypeStruct((S, C_pad), jnp.float32),
        grid=(S // tile_s, n_chunks),
        in_specs=[
            pl.BlockSpec((tile_s, ck, F0), lambda i, j: (i, j, 0)),   # edge features
            pl.BlockSpec((1, tile_s, ck), lambda i, j: (j, i, 0)),    # mask bias
            *param_specs,
        ],
        out_specs=pl.BlockSpec((tile_s, C_pad), lambda i, j: (i, 0)),
        compiler_params=pltpu.CompilerParams(
            dimension_semantics=("parallel", "arbitrary"),
            vmem_limit_bytes=32 * 1024 * 1024),
        cost_estimate=cost,
    )(feats_bf, negb, *flat_params)

    return out[:, :C_out]


# ----------------------------------------------------------------------------
# Host-side parameter prep: fold inference BatchNorm into the next Linear
# ----------------------------------------------------------------------------
def fold_bn_params(params):
    """params: [(W, b, s, t)] per layer, where layer l computes
    ReLU(x @ W + b) * s + t (BN as inference affine).  Fold (s, t) of layers
    1 and 2 across the layer boundary into the next Linear (always valid);
    the last layer keeps its (s3, t3) as one fused mul-add in the kernel."""
    (w1, b1, s1, t1), (w2, b2, s2, t2), (w3, b3, s3, t3) = params
    w2f = s1.reshape(-1, 1) * w2
    b2f = t1 @ w2 + b2
    w3f = s2.reshape(-1, 1) * w3
    b3f = t2 @ w3 + b3
    return (w1, b1, w2f, b2f, w3f, b3f, s3, t3)


# ----------------------------------------------------------------------------
# Plain-JAX glue: farthest point sampling + radius neighbor search
# ----------------------------------------------------------------------------
def _fps_single(pos_b, n_sample):
    # TODO(synk): torch_cluster.fps uses a random start point; we start at index 0.
    d0 = jnp.sum((pos_b - pos_b[0]) ** 2, axis=-1)
    sel0 = jnp.zeros((n_sample,), jnp.int32)

    def body(i, carry):
        sel, dmin = carry
        nxt = jnp.argmax(dmin).astype(jnp.int32)
        sel = sel.at[i].set(nxt)
        d = jnp.sum((pos_b - pos_b[nxt]) ** 2, axis=-1)
        return sel, jnp.minimum(dmin, d)

    sel, _ = jax.lax.fori_loop(1, n_sample, body, (sel0, d0))
    return sel


def sa_module_forward(x, pos, batch, params, *, ratio, r, num_batches,
                      max_neighbors=64):
    N = pos.shape[0]
    n_per = N // num_batches
    n_sample = int(math.ceil(ratio * n_per))

    # idx = fps(pos, batch, ratio)
    pos_b = pos.reshape(num_batches, n_per, 3)
    local_idx = jax.vmap(lambda p: _fps_single(p, n_sample))(pos_b)
    offsets = (jnp.arange(num_batches, dtype=jnp.int32) * n_per)[:, None]
    idx = (local_idx + offsets).reshape(-1)                  # (S,)

    pos_c = pos[idx]                                         # pos[idx]
    batch_c = batch[idx]                                     # batch[idx]

    # row, col = radius(pos, pos[idx], r, batch, batch[idx], max_num_neighbors=64)
    # Dense formulation: fixed K-neighbor slab + validity mask; top_k (K << N)
    # instead of a full argsort over N.
    # TODO(synk): for large N this glue (pairwise d2 + top_k + gather) dominates;
    # it should become a scalar-prefetch Pallas gather kernel.
    d2 = jnp.sum((pos_c[:, None, :] - pos[None, :, :]) ** 2, axis=-1)    # (S, N)
    valid = (d2 <= r * r) & (batch_c[:, None] == batch[None, :])
    neg_key = jnp.where(valid, -jnp.arange(N, dtype=jnp.int32)[None, :], -(N + 1))
    _, order = jax.lax.top_k(neg_key, max_neighbors)                     # (S, K)
    nbr_valid = jnp.take_along_axis(valid, order, axis=1)                # (S, K)

    # PointConv messages: nn([x_j || pos_j - pos_i]), aggr = max.
    x_j = x[order]                                           # (S, K, C_in)
    rel = pos[order] - pos_c[:, None, :]                     # (S, K, 3)
    feats = jnp.concatenate([x_j, rel], axis=-1)             # (S, K, C_in + 3)

    folded = fold_bn_params(params)
    x_out = pointconv_pallas(feats, nbr_valid, folded)
    return x_out, pos_c, batch_c


# ----------------------------------------------------------------------------
# Deterministic parameter init for nn = MLP([C_in+3, H, H, C_out])
#   each layer = Seq(Linear, ReLU, BatchNorm1d)  (BN in eval mode)
# ----------------------------------------------------------------------------
def init_mlp_params(key, channels):
    params = []
    eps = 1e-5
    for cin, cout in zip(channels[:-1], channels[1:]):
        key, kw, kb = jax.random.split(key, 3)
        w = jax.random.normal(kw, (cin, cout), jnp.float32) / math.sqrt(cin)
        b = 0.01 * jax.random.normal(kb, (1, cout), jnp.float32)
        # BN: gamma=1, beta=0, running_mean=0, running_var=1
        s = jnp.full((1, cout), 1.0 / math.sqrt(1.0 + eps), jnp.float32)
        t = jnp.zeros((1, cout), jnp.float32)
        params.append((w, b, s, t))
    return params


if __name__ == "__main__":
    key = jax.random.PRNGKey(0)
    B, N_PER, C_IN = 2, 32, 13                 # N = 64 points, 13 input features
    RATIO, R = 0.5, 0.4                        # SAModule(ratio=0.5, r=0.4, nn=MLP(...))
    N = B * N_PER

    k_pos, k_x, k_par = jax.random.split(key, 3)
    pos = jax.random.uniform(k_pos, (N, 3), jnp.float32)
    x = jax.random.normal(k_x, (N, C_IN), jnp.float32)
    batch = jnp.repeat(jnp.arange(B, dtype=jnp.int32), N_PER)

    channels = [C_IN + 3, 32, 32, 64]          # nn = MLP([16, 32, 32, 64])
    params = init_mlp_params(k_par, channels)

    x_out, pos_out, batch_out = sa_module_forward(
        x, pos, batch, params, ratio=RATIO, r=R, num_batches=B)
    jax.block_until_ready((x_out, pos_out, batch_out))

    assert x_out.shape == (32, channels[-1])
    assert pos_out.shape == (32, 3) and batch_out.shape == (32,)
    assert bool(jnp.all(jnp.isfinite(x_out)))
    print("KERNEL_OK")
</pallas_src>

<mosaic_0001>
module attributes {stable_mosaic.version = 11 : i64} {
  func.func @_pointconv_kernel(%arg0: i32, %arg1: i32, %arg2: memref<16x64x16xbf16, #tpu.memory_space<vmem>>, %arg3: memref<1x16x64xf32, #tpu.memory_space<vmem>>, %arg4: memref<16x32xbf16, #tpu.memory_space<vmem>>, %arg5: memref<1x32xf32, #tpu.memory_space<vmem>>, %arg6: memref<32x32xbf16, #tpu.memory_space<vmem>>, %arg7: memref<1x32xf32, #tpu.memory_space<vmem>>, %arg8: memref<32x128xbf16, #tpu.memory_space<vmem>>, %arg9: memref<1x128xf32, #tpu.memory_space<vmem>>, %arg10: memref<1x128xf32, #tpu.memory_space<vmem>>, %arg11: memref<1x128xf32, #tpu.memory_space<vmem>>, %arg12: memref<16x128xf32, #tpu.memory_space<vmem>>) attributes {dimension_semantics = [#tpu.dimension_semantics<parallel>, #tpu.dimension_semantics<arbitrary>], iteration_bounds = array<i64: 2, 1>, scalar_prefetch = 0 : i64, scratch_operands = 0 : i64, tpu.core_type = #tpu.core_type<tc>, window_params = [{transform_indices = @transform_0, window_bounds = array<i64: 16, 64, 16>}, {transform_indices = @transform_1, window_bounds = array<i64: 1, 16, 64>}, {pipeline_mode = #tpu.pipeline_mode<synchronous>, transform_indices = @transform_2, window_bounds = array<i64: 16, 32>}, {pipeline_mode = #tpu.pipeline_mode<synchronous>, transform_indices = @transform_3, window_bounds = array<i64: 1, 32>}, {pipeline_mode = #tpu.pipeline_mode<synchronous>, transform_indices = @transform_4, window_bounds = array<i64: 32, 32>}, {pipeline_mode = #tpu.pipeline_mode<synchronous>, transform_indices = @transform_5, window_bounds = array<i64: 1, 32>}, {pipeline_mode = #tpu.pipeline_mode<synchronous>, transform_indices = @transform_6, window_bounds = array<i64: 32, 128>}, {pipeline_mode = #tpu.pipeline_mode<synchronous>, transform_indices = @transform_7, window_bounds = array<i64: 1, 128>}, {pipeline_mode = #tpu.pipeline_mode<synchronous>, transform_indices = @transform_8, window_bounds = array<i64: 1, 128>}, {pipeline_mode = #tpu.pipeline_mode<synchronous>, transform_indices = @transform_9, window_bounds = array<i64: 1, 128>}, {transform_indices = @transform_10, window_bounds = array<i64: 16, 128>}]} {
    %c0_i32 = arith.constant 0 : i32
    %0 = arith.cmpi eq, %arg1, %c0_i32 : i32
    %1 = arith.extui %0 : i1 to i32
    %c0_i32_0 = arith.constant 0 : i32
    %2 = arith.cmpi ne, %1, %c0_i32_0 : i32
    scf.if %2 {
      %cst_32 = arith.constant -1.000000e+30 : f32
      %44 = vector.broadcast %cst_32 : f32 to vector<16x128xf32>
      %c0_33 = arith.constant 0 : index
      %c0_34 = arith.constant 0 : index
      %45 = vector.load %arg12[%c0_33, %c0_34] : memref<16x128xf32, #tpu.memory_space<vmem>>, vector<16x128xf32>
      tpu.vector_store %arg12[%c0_33, %c0_34], %44 {strides = array<i32>} : memref<16x128xf32, #tpu.memory_space<vmem>>, vector<16x128xf32>,
    } else {
    }
    %c0 = arith.constant 0 : index
    %c0_1 = arith.constant 0 : index
    %c0_2 = arith.constant 0 : index
    %3 = vector.load %arg2[%c0, %c0_1, %c0_2] : memref<16x64x16xbf16, #tpu.memory_space<vmem>>, vector<16x64x16xbf16>
    %4 = vector.shape_cast %3 : vector<16x64x16xbf16> to vector<1024x16xbf16>
    %c0_3 = arith.constant 0 : index
    %c0_4 = arith.constant 0 : index
    %5 = vector.load %arg4[%c0_3, %c0_4] : memref<16x32xbf16, #tpu.memory_space<vmem>>, vector<16x32xbf16>
    %cst = arith.constant dense<0.000000e+00> : vector<1024x32xf32>
    %6 = tpu.matmul %4, %5, %cst {dimension_numbers = #tpu.dot_dimension_numbers<[1], [0], [0], [1], [0, 0, 1, 1], [], []>} : vector<1024x16xbf16>, vector<16x32xbf16>, vector<1024x32xf32> -> vector<1024x32xf32>
    %c0_5 = arith.constant 0 : index
    %c0_6 = arith.constant 0 : index
    %7 = vector.load %arg5[%c0_5, %c0_6] : memref<1x32xf32, #tpu.memory_space<vmem>>, vector<1x32xf32>
    %8 = vector.broadcast %7 : vector<1x32xf32> to vector<1024x32xf32>
    %9 = arith.addf %6, %8 : vector<1024x32xf32>
    %cst_7 = arith.constant 0.000000e+00 : f32
    %10 = vector.broadcast %cst_7 : f32 to vector<1024x32xf32>
    %11 = arith.maximumf %9, %10 : vector<1024x32xf32>
    %12 = arith.truncf %11 : vector<1024x32xf32> to vector<1024x32xbf16>
    %c0_8 = arith.constant 0 : index
    %c0_9 = arith.constant 0 : index
    %13 = vector.load %arg6[%c0_8, %c0_9] : memref<32x32xbf16, #tpu.memory_space<vmem>>, vector<32x32xbf16>
    %cst_10 = arith.constant dense<0.000000e+00> : vector<1024x32xf32>
    %14 = tpu.matmul %12, %13, %cst_10 {dimension_numbers = #tpu.dot_dimension_numbers<[1], [0], [0], [1], [0, 0, 1, 1], [], []>} : vector<1024x32xbf16>, vector<32x32xbf16>, vector<1024x32xf32> -> vector<1024x32xf32>
    %c0_11 = arith.constant 0 : index
    %c0_12 = arith.constant 0 : index
    %15 = vector.load %arg7[%c0_11, %c0_12] : memref<1x32xf32, #tpu.memory_space<vmem>>, vector<1x32xf32>
    %16 = vector.broadcast %15 : vector<1x32xf32> to vector<1024x32xf32>
    %17 = arith.addf %14, %16 : vector<1024x32xf32>
    %cst_13 = arith.constant 0.000000e+00 : f32
    %18 = vector.broadcast %cst_13 : f32 to vector<1024x32xf32>
    %19 = arith.maximumf %17, %18 : vector<1024x32xf32>
    %20 = arith.truncf %19 : vector<1024x32xf32> to vector<1024x32xbf16>
    %c0_14 = arith.constant 0 : index
    %c0_15 = arith.constant 0 : index
    %21 = vector.load %arg8[%c0_14, %c0_15] : memref<32x128xbf16, #tpu.memory_space<vmem>>, vector<32x128xbf16>
    %cst_16 = arith.constant dense<0.000000e+00> : vector<1024x128xf32>
    %22 = tpu.matmul %20, %21, %cst_16 {dimension_numbers = #tpu.dot_dimension_numbers<[1], [0], [0], [1], [0, 0, 1, 1], [], []>} : vector<1024x32xbf16>, vector<32x128xbf16>, vector<1024x128xf32> -> vector<1024x128xf32>
    %c0_17 = arith.constant 0 : index
    %c0_18 = arith.constant 0 : index
    %23 = vector.load %arg9[%c0_17, %c0_18] : memref<1x128xf32, #tpu.memory_space<vmem>>, vector<1x128xf32>
    %24 = vector.broadcast %23 : vector<1x128xf32> to vector<1024x128xf32>
    %25 = arith.addf %22, %24 : vector<1024x128xf32>
    %cst_19 = arith.constant 0.000000e+00 : f32
    %26 = vector.broadcast %cst_19 : f32 to vector<1024x128xf32>
    %27 = arith.maximumf %25, %26 : vector<1024x128xf32>
    %c0_20 = arith.constant 0 : index
    %c0_21 = arith.constant 0 : index
    %28 = vector.load %arg10[%c0_20, %c0_21] : memref<1x128xf32, #tpu.memory_space<vmem>>, vector<1x128xf32>
    %29 = vector.broadcast %28 : vector<1x128xf32> to vector<1024x128xf32>
    %30 = arith.mulf %27, %29 : vector<1024x128xf32>
    %c0_22 = arith.constant 0 : index
    %c0_23 = arith.constant 0 : index
    %31 = vector.load %arg11[%c0_22, %c0_23] : memref<1x128xf32, #tpu.memory_space<vmem>>, vector<1x128xf32>
    %32 = vector.broadcast %31 : vector<1x128xf32> to vector<1024x128xf32>
    %33 = arith.addf %30, %32 : vector<1024x128xf32>
    %34 = vector.shape_cast %33 : vector<1024x128xf32> to vector<16x64x128xf32>
    %c0_24 = arith.constant 0 : index
    %c0_25 = arith.constant 0 : index
    %c0_26 = arith.constant 0 : index
    %35 = vector.load %arg3[%c0_24, %c0_25, %c0_26] : memref<1x16x64xf32, #tpu.memory_space<vmem>>, vector<1x16x64xf32>
    %36 = vector.shape_cast %35 : vector<1x16x64xf32> to vector<16x64xf32>
    %37 = vector.shape_cast %36 : vector<16x64xf32> to vector<16x64x1xf32>
    %38 = vector.broadcast %37 : vector<16x64x1xf32> to vector<16x64x128xf32>
    %39 = arith.addf %34, %38 : vector<16x64x128xf32>
    %c0_27 = arith.constant 0 : index
    %c0_28 = arith.constant 0 : index
    %40 = vector.load %arg12[%c0_27, %c0_28] : memref<16x128xf32, #tpu.memory_space<vmem>>, vector<16x128xf32>
    %cst_29 = arith.constant dense<0xFF800000> : vector<16x128xf32>
    %41 = vector.multi_reduction <maximumf>, %39, %cst_29 [1] : vector<16x64x128xf32> to vector<16x128xf32>
    %42 = arith.maximumf %40, %41 : vector<16x128xf32>
    %c0_30 = arith.constant 0 : index
    %c0_31 = arith.constant 0 : index
    %43 = vector.load %arg12[%c0_30, %c0_31] : memref<16x128xf32, #tpu.memory_space<vmem>>, vector<16x128xf32>
    tpu.vector_store %arg12[%c0_30, %c0_31], %42 {strides = array<i32>} : memref<16x128xf32, #tpu.memory_space<vmem>>, vector<16x128xf32>,
    return
  }
  func.func @transform_0(%arg0: i32, %arg1: i32) -> (i32, i32, i32) {
    %c0_i32 = arith.constant 0 : i32
    %c0_i32_0 = arith.constant 0 : i32
    return %arg0, %arg1, %c0_i32 : i32, i32, i32
  }
  func.func @transform_1(%arg0: i32, %arg1: i32) -> (i32, i32, i32) {
    %c0_i32 = arith.constant 0 : i32
    %c0_i32_0 = arith.constant 0 : i32
    return %arg1, %arg0, %c0_i32 : i32, i32, i32
  }
  func.func @transform_2(%arg0: i32, %arg1: i32) -> (i32, i32) {
    %c0_i32 = arith.constant 0 : i32
    %c0_i32_0 = arith.constant 0 : i32
    %c0_i32_1 = arith.constant 0 : i32
    return %c0_i32, %c0_i32_0 : i32, i32
  }
  func.func @transform_3(%arg0: i32, %arg1: i32) -> (i32, i32) {
    %c0_i32 = arith.constant 0 : i32
    %c0_i32_0 = arith.constant 0 : i32
    %c0_i32_1 = arith.constant 0 : i32
    return %c0_i32, %c0_i32_0 : i32, i32
  }
  func.func @transform_4(%arg0: i32, %arg1: i32) -> (i32, i32) {
    %c0_i32 = arith.constant 0 : i32
    %c0_i32_0 = arith.constant 0 : i32
    %c0_i32_1 = arith.constant 0 : i32
    return %c0_i32, %c0_i32_0 : i32, i32
  }
  func.func @transform_5(%arg0: i32, %arg1: i32) -> (i32, i32) {
    %c0_i32 = arith.constant 0 : i32
    %c0_i32_0 = arith.constant 0 : i32
    %c0_i32_1 = arith.constant 0 : i32
    return %c0_i32, %c0_i32_0 : i32, i32
  }
  func.func @transform_6(%arg0: i32, %arg1: i32) -> (i32, i32) {
    %c0_i32 = arith.constant 0 : i32
    %c0_i32_0 = arith.constant 0 : i32
    %c0_i32_1 = arith.constant 0 : i32
    return %c0_i32, %c0_i32_0 : i32, i32
  }
  func.func @transform_7(%arg0: i32, %arg1: i32) -> (i32, i32) {
    %c0_i32 = arith.constant 0 : i32
    %c0_i32_0 = arith.constant 0 : i32
    %c0_i32_1 = arith.constant 0 : i32
    return %c0_i32, %c0_i32_0 : i32, i32
  }
  func.func @transform_8(%arg0: i32, %arg1: i32) -> (i32, i32) {
    %c0_i32 = arith.constant 0 : i32
    %c0_i32_0 = arith.constant 0 : i32
    %c0_i32_1 = arith.constant 0 : i32
    return %c0_i32, %c0_i32_0 : i32, i32
  }
  func.func @transform_9(%arg0: i32, %arg1: i32) -> (i32, i32) {
    %c0_i32 = arith.constant 0 : i32
    %c0_i32_0 = arith.constant 0 : i32
    %c0_i32_1 = arith.constant 0 : i32
    return %c0_i32, %c0_i32_0 : i32, i32
  }
  func.func @transform_10(%arg0: i32, %arg1: i32) -> (i32, i32) {
    %c0_i32 = arith.constant 0 : i32
    %c0_i32_0 = arith.constant 0 : i32
    return %arg0, %c0_i32 : i32, i32
  }
}

</mosaic_0001>

<llo_original>
// kernel: tpu_custom_call.1
$region0: #{tpu_custom_call.1}
  #allocation0 [shape = 'u32[]', space=smem, size = 0x4, offset = 0x4, fixed_abs, tag = 'smem constant byte address 0x4 - core index']
  #allocation1 [shape = 'u32[144,128]{1,0:T(1,128)}', space=vmem, size = 0x12000, scoped, tag = 'internal scratch']
  %s0 = inlined_call_operand.vmem [shape: bf16[32,64,16], index: 0, kind: input, shape index: {}]
  %s1 = inlined_call_operand.vmem [shape: f32[1,32,64], index: 1, kind: input, shape index: {}]
  %s2 = inlined_call_operand.vmem [shape: bf16[16,32], index: 2, kind: input, shape index: {}]
  %s3 = inlined_call_operand.vmem [shape: f32[1,32], index: 3, kind: input, shape index: {}]
  %s4 = inlined_call_operand.vmem [shape: bf16[32,32], index: 4, kind: input, shape index: {}]
  %s5 = inlined_call_operand.vmem [shape: f32[1,32], index: 5, kind: input, shape index: {}]
  %s6 = inlined_call_operand.vmem [shape: bf16[32,128], index: 6, kind: input, shape index: {}]
  %s7 = inlined_call_operand.vmem [shape: f32[1,128], index: 7, kind: input, shape index: {}]
  %s8 = inlined_call_operand.vmem [shape: f32[1,128], index: 8, kind: input, shape index: {}]
  %s9 = inlined_call_operand.vmem [shape: f32[1,128], index: 9, kind: input, shape index: {}]
  %s10 = inlined_call_operand.hbm [shape: f32[32,128], index: 10, kind: output, shape index: {}]
  %s11 = sld [smem:[#allocation0]]
  $region77: #{tpu_custom_call.1} parent=0
    _
  %s13 = ssub.s32 1, %s11
  %s14 = scalar_select 0, %s13, %s11
  $region1: #{tpu_custom_call.1} parent=0
    #allocation2 [shape = 'u8[16384]{0}', space=vmem, size = 0x4000, scoped, tag = 'output window, operand 0']
    #allocation3 [shape = 's32[2]{0}', space=sflag, size = 0x8, scoped, tag = 'scoped memory for tpu_custom_call.1']
    %15 = vsyncpa [#allocation3], 0
    %s16 = scalar_lea.sflag [#allocation3], 1
    %17 = vsyncpa %s16, 0
    loop: start=0, step=1, limit=4
    $region2: #{tpu_custom_call.1} parent=1 // loop_pre_header
      _
    $region3: #{tpu_custom_call.1} parent=1 // loop_header
      %s19 = sphi 0, %s23
      %p20 = scmp.ge.s32.totalorder %s19, 4
      %s26 = sphi 0, %s38
      %s27 = sphi 0, %s34
      %s28 = sphi 0, %s26
      %s29 = sphi 0, %s27
      %s30 = sphi 0, %s28
      %s31 = sphi 0, %s29
      %s43 = sphi 0, %s45
      %s46 = sphi 0, %s43
      %s47 = sphi 0, %s46
      %s63 = sphi 0, %s47
      %s71 = sphi 0, %s73
      %s74 = sphi 0, %s71
      %s75 = sphi 0, %s74
      %s91 = sphi 0, %s75
      %s95 = sphi 0, %s95
      %s97 = sphi 0, %s95
      %s98 = sphi 0, %s97
      %s112 = sphi 0, %s98
      %s116 = sphi 0, %s116
      %s118 = sphi 0, %s116
      %s119 = sphi 0, %s118
      %s133 = sphi 0, %s119
      %s137 = sphi 0, %s137
      %s139 = sphi 0, %s137
      %s140 = sphi 0, %s139
      %s154 = sphi 0, %s140
      %s158 = sphi 0, %s158
      %s160 = sphi 0, %s158
      %s161 = sphi 0, %s160
      %s175 = sphi 0, %s161
      %s179 = sphi 0, %s179
      %s181 = sphi 0, %s179
      %s182 = sphi 0, %s181
      %s196 = sphi 0, %s182
      %s200 = sphi 0, %s200
      %s202 = sphi 0, %s200
      %s203 = sphi 0, %s202
      %s217 = sphi 0, %s203
      %s221 = sphi 0, %s221
      %s223 = sphi 0, %s221
      %s224 = sphi 0, %s223
      %s238 = sphi 0, %s224
      %s242 = sphi 0, %s242
      %s244 = sphi 0, %s242
      %s245 = sphi 0, %s244
      %s259 = sphi 0, %s245
      %s265 = sphi 0, %s267
      %s268 = sphi 0, %s265
      %s269 = sphi 0, %s268
      %s285 = sphi 0, %s269
    $region4: #{tpu_custom_call.1} parent=1 // loop_header_branch
      %22 = sbr.rel (%p20) target = $region8
    $region5: #{tpu_custom_call.1} parent=1 // loop_body
      %s24 = ssub.s32 %s19, 1
      %s25 = ssub.s32 %s19, 2
      %s32 = sadd.s32 1, %s27
      %p33 = scmp.ge.s32.totalorder %s32, 1
      %s34 = scalar_select %p33, 0, %s32
      %s35 = sadd.s32 1, %s26
      %s36 = scalar_select %p33, %s35, %s26
      %p37 = scmp.ge.s32.totalorder %s36, 2
      %s38 = scalar_select %p37, 0, %s36
      %s39 = ssub.s32 %s26, %s38
      %s40 = ssub.s32 %s27, %s34
      %s41 = sor.u32 %s39, %s40
      %p42 = scmp.eq.s32.totalorder %s41, 0
      %s44 = sadd.s32 %s43, 1
      %s45 = scalar_select %p42, %s43, %s44
      %p48 = pneg %p42
      %p49 = scmp.eq.s32.totalorder %s19, 1
      %p50 = por %p48, %p49
      %p51 = scmp.ne.s32.totalorder %s43, %s46
      %p52 = scmp.eq.s32.totalorder %s19, 0
      %p53 = por %p51, %p52
      %p54 = scmp.ne.s32.totalorder %s43, %s46
      %p55 = scmp.eq.s32.totalorder %s24, 1
      %p56 = por %p54, %p55
      %p57 = scmp.ne.s32.totalorder %s46, %s47
      %p58 = scmp.eq.s32.totalorder %s24, 0
      %p59 = por %p57, %p58
      %p60 = scmp.ne.s32.totalorder %s46, %s47
      %p61 = scmp.eq.s32.totalorder %s25, 1
      %p62 = por %p60, %p61
      %p64 = scmp.ne.s32.totalorder %s47, %s63
      %p65 = scmp.eq.s32.totalorder %s25, 0
      %p66 = por %p64, %p65
      %s67 = ssub.s32 %s27, %s34
      %s68 = ssub.s32 %s26, %s38
      %s69 = sor.u32 %s67, %s68
      %p70 = scmp.eq.s32.totalorder %s69, 0
      %s72 = sadd.s32 %s71, 1
      %s73 = scalar_select %p70, %s71, %s72
      %p76 = pneg %p70
      %p77 = scmp.eq.s32.totalorder %s19, 1
      %p78 = por %p76, %p77
      %p79 = scmp.ne.s32.totalorder %s71, %s74
      %p80 = scmp.eq.s32.totalorder %s19, 0
      %p81 = por %p79, %p80
      %p82 = scmp.ne.s32.totalorder %s71, %s74
      %p83 = scmp.eq.s32.totalorder %s24, 1
      %p84 = por %p82, %p83
      %p85 = scmp.ne.s32.totalorder %s74, %s75
      %p86 = scmp.eq.s32.totalorder %s24, 0
      %p87 = por %p85, %p86
      %p88 = scmp.ne.s32.totalorder %s74, %s75
      %p89 = scmp.eq.s32.totalorder %s25, 1
      %p90 = por %p88, %p89
      %p92 = scmp.ne.s32.totalorder %s75, %s91
      %p93 = scmp.eq.s32.totalorder %s25, 0
      %p94 = por %p92, %p93
      %s96 = sadd.s32 %s95, 1
      %p99 = scmp.eq.s32.totalorder %s19, 1
      %p100 = scmp.ne.s32.totalorder %s95, %s97
      %p101 = scmp.eq.s32.totalorder %s19, 0
      %p102 = por %p100, %p101
      %p103 = scmp.ne.s32.totalorder %s95, %s97
      %p104 = scmp.eq.s32.totalorder %s24, 1
      %p105 = por %p103, %p104
      %p106 = scmp.ne.s32.totalorder %s97, %s98
      %p107 = scmp.eq.s32.totalorder %s24, 0
      %p108 = por %p106, %p107
      %p109 = scmp.ne.s32.totalorder %s97, %s98
      %p110 = scmp.eq.s32.totalorder %s25, 1
      %p111 = por %p109, %p110
      %p113 = scmp.ne.s32.totalorder %s98, %s112
      %p114 = scmp.eq.s32.totalorder %s25, 0
      %p115 = por %p113, %p114
      %s117 = sadd.s32 %s116, 1
      %p120 = scmp.eq.s32.totalorder %s19, 1
      %p121 = scmp.ne.s32.totalorder %s116, %s118
      %p122 = scmp.eq.s32.totalorder %s19, 0
      %p123 = por %p121, %p122
      %p124 = scmp.ne.s32.totalorder %s116, %s118
      %p125 = scmp.eq.s32.totalorder %s24, 1
      %p126 = por %p124, %p125
      %p127 = scmp.ne.s32.totalorder %s118, %s119
      %p128 = scmp.eq.s32.totalorder %s24, 0
      %p129 = por %p127, %p128
      %p130 = scmp.ne.s32.totalorder %s118, %s119
      %p131 = scmp.eq.s32.totalorder %s25, 1
      %p132 = por %p130, %p131
      %p134 = scmp.ne.s32.totalorder %s119, %s133
      %p135 = scmp.eq.s32.totalorder %s25, 0
      %p136 = por %p134, %p135
      %s138 = sadd.s32 %s137, 1
      %p141 = scmp.eq.s32.totalorder %s19, 1
      %p142 = scmp.ne.s32.totalorder %s137, %s139
      %p143 = scmp.eq.s32.totalorder %s19, 0
      %p144 = por %p142, %p143
      %p145 = scmp.ne.s32.totalorder %s137, %s139
      %p146 = scmp.eq.s32.totalorder %s24, 1
      %p147 = por %p145, %p146
      %p148 = scmp.ne.s32.totalorder %s139, %s140
      %p149 = scmp.eq.s32.totalorder %s24, 0
      %p150 = por %p148, %p149
      %p151 = scmp.ne.s32.totalorder %s139, %s140
      %p152 = scmp.eq.s32.totalorder %s25, 1
      %p153 = por %p151, %p152
      %p155 = scmp.ne.s32.totalorder %s140, %s154
      %p156 = scmp.eq.s32.totalorder %s25, 0
      %p157 = por %p155, %p156
      %s159 = sadd.s32 %s158, 1
      %p162 = scmp.eq.s32.totalorder %s19, 1
      %p163 = scmp.ne.s32.totalorder %s158, %s160
      %p164 = scmp.eq.s32.totalorder %s19, 0
      %p165 = por %p163, %p164
      %p166 = scmp.ne.s32.totalorder %s158, %s160
      %p167 = scmp.eq.s32.totalorder %s24, 1
      %p168 = por %p166, %p167
      %p169 = scmp.ne.s32.totalorder %s160, %s161
      %p170 = scmp.eq.s32.totalorder %s24, 0
      %p171 = por %p169, %p170
      %p172 = scmp.ne.s32.totalorder %s160, %s161
      %p173 = scmp.eq.s32.totalorder %s25, 1
      %p174 = por %p172, %p173
      %p176 = scmp.ne.s32.totalorder %s161, %s175
      %p177 = scmp.eq.s32.totalorder %s25, 0
      %p178 = por %p176, %p177
      %s180 = sadd.s32 %s179, 1
      %p183 = scmp.eq.s32.totalorder %s19, 1
      %p184 = scmp.ne.s32.totalorder %s179, %s181
      %p185 = scmp.eq.s32.totalorder %s19, 0
      %p186 = por %p184, %p185
      %p187 = scmp.ne.s32.totalorder %s179, %s181
      %p188 = scmp.eq.s32.totalorder %s24, 1
      %p189 = por %p187, %p188
      %p190 = scmp.ne.s32.totalorder %s181, %s182
      %p191 = scmp.eq.s32.totalorder %s24, 0
      %p192 = por %p190, %p191
      %p193 = scmp.ne.s32.totalorder %s181, %s182
      %p194 = scmp.eq.s32.totalorder %s25, 1
      %p195 = por %p193, %p194
      %p197 = scmp.ne.s32.totalorder %s182, %s196
      %p198 = scmp.eq.s32.totalorder %s25, 0
      %p199 = por %p197, %p198
      %s201 = sadd.s32 %s200, 1
      %p204 = scmp.eq.s32.totalorder %s19, 1
      %p205 = scmp.ne.s32.totalorder %s200, %s202
      %p206 = scmp.eq.s32.totalorder %s19, 0
      %p207 = por %p205, %p206
      %p208 = scmp.ne.s32.totalorder %s200, %s202
      %p209 = scmp.eq.s32.totalorder %s24, 1
      %p210 = por %p208, %p209
      %p211 = scmp.ne.s32.totalorder %s202, %s203
      %p212 = scmp.eq.s32.totalorder %s24, 0
      %p213 = por %p211, %p212
      %p214 = scmp.ne.s32.totalorder %s202, %s203
      %p215 = scmp.eq.s32.totalorder %s25, 1
      %p216 = por %p214, %p215
      %p218 = scmp.ne.s32.totalorder %s203, %s217
      %p219 = scmp.eq.s32.totalorder %s25, 0
      %p220 = por %p218, %p219
      %s222 = sadd.s32 %s221, 1
      %p225 = scmp.eq.s32.totalorder %s19, 1
      %p226 = scmp.ne.s32.totalorder %s221, %s223
      %p227 = scmp.eq.s32.totalorder %s19, 0
      %p228 = por %p226, %p227
      %p229 = scmp.ne.s32.totalorder %s221, %s223
      %p230 = scmp.eq.s32.totalorder %s24, 1
      %p231 = por %p229, %p230
      %p232 = scmp.ne.s32.totalorder %s223, %s224
      %p233 = scmp.eq.s32.totalorder %s24, 0
      %p234 = por %p232, %p233
      %p235 = scmp.ne.s32.totalorder %s223, %s224
      %p236 = scmp.eq.s32.totalorder %s25, 1
      %p237 = por %p235, %p236
      %p239 = scmp.ne.s32.totalorder %s224, %s238
      %p240 = scmp.eq.s32.totalorder %s25, 0
      %p241 = por %p239, %p240
      %s243 = sadd.s32 %s242, 1
      %p246 = scmp.eq.s32.totalorder %s19, 1
      %p247 = scmp.ne.s32.totalorder %s242, %s244
      %p248 = scmp.eq.s32.totalorder %s19, 0
      %p249 = por %p247, %p248
      %p250 = scmp.ne.s32.totalorder %s242, %s244
      %p251 = scmp.eq.s32.totalorder %s24, 1
      %p252 = por %p250, %p251
      %p253 = scmp.ne.s32.totalorder %s244, %s245
      %p254 = scmp.eq.s32.totalorder %s24, 0
      %p255 = por %p253, %p254
      %p256 = scmp.ne.s32.totalorder %s244, %s245
      %p257 = scmp.eq.s32.totalorder %s25, 1
      %p258 = por %p256, %p257
      %p260 = scmp.ne.s32.totalorder %s245, %s259
      %p261 = scmp.eq.s32.totalorder %s25, 0
      %p262 = por %p260, %p261
      %s263 = ssub.s32 %s26, %s38
      %p264 = scmp.eq.s32.totalorder %s263, 0
      %s266 = sadd.s32 %s265, 1
      %s267 = scalar_select %p264, %s265, %s266
      %p270 = pneg %p264
      %p271 = scmp.eq.s32.totalorder %s19, 1
      %p272 = por %p270, %p271
      %p273 = scmp.ne.s32.totalorder %s265, %s268
      %p274 = scmp.eq.s32.totalorder %s19, 0
      %p275 = por %p273, %p274
      %p276 = scmp.ne.s32.totalorder %s265, %s268
      %p277 = scmp.eq.s32.totalorder %s24, 1
      %p278 = por %p276, %p277
      %p279 = scmp.ne.s32.totalorder %s268, %s269
      %p280 = scmp.eq.s32.totalorder %s24, 0
      %p281 = por %p279, %p280
      %p282 = scmp.ne.s32.totalorder %s268, %s269
      %p283 = scmp.eq.s32.totalorder %s25, 1
      %p284 = por %p282, %p283
      %p286 = scmp.ne.s32.totalorder %s269, %s285
      %p287 = scmp.eq.s32.totalorder %s25, 0
      %p288 = por %p286, %p287
      %p289 = scmp.le.s32.totalorder 1, %s19
      %p290 = scmp.lt.s32.totalorder %s19, 3
      %p291 = pnand %p289, %p290
      %p292 = pneg %p291
      // Predicated region
      $region9: #{tpu_custom_call.1} parent=5 // pred_check
        _
      $region10: #{tpu_custom_call.1} parent=5 // pred_check_branch
        %294 = sbr.rel (%p291) target = $region12
      $region11: #{tpu_custom_call.1} parent=5 // pred_region
        %s295 = ssub.s32 %s19, 1
        // Predicated region
        $region13: #{tpu_custom_call.1} parent=11 // pred_check
          %p296 = pneg %p108
        $region14: #{tpu_custom_call.1} parent=11 // pred_check_branch
          %298 = sbr.rel (%p296) target = $region16
        $region15: #{tpu_custom_call.1} parent=11 // pred_region
          _
        $region16: #{tpu_custom_call.1} parent=11 // pred_fallthru
          _
        // Predicated region
        $region17: #{tpu_custom_call.1} parent=11 // pred_check
          %p299 = pneg %p129
        $region18: #{tpu_custom_call.1} parent=11 // pred_check_branch
          %301 = sbr.rel (%p299) target = $region20
        $region19: #{tpu_custom_call.1} parent=11 // pred_region
          _
        $region20: #{tpu_custom_call.1} parent=11 // pred_fallthru
          _
        // Predicated region
        $region21: #{tpu_custom_call.1} parent=11 // pred_check
          %p302 = pneg %p150
        $region22: #{tpu_custom_call.1} parent=11 // pred_check_branch
          %304 = sbr.rel (%p302) target = $region24
        $region23: #{tpu_custom_call.1} parent=11 // pred_region
          _
        $region24: #{tpu_custom_call.1} parent=11 // pred_fallthru
          _
        // Predicated region
        $region25: #{tpu_custom_call.1} parent=11 // pred_check
          %p305 = pneg %p171
        $region26: #{tpu_custom_call.1} parent=11 // pred_check_branch
          %307 = sbr.rel (%p305) target = $region28
        $region27: #{tpu_custom_call.1} parent=11 // pred_region
          _
        $region28: #{tpu_custom_call.1} parent=11 // pred_fallthru
          _
        // Predicated region
        $region29: #{tpu_custom_call.1} parent=11 // pred_check
          %p308 = pneg %p192
        $region30: #{tpu_custom_call.1} parent=11 // pred_check_branch
          %310 = sbr.rel (%p308) target = $region32
        $region31: #{tpu_custom_call.1} parent=11 // pred_region
          _
        $region32: #{tpu_custom_call.1} parent=11 // pred_fallthru
          _
        // Predicated region
        $region33: #{tpu_custom_call.1} parent=11 // pred_check
          %p311 = pneg %p213
        $region34: #{tpu_custom_call.1} parent=11 // pred_check_branch
          %313 = sbr.rel (%p311) target = $region36
        $region35: #{tpu_custom_call.1} parent=11 // pred_region
          _
        $region36: #{tpu_custom_call.1} parent=11 // pred_fallthru
          _
        // Predicated region
        $region37: #{tpu_custom_call.1} parent=11 // pred_check
          %p314 = pneg %p234
        $region38: #{tpu_custom_call.1} parent=11 // pred_check_branch
          %316 = sbr.rel (%p314) target = $region40
        $region39: #{tpu_custom_call.1} parent=11 // pred_region
          _
        $region40: #{tpu_custom_call.1} parent=11 // pred_fallthru
          _
        // Predicated region
        $region41: #{tpu_custom_call.1} parent=11 // pred_check
          %p317 = pneg %p255
        $region42: #{tpu_custom_call.1} parent=11 // pred_check_branch
          %319 = sbr.rel (%p317) target = $region44
        $region43: #{tpu_custom_call.1} parent=11 // pred_region
          _
        $region44: #{tpu_custom_call.1} parent=11 // pred_fallthru
          _
      $region12: #{tpu_custom_call.1} parent=5 // pred_fallthru
        _
      %p320 = scmp.lt.s32.totalorder %s19, 2
      // Predicated region
      $region45: #{tpu_custom_call.1} parent=5 // pred_check
        %p321 = pneg %p320
      $region46: #{tpu_custom_call.1} parent=5 // pred_check_branch
        %323 = sbr.rel (%p321) target = $region48
      $region47: #{tpu_custom_call.1} parent=5 // pred_region
        // Predicated region
        $region49: #{tpu_custom_call.1} parent=47 // pred_check
          %p324 = pneg %p53
        $region50: #{tpu_custom_call.1} parent=47 // pred_check_branch
          %326 = sbr.rel (%p324) target = $region52
        $region51: #{tpu_custom_call.1} parent=47 // pred_region
          %s327 = smul.u32 16, %s26
          %s328 = smul.u32 8, %s27
          %p329 = scmp.lt.s32.totalorder %s327, 31
          %s330 = scalar_select %p329, %s327, 31
          %p331 = scmp.lt.s32.totalorder %s328, 7
          %s332 = scalar_select %p331, %s328, 7
          %s333 = smul.addr %s330, 8
          %s334 = sadd.s32 %s332, %s333
          %s335 = smul.addr %s334, 4
          %s336 = scalar_lea.vmem %s0, %s335
          %s337 = smul.u32 16, %s26
          %s338 = smul.u32 8, %s27
        $region52: #{tpu_custom_call.1} parent=47 // pred_fallthru
          _
        // Predicated region
        $region53: #{tpu_custom_call.1} parent=47 // pred_check
          %p339 = pneg %p81
        $region54: #{tpu_custom_call.1} parent=47 // pred_check_branch
          %341 = sbr.rel (%p339) target = $region56
        $region55: #{tpu_custom_call.1} parent=47 // pred_region
          %s342 = smul.u32 2, %s26
          %p343 = scmp.lt.s32.totalorder %s27, 0
          %s344 = scalar_select %p343, %s27, 0
          %p345 = scmp.lt.s32.totalorder %s342, 3
          %s346 = scalar_select %p345, %s342, 3
          %s347 = smul.addr %s344, 4
          %s348 = sadd.s32 %s346, %s347
          %s349 = smul.addr %s348, 8
          %s350 = scalar_lea.vmem %s1, %s349
          %s351 = smul.u32 2, %s26
        $region56: #{tpu_custom_call.1} parent=47 // pred_fallthru
          _
      $region48: #{tpu_custom_call.1} parent=5 // pred_fallthru
        _
      %p352 = scmp.le.s32.totalorder 1, %s19
      %p353 = scmp.lt.s32.totalorder %s19, 3
      %p354 = pnand %p352, %p353
      %p355 = pneg %p354
      // Predicated region
      $region57: #{tpu_custom_call.1} parent=5 // pred_check
        _
      $region58: #{tpu_custom_call.1} parent=5 // pred_check_branch
        %357 = sbr.rel (%p354) target = $region60
      $region59: #{tpu_custom_call.1} parent=5 // pred_region
        %s358 = ssub.s32 %s19, 1
        %s359 = smul.u32 16, %s28
        %s360 = smul.u32 8, %s29
        %p361 = scmp.lt.s32.totalorder %s359, 31
        %s362 = scalar_select %p361, %s359, 31
        %p363 = scmp.lt.s32.totalorder %s360, 7
        %s364 = scalar_select %p363, %s360, 7
        %s365 = smul.addr %s362, 8
        %s366 = sadd.s32 %s364, %s365
        %s367 = smul.addr %s366, 4
        %s368 = scalar_lea.vmem %s0, %s367
        %p369 = pneg %p59
        %p370 = pneg %p56
        %s371 = smul.u32 2, %s28
        %p372 = scmp.lt.s32.totalorder %s29, 0
        %s373 = scalar_select %p372, %s29, 0
        %p374 = scmp.lt.s32.totalorder %s371, 3
        %s375 = scalar_select %p374, %s371, 3
        %s376 = smul.addr %s373, 4
        %s377 = sadd.s32 %s375, %s376
        %s378 = smul.addr %s377, 8
        %s379 = scalar_lea.vmem %s1, %s378
        %p380 = pneg %p87
        %p381 = pneg %p84
        %p382 = pneg %p108
        %p383 = pneg %p105
        %p384 = pneg %p129
        %p385 = pneg %p126
        %p386 = pneg %p150
        %p387 = pneg %p147
        %p388 = pneg %p171
        %p389 = pneg %p168
        %p390 = pneg %p192
        %p391 = pneg %p189
        %p392 = pneg %p213
        %p393 = pneg %p210
        %p394 = pneg %p234
        %p395 = pneg %p231
        %p396 = pneg %p255
        %p397 = pneg %p252
        %p398 = pneg %p281
        %p399 = pneg %p278
        %s400 = sand.u32 %s268, 1
        %s401 = scalar_lea.sflag [#allocation3], %s400
        %s402 = sand.u32 %s268, 1
        %s403 = smul.addr %s402, 16
        %s404 = scalar_lea.vmem [#allocation2], %s403
        %s405 = smul.u32 16, %s28
        %s406 = smul.u32 8, %s29
        %p407 = scmp.lt.s32.totalorder %s405, 31
        %s408 = scalar_select %p407, %s405, 31
        %p409 = scmp.lt.s32.totalorder %s406, 7
        %s410 = scalar_select %p409, %s406, 7
        %s411 = smul.addr %s408, 8
        %s412 = sadd.s32 %s410, %s411
        %s413 = smul.addr %s412, 4
        %s414 = scalar_lea.vmem %s0, %s413
        %s415 = smul.u32 16, %s28
        %s416 = smul.u32 8, %s29
        %s417 = smul.u32 2, %s28
        %p418 = scmp.lt.s32.totalorder %s29, 0
        %s419 = scalar_select %p418, %s29, 0
        %p420 = scmp.lt.s32.totalorder %s417, 3
        %s421 = scalar_select %p420, %s417, 3
        %s422 = smul.addr %s419, 4
        %s423 = sadd.s32 %s421, %s422
        %s424 = smul.addr %s423, 8
        %s425 = scalar_lea.vmem %s1, %s424
        %s426 = smul.u32 2, %s28
        %s427 = smul.u32 2, %s28
        %p429 = scmp.eq.s32.totalorder %s29, 0
        // Predicated region
        $region61: #{tpu_custom_call.1} parent=59 // pred_check
          %p430 = pneg %p429
        $region62: #{tpu_custom_call.1} parent=59 // pred_check_branch
          %432 = sbr.rel (%p430) target = $region64
        $region63: #{tpu_custom_call.1} parent=59 // pred_region
          %433 = vst [vmem:[%s404] sm:$0xff] -1e+30
          %434 = vst [vmem:[%s404 + $0x8] sm:$0xff] -1e+30
        $region64: #{tpu_custom_call.1} parent=59 // pred_fallthru
          _
        %v435 = vld [vmem:[%s414] sm:$0xf]
        %v436 = vld [vmem:[%s414 + $0x4] sm:$0xf]
        %v437 = vld [vmem:[%s414 + $0x8] sm:$0xf]
        %v438 = vld [vmem:[%s414 + $0xc] sm:$0xf]
        %v439 = vld [vmem:[%s414 + $0x10] sm:$0xf]
        %v440 = vld [vmem:[%s414 + $0x14] sm:$0xf]
        %v441 = vld [vmem:[%s414 + $0x18] sm:$0xf]
        %v442 = vld [vmem:[%s414 + $0x1c] sm:$0xf]
        %v443 = vld [vmem:[%s414 + $0x20] sm:$0xf]
        %v444 = vld [vmem:[%s414 + $0x24] sm:$0xf]
        %v445 = vld [vmem:[%s414 + $0x28] sm:$0xf]
        %v446 = vld [vmem:[%s414 + $0x2c] sm:$0xf]
        %v447 = vld [vmem:[%s414 + $0x30] sm:$0xf]
        %v448 = vld [vmem:[%s414 + $0x34] sm:$0xf]
        %v449 = vld [vmem:[%s414 + $0x38] sm:$0xf]
        %v450 = vld [vmem:[%s414 + $0x3c] sm:$0xf]
        %v451 = vld [vmem:[%s414 + $0x40] sm:$0xf]
        %v452 = vld [vmem:[%s414 + $0x44] sm:$0xf]
        %v453 = vld [vmem:[%s414 + $0x48] sm:$0xf]
        %v454 = vld [vmem:[%s414 + $0x4c] sm:$0xf]
        %v455 = vld [vmem:[%s414 + $0x50] sm:$0xf]
        %v456 = vld [vmem:[%s414 + $0x54] sm:$0xf]
        %v457 = vld [vmem:[%s414 + $0x58] sm:$0xf]
        %v458 = vld [vmem:[%s414 + $0x5c] sm:$0xf]
        %v459 = vld [vmem:[%s414 + $0x60] sm:$0xf]
        %v460 = vld [vmem:[%s414 + $0x64] sm:$0xf]
        %v461 = vld [vmem:[%s414 + $0x68] sm:$0xf]
        %v462 = vld [vmem:[%s414 + $0x6c] sm:$0xf]
        %v463 = vld [vmem:[%s414 + $0x70] sm:$0xf]
        %v464 = vld [vmem:[%s414 + $0x74] sm:$0xf]
        %v465 = vld [vmem:[%s414 + $0x78] sm:$0xf]
        %v466 = vld [vmem:[%s414 + $0x7c] sm:$0xf]
        %v467 = vld [vmem:[%s414 + $0x80] sm:$0xf]
        %v468 = vld [vmem:[%s414 + $0x84] sm:$0xf]
        %v469 = vld [vmem:[%s414 + $0x88] sm:$0xf]
        %v470 = vld [vmem:[%s414 + $0x8c] sm:$0xf]
        %v471 = vld [vmem:[%s414 + $0x90] sm:$0xf]
        %v472 = vld [vmem:[%s414 + $0x94] sm:$0xf]
        %v473 = vld [vmem:[%s414 + $0x98] sm:$0xf]
        %v474 = vld [vmem:[%s414 + $0x9c] sm:$0xf]
        %v475 = vld [vmem:[%s414 + $0xa0] sm:$0xf]
        %v476 = vld [vmem:[%s414 + $0xa4] sm:$0xf]
        %v477 = vld [vmem:[%s414 + $0xa8] sm:$0xf]
        %v478 = vld [vmem:[%s414 + $0xac] sm:$0xf]
        %v479 = vld [vmem:[%s414 + $0xb0] sm:$0xf]
        %v480 = vld [vmem:[%s414 + $0xb4] sm:$0xf]
        %v481 = vld [vmem:[%s414 + $0xb8] sm:$0xf]
        %v482 = vld [vmem:[%s414 + $0xbc] sm:$0xf]
        %v483 = vld [vmem:[%s414 + $0xc0] sm:$0xf]
        %v484 = vld [vmem:[%s414 + $0xc4] sm:$0xf]
        %v485 = vld [vmem:[%s414 + $0xc8] sm:$0xf]
        %v486 = vld [vmem:[%s414 + $0xcc] sm:$0xf]
        %v487 = vld [vmem:[%s414 + $0xd0] sm:$0xf]
        %v488 = vld [vmem:[%s414 + $0xd4] sm:$0xf]
        %v489 = vld [vmem:[%s414 + $0xd8] sm:$0xf]
        %v490 = vld [vmem:[%s414 + $0xdc] sm:$0xf]
        %v491 = vld [vmem:[%s414 + $0xe0] sm:$0xf]
        %v492 = vld [vmem:[%s414 + $0xe4] sm:$0xf]
        %v493 = vld [vmem:[%s414 + $0xe8] sm:$0xf]
        %v494 = vld [vmem:[%s414 + $0xec] sm:$0xf]
        %v495 = vld [vmem:[%s414 + $0xf0] sm:$0xf]
        %v496 = vld [vmem:[%s414 + $0xf4] sm:$0xf]
        %v497 = vld [vmem:[%s414 + $0xf8] sm:$0xf]
        %v498 = vld [vmem:[%s414 + $0xfc] sm:$0xf]
        %v499 = vld [vmem:[%s414 + $0x100] sm:$0xf]
        %v500 = vld [vmem:[%s414 + $0x104] sm:$0xf]
        %v501 = vld [vmem:[%s414 + $0x108] sm:$0xf]
        %v502 = vld [vmem:[%s414 + $0x10c] sm:$0xf]
        %v503 = vld [vmem:[%s414 + $0x110] sm:$0xf]
        %v504 = vld [vmem:[%s414 + $0x114] sm:$0xf]
        %v505 = vld [vmem:[%s414 + $0x118] sm:$0xf]
        %v506 = vld [vmem:[%s414 + $0x11c] sm:$0xf]
        %v507 = vld [vmem:[%s414 + $0x120] sm:$0xf]
        %v508 = vld [vmem:[%s414 + $0x124] sm:$0xf]
        %v509 = vld [vmem:[%s414 + $0x128] sm:$0xf]
        %v510 = vld [vmem:[%s414 + $0x12c] sm:$0xf]
        %v511 = vld [vmem:[%s414 + $0x130] sm:$0xf]
        %v512 = vld [vmem:[%s414 + $0x134] sm:$0xf]
        %v513 = vld [vmem:[%s414 + $0x138] sm:$0xf]
        %v514 = vld [vmem:[%s414 + $0x13c] sm:$0xf]
        %v515 = vld [vmem:[%s414 + $0x140] sm:$0xf]
        %v516 = vld [vmem:[%s414 + $0x144] sm:$0xf]
        %v517 = vld [vmem:[%s414 + $0x148] sm:$0xf]
        %v518 = vld [vmem:[%s414 + $0x14c] sm:$0xf]
        %v519 = vld [vmem:[%s414 + $0x150] sm:$0xf]
        %v520 = vld [vmem:[%s414 + $0x154] sm:$0xf]
        %v521 = vld [vmem:[%s414 + $0x158] sm:$0xf]
        %v522 = vld [vmem:[%s414 + $0x15c] sm:$0xf]
        %v523 = vld [vmem:[%s414 + $0x160] sm:$0xf]
        %v524 = vld [vmem:[%s414 + $0x164] sm:$0xf]
        %v525 = vld [vmem:[%s414 + $0x168] sm:$0xf]
        %v526 = vld [vmem:[%s414 + $0x16c] sm:$0xf]
        %v527 = vld [vmem:[%s414 + $0x170] sm:$0xf]
        %v528 = vld [vmem:[%s414 + $0x174] sm:$0xf]
        %v529 = vld [vmem:[%s414 + $0x178] sm:$0xf]
        %v530 = vld [vmem:[%s414 + $0x17c] sm:$0xf]
        %v531 = vld [vmem:[%s414 + $0x180] sm:$0xf]
        %v532 = vld [vmem:[%s414 + $0x184] sm:$0xf]
        %v533 = vld [vmem:[%s414 + $0x188] sm:$0xf]
        %v534 = vld [vmem:[%s414 + $0x18c] sm:$0xf]
        %v535 = vld [vmem:[%s414 + $0x190] sm:$0xf]
        %v536 = vld [vmem:[%s414 + $0x194] sm:$0xf]
        %v537 = vld [vmem:[%s414 + $0x198] sm:$0xf]
        %v538 = vld [vmem:[%s414 + $0x19c] sm:$0xf]
        %v539 = vld [vmem:[%s414 + $0x1a0] sm:$0xf]
        %v540 = vld [vmem:[%s414 + $0x1a4] sm:$0xf]
        %v541 = vld [vmem:[%s414 + $0x1a8] sm:$0xf]
        %v542 = vld [vmem:[%s414 + $0x1ac] sm:$0xf]
        %v543 = vld [vmem:[%s414 + $0x1b0] sm:$0xf]
        %v544 = vld [vmem:[%s414 + $0x1b4] sm:$0xf]
        %v545 = vld [vmem:[%s414 + $0x1b8] sm:$0xf]
        %v546 = vld [vmem:[%s414 + $0x1bc] sm:$0xf]
        %v547 = vld [vmem:[%s414 + $0x1c0] sm:$0xf]
        %v548 = vld [vmem:[%s414 + $0x1c4] sm:$0xf]
        %v549 = vld [vmem:[%s414 + $0x1c8] sm:$0xf]
        %v550 = vld [vmem:[%s414 + $0x1cc] sm:$0xf]
        %v551 = vld [vmem:[%s414 + $0x1d0] sm:$0xf]
        %v552 = vld [vmem:[%s414 + $0x1d4] sm:$0xf]
        %v553 = vld [vmem:[%s414 + $0x1d8] sm:$0xf]
        %v554 = vld [vmem:[%s414 + $0x1dc] sm:$0xf]
        %v555 = vld [vmem:[%s414 + $0x1e0] sm:$0xf]
        %v556 = vld [vmem:[%s414 + $0x1e4] sm:$0xf]
        %v557 = vld [vmem:[%s414 + $0x1e8] sm:$0xf]
        %v558 = vld [vmem:[%s414 + $0x1ec] sm:$0xf]
        %v559 = vld [vmem:[%s414 + $0x1f0] sm:$0xf]
        %v560 = vld [vmem:[%s414 + $0x1f4] sm:$0xf]
        %v561 = vld [vmem:[%s414 + $0x1f8] sm:$0xf]
        %v562 = vld [vmem:[%s414 + $0x1fc] sm:$0xf]
        %v563 = vld [vmem:[%s2] sm:$0xf]
        %v564 = vld [vmem:[%s2 + $0x4] sm:$0xf]
        %v565 = vld [vmem:[%s3] sm:$0x1]
        %v567 = vlaneseq
        %v568 = vshrl.u32 %v567, 7
        %v569 = vsub.s32 0, %v568
        %v570 = vrot.slane %v565, %v569
        %v700 = vunpack.c.l.b16 %v435
        %v701 = vunpack.c.l.b16 %v436
        %v702 = vunpack.c.l.b16 %v437
        %v703 = vunpack.c.l.b16 %v438
        %v704 = vunpack.c.l.b16 %v439
        %v705 = vunpack.c.l.b16 %v440
        %v706 = vunpack.c.l.b16 %v441
        %v707 = vunpack.c.l.b16 %v442
        %v708 = vunpack.c.l.b16 %v443
        %v709 = vunpack.c.l.b16 %v444
        %v710 = vunpack.c.l.b16 %v445
        %v711 = vunpack.c.l.b16 %v446
        %v712 = vunpack.c.l.b16 %v447
        %v713 = vunpack.c.l.b16 %v448
        %v714 = vunpack.c.l.b16 %v449
        %v715 = vunpack.c.l.b16 %v450
        %v716 = vunpack.c.l.b16 %v451
        %v717 = vunpack.c.l.b16 %v452
        %v718 = vunpack.c.l.b16 %v453
        %v719 = vunpack.c.l.b16 %v454
        %v720 = vunpack.c.l.b16 %v455
        %v721 = vunpack.c.l.b16 %v456
        %v722 = vunpack.c.l.b16 %v457
        %v723 = vunpack.c.l.b16 %v458
        %v724 = vunpack.c.l.b16 %v459
        %v725 = vunpack.c.l.b16 %v460
        %v726 = vunpack.c.l.b16 %v461
        %v727 = vunpack.c.l.b16 %v462
        %v728 = vunpack.c.l.b16 %v463
        %v729 = vunpack.c.l.b16 %v464
        %v730 = vunpack.c.l.b16 %v465
        %v731 = vunpack.c.l.b16 %v466
        %v732 = vunpack.c.l.b16 %v467
        %v733 = vunpack.c.l.b16 %v468
        %v734 = vunpack.c.l.b16 %v469
        %v735 = vunpack.c.l.b16 %v470
        %v736 = vunpack.c.l.b16 %v471
        %v737 = vunpack.c.l.b16 %v472
        %v738 = vunpack.c.l.b16 %v473
        %v739 = vunpack.c.l.b16 %v474
        %v740 = vunpack.c.l.b16 %v475
        %v741 = vunpack.c.l.b16 %v476
        %v742 = vunpack.c.l.b16 %v477
        %v743 = vunpack.c.l.b16 %v478
        %v744 = vunpack.c.l.b16 %v479
        %v745 = vunpack.c.l.b16 %v480
        %v746 = vunpack.c.l.b16 %v481
        %v747 = vunpack.c.l.b16 %v482
        %v748 = vunpack.c.l.b16 %v483
        %v749 = vunpack.c.l.b16 %v484
        %v750 = vunpack.c.l.b16 %v485
        %v751 = vunpack.c.l.b16 %v486
        %v752 = vunpack.c.l.b16 %v487
        %v753 = vunpack.c.l.b16 %v488
        %v754 = vunpack.c.l.b16 %v489
        %v755 = vunpack.c.l.b16 %v490
        %v756 = vunpack.c.l.b16 %v491
        %v757 = vunpack.c.l.b16 %v492
        %v758 = vunpack.c.l.b16 %v493
        %v759 = vunpack.c.l.b16 %v494
        %v760 = vunpack.c.l.b16 %v495
        %v761 = vunpack.c.l.b16 %v496
        %v762 = vunpack.c.l.b16 %v497
        %v763 = vunpack.c.l.b16 %v498
        %v764 = vunpack.c.l.b16 %v499
        %v765 = vunpack.c.l.b16 %v500
        %v766 = vunpack.c.l.b16 %v501
        %v767 = vunpack.c.l.b16 %v502
        %v768 = vunpack.c.l.b16 %v503
        %v769 = vunpack.c.l.b16 %v504
        %v770 = vunpack.c.l.b16 %v505
        %v771 = vunpack.c.l.b16 %v506
        %v772 = vunpack.c.l.b16 %v507
        %v773 = vunpack.c.l.b16 %v508
        %v774 = vunpack.c.l.b16 %v509
        %v775 = vunpack.c.l.b16 %v510
        %v776 = vunpack.c.l.b16 %v511
        %v777 = vunpack.c.l.b16 %v512
        %v778 = vunpack.c.l.b16 %v513
        %v779 = vunpack.c.l.b16 %v514
        %v780 = vunpack.c.l.b16 %v515
        %v781 = vunpack.c.l.b16 %v516
        %v782 = vunpack.c.l.b16 %v517
        %v783 = vunpack.c.l.b16 %v518
        %v784 = vunpack.c.l.b16 %v519
        %v785 = vunpack.c.l.b16 %v520
        %v786 = vunpack.c.l.b16 %v521
        %v787 = vunpack.c.l.b16 %v522
        %v788 = vunpack.c.l.b16 %v523
        %v789 = vunpack.c.l.b16 %v524
        %v790 = vunpack.c.l.b16 %v525
        %v791 = vunpack.c.l.b16 %v526
        %v792 = vunpack.c.l.b16 %v527
        %v793 = vunpack.c.l.b16 %v528
        %v794 = vunpack.c.l.b16 %v529
        %v795 = vunpack.c.l.b16 %v530
        %v796 = vunpack.c.l.b16 %v531
        %v797 = vunpack.c.l.b16 %v532
        %v798 = vunpack.c.l.b16 %v533
        %v799 = vunpack.c.l.b16 %v534
        %v800 = vunpack.c.l.b16 %v535
        %v801 = vunpack.c.l.b16 %v536
        %v802 = vunpack.c.l.b16 %v537
        %v803 = vunpack.c.l.b16 %v538
        %v804 = vunpack.c.l.b16 %v539
        %v805 = vunpack.c.l.b16 %v540
        %v806 = vunpack.c.l.b16 %v541
        %v807 = vunpack.c.l.b16 %v542
        %v808 = vunpack.c.l.b16 %v543
        %v809 = vunpack.c.l.b16 %v544
        %v810 = vunpack.c.l.b16 %v545
        %v811 = vunpack.c.l.b16 %v546
        %v812 = vunpack.c.l.b16 %v547
        %v813 = vunpack.c.l.b16 %v548
        %v814 = vunpack.c.l.b16 %v549
        %v815 = vunpack.c.l.b16 %v550
        %v816 = vunpack.c.l.b16 %v551
        %v817 = vunpack.c.l.b16 %v552
        %v818 = vunpack.c.l.b16 %v553
        %v819 = vunpack.c.l.b16 %v554
        %v820 = vunpack.c.l.b16 %v555
        %v821 = vunpack.c.l.b16 %v556
        %v822 = vunpack.c.l.b16 %v557
        %v823 = vunpack.c.l.b16 %v558
        %v824 = vunpack.c.l.b16 %v559
        %v825 = vunpack.c.l.b16 %v560
        %v826 = vunpack.c.l.b16 %v561
        %v827 = vunpack.c.l.b16 %v562
        %v828 = vpack.c.b16 %v701, %v700
        %v829 = vpack.c.b16 %v703, %v702
        %v830 = vpack.c.b16 %v705, %v704
        %v831 = vpack.c.b16 %v707, %v706
        %v832 = vpack.c.b16 %v709, %v708
        %v833 = vpack.c.b16 %v711, %v710
        %v834 = vpack.c.b16 %v713, %v712
        %v835 = vpack.c.b16 %v715, %v714
        %v836 = vpack.c.b16 %v717, %v716
        %v837 = vpack.c.b16 %v719, %v718
        %v838 = vpack.c.b16 %v721, %v720
        %v839 = vpack.c.b16 %v723, %v722
        %v840 = vpack.c.b16 %v725, %v724
        %v841 = vpack.c.b16 %v727, %v726
        %v842 = vpack.c.b16 %v729, %v728
        %v843 = vpack.c.b16 %v731, %v730
        %v844 = vpack.c.b16 %v733, %v732
        %v845 = vpack.c.b16 %v735, %v734
        %v846 = vpack.c.b16 %v737, %v736
        %v847 = vpack.c.b16 %v739, %v738
        %v848 = vpack.c.b16 %v741, %v740
        %v849 = vpack.c.b16 %v743, %v742
        %v850 = vpack.c.b16 %v745, %v744
        %v851 = vpack.c.b16 %v747, %v746
        %v852 = vpack.c.b16 %v749, %v748
        %v853 = vpack.c.b16 %v751, %v750
        %v854 = vpack.c.b16 %v753, %v752
        %v855 = vpack.c.b16 %v755, %v754
        %v856 = vpack.c.b16 %v757, %v756
        %v857 = vpack.c.b16 %v759, %v758
        %v858 = vpack.c.b16 %v761, %v760
        %v859 = vpack.c.b16 %v763, %v762
        %v860 = vpack.c.b16 %v765, %v764
        %v861 = vpack.c.b16 %v767, %v766
        %v862 = vpack.c.b16 %v769, %v768
        %v863 = vpack.c.b16 %v771, %v770
        %v864 = vpack.c.b16 %v773, %v772
        %v865 = vpack.c.b16 %v775, %v774
        %v866 = vpack.c.b16 %v777, %v776
        %v867 = vpack.c.b16 %v779, %v778
        %v868 = vpack.c.b16 %v781, %v780
        %v869 = vpack.c.b16 %v783, %v782
        %v870 = vpack.c.b16 %v785, %v784
        %v871 = vpack.c.b16 %v787, %v786
        %v872 = vpack.c.b16 %v789, %v788
        %v873 = vpack.c.b16 %v791, %v790
        %v874 = vpack.c.b16 %v793, %v792
        %v875 = vpack.c.b16 %v795, %v794
        %v876 = vpack.c.b16 %v797, %v796
        %v877 = vpack.c.b16 %v799, %v798
        %v878 = vpack.c.b16 %v801, %v800
        %v879 = vpack.c.b16 %v803, %v802
        %v880 = vpack.c.b16 %v805, %v804
        %v881 = vpack.c.b16 %v807, %v806
        %v882 = vpack.c.b16 %v809, %v808
        %v883 = vpack.c.b16 %v811, %v810
        %v884 = vpack.c.b16 %v813, %v812
        %v885 = vpack.c.b16 %v815, %v814
        %v886 = vpack.c.b16 %v817, %v816
        %v887 = vpack.c.b16 %v819, %v818
        %v888 = vpack.c.b16 %v821, %v820
        %v889 = vpack.c.b16 %v823, %v822
        %v890 = vpack.c.b16 %v825, %v824
        %v891 = vpack.c.b16 %v827, %v826
        %v894 = vunpack.c.l.b16 %v563
        %v895 = vunpack.c.l.b16 %v564
        %v896 = vpack.c.b16 %v895, %v894
        %vm898 = vcmask 130048
        %v900 = vsel %vm898, %v828, 0
        %v903 = vsel %vm898, %v829, 0
        %v906 = vsel %vm898, %v830, 0
        %v909 = vsel %vm898, %v831, 0
        %v912 = vsel %vm898, %v832, 0
        %v915 = vsel %vm898, %v833, 0
        %v918 = vsel %vm898, %v834, 0
        %v921 = vsel %vm898, %v835, 0
        %v924 = vsel %vm898, %v836, 0
        %v927 = vsel %vm898, %v837, 0
        %v930 = vsel %vm898, %v838, 0
        %v933 = vsel %vm898, %v839, 0
        %v936 = vsel %vm898, %v840, 0
        %v939 = vsel %vm898, %v841, 0
        %v942 = vsel %vm898, %v842, 0
        %v945 = vsel %vm898, %v843, 0
        %v948 = vsel %vm898, %v844, 0
        %v951 = vsel %vm898, %v845, 0
        %v954 = vsel %vm898, %v846, 0
        %v957 = vsel %vm898, %v847, 0
        %v960 = vsel %vm898, %v848, 0
        %v963 = vsel %vm898, %v849, 0
        %v966 = vsel %vm898, %v850, 0
        %v969 = vsel %vm898, %v851, 0
        %v972 = vsel %vm898, %v852, 0
        %v975 = vsel %vm898, %v853, 0
        %v978 = vsel %vm898, %v854, 0
        %v981 = vsel %vm898, %v855, 0
        %v984 = vsel %vm898, %v856, 0
        %v987 = vsel %vm898, %v857, 0
        %v990 = vsel %vm898, %v858, 0
        %v993 = vsel %vm898, %v859, 0
        %v996 = vsel %vm898, %v860, 0
        %v999 = vsel %vm898, %v861, 0
        %v1002 = vsel %vm898, %v862, 0
        %v1005 = vsel %vm898, %v863, 0
        %v1008 = vsel %vm898, %v864, 0
        %v1011 = vsel %vm898, %v865, 0
        %v1014 = vsel %vm898, %v866, 0
        %v1017 = vsel %vm898, %v867, 0
        %v1020 = vsel %vm898, %v868, 0
        %v1023 = vsel %vm898, %v869, 0
        %v1026 = vsel %vm898, %v870, 0
        %v1029 = vsel %vm898, %v871, 0
        %v1032 = vsel %vm898, %v872, 0
        %v1035 = vsel %vm898, %v873, 0
        %v1038 = vsel %vm898, %v874, 0
        %v1041 = vsel %vm898, %v875, 0
        %v1044 = vsel %vm898, %v876, 0
        %v1047 = vsel %vm898, %v877, 0
        %v1050 = vsel %vm898, %v878, 0
        %v1053 = vsel %vm898, %v879, 0
        %v1056 = vsel %vm898, %v880, 0
        %v1059 = vsel %vm898, %v881, 0
        %v1062 = vsel %vm898, %v882, 0
        %v1065 = vsel %vm898, %v883, 0
        %v1068 = vsel %vm898, %v884, 0
        %v1071 = vsel %vm898, %v885, 0
        %v1074 = vsel %vm898, %v886, 0
        %v1077 = vsel %vm898, %v887, 0
        %v1080 = vsel %vm898, %v888, 0
        %v1083 = vsel %vm898, %v889, 0
        %v1086 = vsel %vm898, %v890, 0
        %v1089 = vsel %vm898, %v891, 0
        %1091 = vmatprep.subr.bf16.mxu0 0
        %1092 = vmatpush1.bf16.msra.mxu0 0
        %1093 = vmatprep.subr.bf16.mxu0 0
        %1094 = vmatpush1.bf16.msra.mxu0 0
        %1095 = vmatprep.subr.bf16.mxu0 0
        %1096 = vmatpush1.bf16.msra.mxu0 0
        %1097 = vmatprep.subr.bf16.mxu0 0
        %1098 = vmatpush1.bf16.msra.mxu0 0
        %1099 = vmatprep.subr.bf16.mxu0 0
        %1100 = vmatpush1.bf16.msra.mxu0 0
        %1101 = vmatprep.subr.bf16.mxu0 0
        %1102 = vmatpush1.bf16.msra.mxu0 0
        %1103 = vmatprep.subr.bf16.mxu0 0
        %1104 = vmatpush1.bf16.msra.mxu0 0
        %1105 = vmatprep.subr.bf16.mxu0 0
        %1106 = vmatpush1.bf16.msra.mxu0 %v896
        %1107 = vmatprep.subr.bf16.mxu0 0
        %1108 = vmatpush2.bf16.msra.mxu0 0
        %1109 = vmatprep.subr.bf16.mxu0 0
        %1110 = vmatpush2.bf16.msra.mxu0 0
        %1111 = vmatprep.subr.bf16.mxu0 0
        %1112 = vmatpush2.bf16.msra.mxu0 0
        %1113 = vmatprep.subr.bf16.mxu0 0
        %1114 = vmatpush2.bf16.msra.mxu0 0
        %1115 = vmatprep.subr.bf16.mxu0 0
        %1116 = vmatpush2.bf16.msra.mxu0 0
        %1117 = vmatprep.subr.bf16.mxu0 0
        %1118 = vmatpush2.bf16.msra.mxu0 0
        %1119 = vmatprep.subr.bf16.mxu0 0
        %1120 = vmatpush2.bf16.msra.mxu0 0
        %1121 = vmatprep.subr.bf16.mxu0 0
        %1122 = vmatpush2.bf16.msra.mxu0 0
        %1123 = vmatprep.mubr.bf16.mxu0 0
        %1124 = vmatmul.mubr.bf16.gmra.mxu0 %v900
        %v1125 = vpop.f32.mrf.mxu0
        %v1126 = vadd.f32 %v570, %v1125
        %v1127 = vpop.f32.mrf.mxu0
        %v1128 = vpop.f32.mrf.mxu0
        %v1129 = vadd.f32 %v570, %v1128
        %v1130 = vpop.f32.mrf.mxu0
        %1131 = vmatprep.mubr.bf16.mxu0 0
        %1132 = vmatmul.mubr.bf16.gmra.mxu0 %v903
        %v1133 = vpop.f32.mrf.mxu0
        %v1134 = vadd.f32 %v570, %v1133
        %v1135 = vpop.f32.mrf.mxu0
        %v1136 = vpop.f32.mrf.mxu0
        %v1137 = vadd.f32 %v570, %v1136
        %v1138 = vpop.f32.mrf.mxu0
        %1139 = vmatprep.mubr.bf16.mxu0 0
        %1140 = vmatmul.mubr.bf16.gmra.mxu0 %v906
        %v1141 = vpop.f32.mrf.mxu0
        %v1142 = vadd.f32 %v570, %v1141
        %v1143 = vpop.f32.mrf.mxu0
        %v1144 = vpop.f32.mrf.mxu0
        %v1145 = vadd.f32 %v570, %v1144
        %v1146 = vpop.f32.mrf.mxu0
        %1147 = vmatprep.mubr.bf16.mxu0 0
        %1148 = vmatmul.mubr.bf16.gmra.mxu0 %v909
        %v1149 = vpop.f32.mrf.mxu0
        %v1150 = vadd.f32 %v570, %v1149
        %v1151 = vpop.f32.mrf.mxu0
        %v1152 = vpop.f32.mrf.mxu0
        %v1153 = vadd.f32 %v570, %v1152
        %v1154 = vpop.f32.mrf.mxu0
        %1155 = vmatprep.mubr.bf16.mxu0 0
        %1156 = vmatmul.mubr.bf16.gmra.mxu0 %v912
        %v1157 = vpop.f32.mrf.mxu0
        %v1158 = vadd.f32 %v570, %v1157
        %v1159 = vpop.f32.mrf.mxu0
        %v1160 = vpop.f32.mrf.mxu0
        %v1161 = vadd.f32 %v570, %v1160
        %v1162 = vpop.f32.mrf.mxu0
        %1163 = vmatprep.mubr.bf16.mxu0 0
        %1164 = vmatmul.mubr.bf16.gmra.mxu0 %v915
        %v1165 = vpop.f32.mrf.mxu0
        %v1166 = vadd.f32 %v570, %v1165
        %v1167 = vpop.f32.mrf.mxu0
        %v1168 = vpop.f32.mrf.mxu0
        %v1169 = vadd.f32 %v570, %v1168
        %v1170 = vpop.f32.mrf.mxu0
        %1171 = vmatprep.mubr.bf16.mxu0 0
        %1172 = vmatmul.mubr.bf16.gmra.mxu0 %v918
        %v1173 = vpop.f32.mrf.mxu0
        %v1174 = vadd.f32 %v570, %v1173
        %v1175 = vpop.f32.mrf.mxu0
        %v1176 = vpop.f32.mrf.mxu0
        %v1177 = vadd.f32 %v570, %v1176
        %v1178 = vpop.f32.mrf.mxu0
        %1179 = vmatprep.mubr.bf16.mxu0 0
        %1180 = vmatmul.mubr.bf16.gmra.mxu0 %v921
        %v1181 = vpop.f32.mrf.mxu0
        %v1182 = vadd.f32 %v570, %v1181
        %v1183 = vpop.f32.mrf.mxu0
        %v1184 = vpop.f32.mrf.mxu0
        %v1185 = vadd.f32 %v570, %v1184
        %v1186 = vpop.f32.mrf.mxu0
        %1187 = vmatprep.mubr.bf16.mxu0 0
        %1188 = vmatmul.mubr.bf16.gmra.mxu0 %v924
        %v1189 = vpop.f32.mrf.mxu0
        %v1190 = vadd.f32 %v570, %v1189
        %v1191 = vpop.f32.mrf.mxu0
        %v1192 = vpop.f32.mrf.mxu0
        %v1193 = vadd.f32 %v570, %v1192
        %v1194 = vpop.f32.mrf.mxu0
        %1195 = vmatprep.mubr.bf16.mxu0 0
        %1196 = vmatmul.mubr.bf16.gmra.mxu0 %v927
        %v1197 = vpop.f32.mrf.mxu0
        %v1198 = vadd.f32 %v570, %v1197
        %v1199 = vpop.f32.mrf.mxu0
        %v1200 = vpop.f32.mrf.mxu0
        %v1201 = vadd.f32 %v570, %v1200
        %v1202 = vpop.f32.mrf.mxu0
        %1203 = vmatprep.mubr.bf16.mxu0 0
        %1204 = vmatmul.mubr.bf16.gmra.mxu0 %v930
        %v1205 = vpop.f32.mrf.mxu0
        %v1206 = vadd.f32 %v570, %v1205
        %v1207 = vpop.f32.mrf.mxu0
        %v1208 = vpop.f32.mrf.mxu0
        %v1209 = vadd.f32 %v570, %v1208
        %v1210 = vpop.f32.mrf.mxu0
        %1211 = vmatprep.mubr.bf16.mxu0 0
        %1212 = vmatmul.mubr.bf16.gmra.mxu0 %v933
        %v1213 = vpop.f32.mrf.mxu0
        %v1214 = vadd.f32 %v570, %v1213
        %v1215 = vpop.f32.mrf.mxu0
        %v1216 = vpop.f32.mrf.mxu0
        %v1217 = vadd.f32 %v570, %v1216
        %v1218 = vpop.f32.mrf.mxu0
        %1219 = vmatprep.mubr.bf16.mxu0 0
        %1220 = vmatmul.mubr.bf16.gmra.mxu0 %v936
        %v1221 = vpop.f32.mrf.mxu0
        %v1222 = vadd.f32 %v570, %v1221
        %v1223 = vpop.f32.mrf.mxu0
        %v1224 = vpop.f32.mrf.mxu0
        %v1225 = vadd.f32 %v570, %v1224
        %v1226 = vpop.f32.mrf.mxu0
        %1227 = vmatprep.mubr.bf16.mxu0 0
        %1228 = vmatmul.mubr.bf16.gmra.mxu0 %v939
        %v1229 = vpop.f32.mrf.mxu0
        %v1230 = vadd.f32 %v570, %v1229
        %v1231 = vpop.f32.mrf.mxu0
        %v1232 = vpop.f32.mrf.mxu0
        %v1233 = vadd.f32 %v570, %v1232
        %v1234 = vpop.f32.mrf.mxu0
        %1235 = vmatprep.mubr.bf16.mxu0 0
        %1236 = vmatmul.mubr.bf16.gmra.mxu0 %v942
        %v1237 = vpop.f32.mrf.mxu0
        %v1238 = vadd.f32 %v570, %v1237
        %v1239 = vpop.f32.mrf.mxu0
        %v1240 = vpop.f32.mrf.mxu0
        %v1241 = vadd.f32 %v570, %v1240
        %v1242 = vpop.f32.mrf.mxu0
        %1243 = vmatprep.mubr.bf16.mxu0 0
        %1244 = vmatmul.mubr.bf16.gmra.mxu0 %v945
        %v1245 = vpop.f32.mrf.mxu0
        %v1246 = vadd.f32 %v570, %v1245
        %v1247 = vpop.f32.mrf.mxu0
        %v1248 = vpop.f32.mrf.mxu0
        %v1249 = vadd.f32 %v570, %v1248
        %v1250 = vpop.f32.mrf.mxu0
        %1251 = vmatprep.mubr.bf16.mxu0 0
        %1252 = vmatmul.mubr.bf16.gmra.mxu0 %v948
        %v1253 = vpop.f32.mrf.mxu0
        %v1254 = vadd.f32 %v570, %v1253
        %v1255 = vpop.f32.mrf.mxu0
        %v1256 = vpop.f32.mrf.mxu0
        %v1257 = vadd.f32 %v570, %v1256
        %v1258 = vpop.f32.mrf.mxu0
        %1259 = vmatprep.mubr.bf16.mxu0 0
        %1260 = vmatmul.mubr.bf16.gmra.mxu0 %v951
        %v1261 = vpop.f32.mrf.mxu0
        %v1262 = vadd.f32 %v570, %v1261
        %v1263 = vpop.f32.mrf.mxu0
        %v1264 = vpop.f32.mrf.mxu0
        %v1265 = vadd.f32 %v570, %v1264
        %v1266 = vpop.f32.mrf.mxu0
        %1267 = vmatprep.mubr.bf16.mxu0 0
        %1268 = vmatmul.mubr.bf16.gmra.mxu0 %v954
        %v1269 = vpop.f32.mrf.mxu0
        %v1270 = vadd.f32 %v570, %v1269
        %v1271 = vpop.f32.mrf.mxu0
        %v1272 = vpop.f32.mrf.mxu0
        %v1273 = vadd.f32 %v570, %v1272
        %v1274 = vpop.f32.mrf.mxu0
        %1275 = vmatprep.mubr.bf16.mxu0 0
        %1276 = vmatmul.mubr.bf16.gmra.mxu0 %v957
        %v1277 = vpop.f32.mrf.mxu0
        %v1278 = vadd.f32 %v570, %v1277
        %v1279 = vpop.f32.mrf.mxu0
        %v1280 = vpop.f32.mrf.mxu0
        %v1281 = vadd.f32 %v570, %v1280
        %v1282 = vpop.f32.mrf.mxu0
        %1283 = vmatprep.mubr.bf16.mxu0 0
        %1284 = vmatmul.mubr.bf16.gmra.mxu0 %v960
        %v1285 = vpop.f32.mrf.mxu0
        %v1286 = vadd.f32 %v570, %v1285
        %v1287 = vpop.f32.mrf.mxu0
        %v1288 = vpop.f32.mrf.mxu0
        %v1289 = vadd.f32 %v570, %v1288
        %v1290 = vpop.f32.mrf.mxu0
        %1291 = vmatprep.mubr.bf16.mxu0 0
        %1292 = vmatmul.mubr.bf16.gmra.mxu0 %v963
        %v1293 = vpop.f32.mrf.mxu0
        %v1294 = vadd.f32 %v570, %v1293
        %v1295 = vpop.f32.mrf.mxu0
        %v1296 = vpop.f32.mrf.mxu0
        %v1297 = vadd.f32 %v570, %v1296
        %v1298 = vpop.f32.mrf.mxu0
        %1299 = vmatprep.mubr.bf16.mxu0 0
        %1300 = vmatmul.mubr.bf16.gmra.mxu0 %v966
        %v1301 = vpop.f32.mrf.mxu0
        %v1302 = vadd.f32 %v570, %v1301
        %v1303 = vpop.f32.mrf.mxu0
        %v1304 = vpop.f32.mrf.mxu0
        %v1305 = vadd.f32 %v570, %v1304
        %v1306 = vpop.f32.mrf.mxu0
        %1307 = vmatprep.mubr.bf16.mxu0 0
        %1308 = vmatmul.mubr.bf16.gmra.mxu0 %v969
        %v1309 = vpop.f32.mrf.mxu0
        %v1310 = vadd.f32 %v570, %v1309
        %v1311 = vpop.f32.mrf.mxu0
        %v1312 = vpop.f32.mrf.mxu0
        %v1313 = vadd.f32 %v570, %v1312
        %v1314 = vpop.f32.mrf.mxu0
        %1315 = vmatprep.mubr.bf16.mxu0 0
        %1316 = vmatmul.mubr.bf16.gmra.mxu0 %v972
        %v1317 = vpop.f32.mrf.mxu0
        %v1318 = vadd.f32 %v570, %v1317
        %v1319 = vpop.f32.mrf.mxu0
        %v1320 = vpop.f32.mrf.mxu0
        %v1321 = vadd.f32 %v570, %v1320
        %v1322 = vpop.f32.mrf.mxu0
        %1323 = vmatprep.mubr.bf16.mxu0 0
        %1324 = vmatmul.mubr.bf16.gmra.mxu0 %v975
        %v1325 = vpop.f32.mrf.mxu0
        %v1326 = vadd.f32 %v570, %v1325
        %v1327 = vpop.f32.mrf.mxu0
        %v1328 = vpop.f32.mrf.mxu0
        %v1329 = vadd.f32 %v570, %v1328
        %v1330 = vpop.f32.mrf.mxu0
        %1331 = vmatprep.mubr.bf16.mxu0 0
        %1332 = vmatmul.mubr.bf16.gmra.mxu0 %v978
        %v1333 = vpop.f32.mrf.mxu0
        %v1334 = vadd.f32 %v570, %v1333
        %v1335 = vpop.f32.mrf.mxu0
        %v1336 = vpop.f32.mrf.mxu0
        %v1337 = vadd.f32 %v570, %v1336
        %v1338 = vpop.f32.mrf.mxu0
        %1339 = vmatprep.mubr.bf16.mxu0 0
        %1340 = vmatmul.mubr.bf16.gmra.mxu0 %v981
        %v1341 = vpop.f32.mrf.mxu0
        %v1342 = vadd.f32 %v570, %v1341
        %v1343 = vpop.f32.mrf.mxu0
        %v1344 = vpop.f32.mrf.mxu0
        %v1345 = vadd.f32 %v570, %v1344
        %v1346 = vpop.f32.mrf.mxu0
        %1347 = vmatprep.mubr.bf16.mxu0 0
        %1348 = vmatmul.mubr.bf16.gmra.mxu0 %v984
        %v1349 = vpop.f32.mrf.mxu0
        %v1350 = vadd.f32 %v570, %v1349
        %v1351 = vpop.f32.mrf.mxu0
        %v1352 = vpop.f32.mrf.mxu0
        %v1353 = vadd.f32 %v570, %v1352
        %v1354 = vpop.f32.mrf.mxu0
        %1355 = vmatprep.mubr.bf16.mxu0 0
        %1356 = vmatmul.mubr.bf16.gmra.mxu0 %v987
        %v1357 = vpop.f32.mrf.mxu0
        %v1358 = vadd.f32 %v570, %v1357
        %v1359 = vpop.f32.mrf.mxu0
        %v1360 = vpop.f32.mrf.mxu0
        %v1361 = vadd.f32 %v570, %v1360
        %v1362 = vpop.f32.mrf.mxu0
        %1363 = vmatprep.mubr.bf16.mxu0 0
        %1364 = vmatmul.mubr.bf16.gmra.mxu0 %v990
        %v1365 = vpop.f32.mrf.mxu0
        %v1366 = vadd.f32 %v570, %v1365
        %v1367 = vpop.f32.mrf.mxu0
        %v1368 = vpop.f32.mrf.mxu0
        %v1369 = vadd.f32 %v570, %v1368
        %v1370 = vpop.f32.mrf.mxu0
        %1371 = vmatprep.mubr.bf16.mxu0 0
        %1372 = vmatmul.mubr.bf16.gmra.mxu0 %v993
        %v1373 = vpop.f32.mrf.mxu0
        %v1374 = vadd.f32 %v570, %v1373
        %v1375 = vpop.f32.mrf.mxu0
        %v1376 = vpop.f32.mrf.mxu0
        %v1377 = vadd.f32 %v570, %v1376
        %v1378 = vpop.f32.mrf.mxu0
        %1379 = vmatprep.mubr.bf16.mxu0 0
        %1380 = vmatmul.mubr.bf16.gmra.mxu0 %v996
        %v1381 = vpop.f32.mrf.mxu0
        %v1382 = vadd.f32 %v570, %v1381
        %v1383 = vpop.f32.mrf.mxu0
        %v1384 = vpop.f32.mrf.mxu0
        %v1385 = vadd.f32 %v570, %v1384
        %v1386 = vpop.f32.mrf.mxu0
        %1387 = vmatprep.mubr.bf16.mxu0 0
        %1388 = vmatmul.mubr.bf16.gmra.mxu0 %v999
        %v1389 = vpop.f32.mrf.mxu0
        %v1390 = vadd.f32 %v570, %v1389
        %v1391 = vpop.f32.mrf.mxu0
        %v1392 = vpop.f32.mrf.mxu0
        %v1393 = vadd.f32 %v570, %v1392
        %v1394 = vpop.f32.mrf.mxu0
        %1395 = vmatprep.mubr.bf16.mxu0 0
        %1396 = vmatmul.mubr.bf16.gmra.mxu0 %v1002
        %v1397 = vpop.f32.mrf.mxu0
        %v1398 = vadd.f32 %v570, %v1397
        %v1399 = vpop.f32.mrf.mxu0
        %v1400 = vpop.f32.mrf.mxu0
        %v1401 = vadd.f32 %v570, %v1400
        %v1402 = vpop.f32.mrf.mxu0
        %1403 = vmatprep.mubr.bf16.mxu0 0
        %1404 = vmatmul.mubr.bf16.gmra.mxu0 %v1005
        %v1405 = vpop.f32.mrf.mxu0
        %v1406 = vadd.f32 %v570, %v1405
        %v1407 = vpop.f32.mrf.mxu0
        %v1408 = vpop.f32.mrf.mxu0
        %v1409 = vadd.f32 %v570, %v1408
        %v1410 = vpop.f32.mrf.mxu0
        %1411 = vmatprep.mubr.bf16.mxu0 0
        %1412 = vmatmul.mubr.bf16.gmra.mxu0 %v1008
        %v1413 = vpop.f32.mrf.mxu0
        %v1414 = vadd.f32 %v570, %v1413
        %v1415 = vpop.f32.mrf.mxu0
        %v1416 = vpop.f32.mrf.mxu0
        %v1417 = vadd.f32 %v570, %v1416
        %v1418 = vpop.f32.mrf.mxu0
        %1419 = vmatprep.mubr.bf16.mxu0 0
        %1420 = vmatmul.mubr.bf16.gmra.mxu0 %v1011
        %v1421 = vpop.f32.mrf.mxu0
        %v1422 = vadd.f32 %v570, %v1421
        %v1423 = vpop.f32.mrf.mxu0
        %v1424 = vpop.f32.mrf.mxu0
        %v1425 = vadd.f32 %v570, %v1424
        %v1426 = vpop.f32.mrf.mxu0
        %1427 = vmatprep.mubr.bf16.mxu0 0
        %1428 = vmatmul.mubr.bf16.gmra.mxu0 %v1014
        %v1429 = vpop.f32.mrf.mxu0
        %v1430 = vadd.f32 %v570, %v1429
        %v1431 = vpop.f32.mrf.mxu0
        %v1432 = vpop.f32.mrf.mxu0
        %v1433 = vadd.f32 %v570, %v1432
        %v1434 = vpop.f32.mrf.mxu0
        %1435 = vmatprep.mubr.bf16.mxu0 0
        %1436 = vmatmul.mubr.bf16.gmra.mxu0 %v1017
        %v1437 = vpop.f32.mrf.mxu0
        %v1438 = vadd.f32 %v570, %v1437
        %v1439 = vpop.f32.mrf.mxu0
        %v1440 = vpop.f32.mrf.mxu0
        %v1441 = vadd.f32 %v570, %v1440
        %v1442 = vpop.f32.mrf.mxu0
        %1443 = vmatprep.mubr.bf16.mxu0 0
        %1444 = vmatmul.mubr.bf16.gmra.mxu0 %v1020
        %v1445 = vpop.f32.mrf.mxu0
        %v1446 = vadd.f32 %v570, %v1445
        %v1447 = vpop.f32.mrf.mxu0
        %v1448 = vpop.f32.mrf.mxu0
        %v1449 = vadd.f32 %v570, %v1448
        %v1450 = vpop.f32.mrf.mxu0
        %1451 = vmatprep.mubr.bf16.mxu0 0
        %1452 = vmatmul.mubr.bf16.gmra.mxu0 %v1023
        %v1453 = vpop.f32.mrf.mxu0
        %v1454 = vadd.f32 %v570, %v1453
        %v1455 = vpop.f32.mrf.mxu0
        %v1456 = vpop.f32.mrf.mxu0
        %v1457 = vadd.f32 %v570, %v1456
        %v1458 = vpop.f32.mrf.mxu0
        %1459 = vmatprep.mubr.bf16.mxu0 0
        %1460 = vmatmul.mubr.bf16.gmra.mxu0 %v1026
        %v1461 = vpop.f32.mrf.mxu0
        %v1462 = vadd.f32 %v570, %v1461
        %v1463 = vpop.f32.mrf.mxu0
        %v1464 = vpop.f32.mrf.mxu0
        %v1465 = vadd.f32 %v570, %v1464
        %v1466 = vpop.f32.mrf.mxu0
        %1467 = vmatprep.mubr.bf16.mxu0 0
        %1468 = vmatmul.mubr.bf16.gmra.mxu0 %v1029
        %v1469 = vpop.f32.mrf.mxu0
        %v1470 = vadd.f32 %v570, %v1469
        %v1471 = vpop.f32.mrf.mxu0
        %v1472 = vpop.f32.mrf.mxu0
        %v1473 = vadd.f32 %v570, %v1472
        %v1474 = vpop.f32.mrf.mxu0
        %1475 = vmatprep.mubr.bf16.mxu0 0
        %1476 = vmatmul.mubr.bf16.gmra.mxu0 %v1032
        %v1477 = vpop.f32.mrf.mxu0
        %v1478 = vadd.f32 %v570, %v1477
        %v1479 = vpop.f32.mrf.mxu0
        %v1480 = vpop.f32.mrf.mxu0
        %v1481 = vadd.f32 %v570, %v1480
        %v1482 = vpop.f32.mrf.mxu0
        %1483 = vmatprep.mubr.bf16.mxu0 0
        %1484 = vmatmul.mubr.bf16.gmra.mxu0 %v1035
        %v1485 = vpop.f32.mrf.mxu0
        %v1486 = vadd.f32 %v570, %v1485
        %v1487 = vpop.f32.mrf.mxu0
        %v1488 = vpop.f32.mrf.mxu0
        %v1489 = vadd.f32 %v570, %v1488
        %v1490 = vpop.f32.mrf.mxu0
        %1491 = vmatprep.mubr.bf16.mxu0 0
        %1492 = vmatmul.mubr.bf16.gmra.mxu0 %v1038
        %v1493 = vpop.f32.mrf.mxu0
        %v1494 = vadd.f32 %v570, %v1493
        %v1495 = vpop.f32.mrf.mxu0
        %v1496 = vpop.f32.mrf.mxu0
        %v1497 = vadd.f32 %v570, %v1496
        %v1498 = vpop.f32.mrf.mxu0
        %1499 = vmatprep.mubr.bf16.mxu0 0
        %1500 = vmatmul.mubr.bf16.gmra.mxu0 %v1041
        %v1501 = vpop.f32.mrf.mxu0
        %v1502 = vadd.f32 %v570, %v1501
        %v1503 = vpop.f32.mrf.mxu0
        %v1504 = vpop.f32.mrf.mxu0
        %v1505 = vadd.f32 %v570, %v1504
        %v1506 = vpop.f32.mrf.mxu0
        %1507 = vmatprep.mubr.bf16.mxu0 0
        %1508 = vmatmul.mubr.bf16.gmra.mxu0 %v1044
        %v1509 = vpop.f32.mrf.mxu0
        %v1510 = vadd.f32 %v570, %v1509
        %v1511 = vpop.f32.mrf.mxu0
        %v1512 = vpop.f32.mrf.mxu0
        %v1513 = vadd.f32 %v570, %v1512
        %v1514 = vpop.f32.mrf.mxu0
        %1515 = vmatprep.mubr.bf16.mxu0 0
        %1516 = vmatmul.mubr.bf16.gmra.mxu0 %v1047
        %v1517 = vpop.f32.mrf.mxu0
        %v1518 = vadd.f32 %v570, %v1517
        %v1519 = vpop.f32.mrf.mxu0
        %v1520 = vpop.f32.mrf.mxu0
        %v1521 = vadd.f32 %v570, %v1520
        %v1522 = vpop.f32.mrf.mxu0
        %1523 = vmatprep.mubr.bf16.mxu0 0
        %1524 = vmatmul.mubr.bf16.gmra.mxu0 %v1050
        %v1525 = vpop.f32.mrf.mxu0
        %v1526 = vadd.f32 %v570, %v1525
        %v1527 = vpop.f32.mrf.mxu0
        %v1528 = vpop.f32.mrf.mxu0
        %v1529 = vadd.f32 %v570, %v1528
        %v1530 = vpop.f32.mrf.mxu0
        %1531 = vmatprep.mubr.bf16.mxu0 0
        %1532 = vmatmul.mubr.bf16.gmra.mxu0 %v1053
        %v1533 = vpop.f32.mrf.mxu0
        %v1534 = vadd.f32 %v570, %v1533
        %v1535 = vpop.f32.mrf.mxu0
        %v1536 = vpop.f32.mrf.mxu0
        %v1537 = vadd.f32 %v570, %v1536
        %v1538 = vpop.f32.mrf.mxu0
        %1539 = vmatprep.mubr.bf16.mxu0 0
        %1540 = vmatmul.mubr.bf16.gmra.mxu0 %v1056
        %v1541 = vpop.f32.mrf.mxu0
        %v1542 = vadd.f32 %v570, %v1541
        %v1543 = vpop.f32.mrf.mxu0
        %v1544 = vpop.f32.mrf.mxu0
        %v1545 = vadd.f32 %v570, %v1544
        %v1546 = vpop.f32.mrf.mxu0
        %1547 = vmatprep.mubr.bf16.mxu0 0
        %1548 = vmatmul.mubr.bf16.gmra.mxu0 %v1059
        %v1549 = vpop.f32.mrf.mxu0
        %v1550 = vadd.f32 %v570, %v1549
        %v1551 = vpop.f32.mrf.mxu0
        %v1552 = vpop.f32.mrf.mxu0
        %v1553 = vadd.f32 %v570, %v1552
        %v1554 = vpop.f32.mrf.mxu0
        %1555 = vmatprep.mubr.bf16.mxu0 0
        %1556 = vmatmul.mubr.bf16.gmra.mxu0 %v1062
        %v1557 = vpop.f32.mrf.mxu0
        %v1558 = vadd.f32 %v570, %v1557
        %v1559 = vpop.f32.mrf.mxu0
        %v1560 = vpop.f32.mrf.mxu0
        %v1561 = vadd.f32 %v570, %v1560
        %v1562 = vpop.f32.mrf.mxu0
        %1563 = vmatprep.mubr.bf16.mxu0 0
        %1564 = vmatmul.mubr.bf16.gmra.mxu0 %v1065
        %v1565 = vpop.f32.mrf.mxu0
        %v1566 = vadd.f32 %v570, %v1565
        %v1567 = vpop.f32.mrf.mxu0
        %v1568 = vpop.f32.mrf.mxu0
        %v1569 = vadd.f32 %v570, %v1568
        %v1570 = vpop.f32.mrf.mxu0
        %1571 = vmatprep.mubr.bf16.mxu0 0
        %1572 = vmatmul.mubr.bf16.gmra.mxu0 %v1068
        %v1573 = vpop.f32.mrf.mxu0
        %v1574 = vadd.f32 %v570, %v1573
        %v1575 = vpop.f32.mrf.mxu0
        %v1576 = vpop.f32.mrf.mxu0
        %v1577 = vadd.f32 %v570, %v1576
        %v1578 = vpop.f32.mrf.mxu0
        %1579 = vmatprep.mubr.bf16.mxu0 0
        %1580 = vmatmul.mubr.bf16.gmra.mxu0 %v1071
        %v1581 = vpop.f32.mrf.mxu0
        %v1582 = vadd.f32 %v570, %v1581
        %v1583 = vpop.f32.mrf.mxu0
        %v1584 = vpop.f32.mrf.mxu0
        %v1585 = vadd.f32 %v570, %v1584
        %v1586 = vpop.f32.mrf.mxu0
        %1587 = vmatprep.mubr.bf16.mxu0 0
        %1588 = vmatmul.mubr.bf16.gmra.mxu0 %v1074
        %v1589 = vpop.f32.mrf.mxu0
        %v1590 = vadd.f32 %v570, %v1589
        %v1591 = vpop.f32.mrf.mxu0
        %v1592 = vpop.f32.mrf.mxu0
        %v1593 = vadd.f32 %v570, %v1592
        %v1594 = vpop.f32.mrf.mxu0
        %1595 = vmatprep.mubr.bf16.mxu0 0
        %1596 = vmatmul.mubr.bf16.gmra.mxu0 %v1077
        %v1597 = vpop.f32.mrf.mxu0
        %v1598 = vadd.f32 %v570, %v1597
        %v1599 = vpop.f32.mrf.mxu0
        %v1600 = vpop.f32.mrf.mxu0
        %v1601 = vadd.f32 %v570, %v1600
        %v1602 = vpop.f32.mrf.mxu0
        %1603 = vmatprep.mubr.bf16.mxu0 0
        %1604 = vmatmul.mubr.bf16.gmra.mxu0 %v1080
        %v1605 = vpop.f32.mrf.mxu0
        %v1606 = vadd.f32 %v570, %v1605
        %v1607 = vpop.f32.mrf.mxu0
        %v1608 = vpop.f32.mrf.mxu0
        %v1609 = vadd.f32 %v570, %v1608
        %v1610 = vpop.f32.mrf.mxu0
        %1611 = vmatprep.mubr.bf16.mxu0 0
        %1612 = vmatmul.mubr.bf16.gmra.mxu0 %v1083
        %v1613 = vpop.f32.mrf.mxu0
        %v1614 = vadd.f32 %v570, %v1613
        %v1615 = vpop.f32.mrf.mxu0
        %v1616 = vpop.f32.mrf.mxu0
        %v1617 = vadd.f32 %v570, %v1616
        %v1618 = vpop.f32.mrf.mxu0
        %1619 = vmatprep.mubr.bf16.mxu0 0
        %1620 = vmatmul.mubr.bf16.gmra.mxu0 %v1086
        %v1621 = vpop.f32.mrf.mxu0
        %v1622 = vadd.f32 %v570, %v1621
        %v1623 = vpop.f32.mrf.mxu0
        %v1624 = vpop.f32.mrf.mxu0
        %v1625 = vadd.f32 %v570, %v1624
        %v1626 = vpop.f32.mrf.mxu0
        %1627 = vmatprep.mubr.bf16.mxu0 0
        %1628 = vmatmul.mubr.bf16.gmra.mxu0 %v1089
        %v1629 = vpop.f32.mrf.mxu0
        %v1630 = vadd.f32 %v570, %v1629
        %v1631 = vpop.f32.mrf.mxu0
        %v1632 = vpop.f32.mrf.mxu0
        %v1633 = vadd.f32 %v570, %v1632
        %v1634 = vpop.f32.mrf.mxu0
        %1635 = vdwg.mxu0
        %v1636 = vmax.f32 %v1126, 0.0
        %v1637 = vmax.f32 %v1129, 0.0
        %v1638 = vmax.f32 %v1134, 0.0
        %v1639 = vmax.f32 %v1137, 0.0
        %v1640 = vmax.f32 %v1142, 0.0
        %v1641 = vmax.f32 %v1145, 0.0
        %v1642 = vmax.f32 %v1150, 0.0
        %v1643 = vmax.f32 %v1153, 0.0
        %v1644 = vmax.f32 %v1158, 0.0
        %v1645 = vmax.f32 %v1161, 0.0
        %v1646 = vmax.f32 %v1166, 0.0
        %v1647 = vmax.f32 %v1169, 0.0
        %v1648 = vmax.f32 %v1174, 0.0
        %v1649 = vmax.f32 %v1177, 0.0
        %v1650 = vmax.f32 %v1182, 0.0
        %v1651 = vmax.f32 %v1185, 0.0
        %v1652 = vmax.f32 %v1190, 0.0
        %v1653 = vmax.f32 %v1193, 0.0
        %v1654 = vmax.f32 %v1198, 0.0
        %v1655 = vmax.f32 %v1201, 0.0
        %v1656 = vmax.f32 %v1206, 0.0
        %v1657 = vmax.f32 %v1209, 0.0
        %v1658 = vmax.f32 %v1214, 0.0
        %v1659 = vmax.f32 %v1217, 0.0
        %v1660 = vmax.f32 %v1222, 0.0
        %v1661 = vmax.f32 %v1225, 0.0
        %v1662 = vmax.f32 %v1230, 0.0
        %v1663 = vmax.f32 %v1233, 0.0
        %v1664 = vmax.f32 %v1238, 0.0
        %v1665 = vmax.f32 %v1241, 0.0
        %v1666 = vmax.f32 %v1246, 0.0
        %v1667 = vmax.f32 %v1249, 0.0
        %v1668 = vmax.f32 %v1254, 0.0
        %v1669 = vmax.f32 %v1257, 0.0
        %v1670 = vmax.f32 %v1262, 0.0
        %v1671 = vmax.f32 %v1265, 0.0
        %v1672 = vmax.f32 %v1270, 0.0
        %v1673 = vmax.f32 %v1273, 0.0
        %v1674 = vmax.f32 %v1278, 0.0
        %v1675 = vmax.f32 %v1281, 0.0
        %v1676 = vmax.f32 %v1286, 0.0
        %v1677 = vmax.f32 %v1289, 0.0
        %v1678 = vmax.f32 %v1294, 0.0
        %v1679 = vmax.f32 %v1297, 0.0
        %v1680 = vmax.f32 %v1302, 0.0
        %v1681 = vmax.f32 %v1305, 0.0
        %v1682 = vmax.f32 %v1310, 0.0
        %v1683 = vmax.f32 %v1313, 0.0
        %v1684 = vmax.f32 %v1318, 0.0
        %v1685 = vmax.f32 %v1321, 0.0
        %v1686 = vmax.f32 %v1326, 0.0
        %v1687 = vmax.f32 %v1329, 0.0
        %v1688 = vmax.f32 %v1334, 0.0
        %v1689 = vmax.f32 %v1337, 0.0
        %v1690 = vmax.f32 %v1342, 0.0
        %v1691 = vmax.f32 %v1345, 0.0
        %v1692 = vmax.f32 %v1350, 0.0
        %v1693 = vmax.f32 %v1353, 0.0
        %v1694 = vmax.f32 %v1358, 0.0
        %v1695 = vmax.f32 %v1361, 0.0
        %v1696 = vmax.f32 %v1366, 0.0
        %v1697 = vmax.f32 %v1369, 0.0
        %v1698 = vmax.f32 %v1374, 0.0
        %v1699 = vmax.f32 %v1377, 0.0
        %v1700 = vmax.f32 %v1382, 0.0
        %v1701 = vmax.f32 %v1385, 0.0
        %v1702 = vmax.f32 %v1390, 0.0
        %v1703 = vmax.f32 %v1393, 0.0
        %v1704 = vmax.f32 %v1398, 0.0
        %v1705 = vmax.f32 %v1401, 0.0
        %v1706 = vmax.f32 %v1406, 0.0
        %v1707 = vmax.f32 %v1409, 0.0
        %v1708 = vmax.f32 %v1414, 0.0
        %v1709 = vmax.f32 %v1417, 0.0
        %v1710 = vmax.f32 %v1422, 0.0
        %v1711 = vmax.f32 %v1425, 0.0
        %v1712 = vmax.f32 %v1430, 0.0
        %v1713 = vmax.f32 %v1433, 0.0
        %v1714 = vmax.f32 %v1438, 0.0
        %v1715 = vmax.f32 %v1441, 0.0
        %v1716 = vmax.f32 %v1446, 0.0
        %v1717 = vmax.f32 %v1449, 0.0
        %v1718 = vmax.f32 %v1454, 0.0
        %v1719 = vmax.f32 %v1457, 0.0
        %v1720 = vmax.f32 %v1462, 0.0
        %v1721 = vmax.f32 %v1465, 0.0
        %v1722 = vmax.f32 %v1470, 0.0
        %v1723 = vmax.f32 %v1473, 0.0
        %v1724 = vmax.f32 %v1478, 0.0
        %v1725 = vmax.f32 %v1481, 0.0
        %v1726 = vmax.f32 %v1486, 0.0
        %v1727 = vmax.f32 %v1489, 0.0
        %v1728 = vmax.f32 %v1494, 0.0
        %v1729 = vmax.f32 %v1497, 0.0
        %v1730 = vmax.f32 %v1502, 0.0
        %v1731 = vmax.f32 %v1505, 0.0
        %v1732 = vmax.f32 %v1510, 0.0
        %v1733 = vmax.f32 %v1513, 0.0
        %v1734 = vmax.f32 %v1518, 0.0
        %v1735 = vmax.f32 %v1521, 0.0
        %v1736 = vmax.f32 %v1526, 0.0
        %v1737 = vmax.f32 %v1529, 0.0
        %v1738 = vmax.f32 %v1534, 0.0
        %v1739 = vmax.f32 %v1537, 0.0
        %v1740 = vmax.f32 %v1542, 0.0
        %v1741 = vmax.f32 %v1545, 0.0
        %v1742 = vmax.f32 %v1550, 0.0
        %v1743 = vmax.f32 %v1553, 0.0
        %v1744 = vmax.f32 %v1558, 0.0
        %v1745 = vmax.f32 %v1561, 0.0
        %v1746 = vmax.f32 %v1566, 0.0
        %v1747 = vmax.f32 %v1569, 0.0
        %v1748 = vmax.f32 %v1574, 0.0
        %v1749 = vmax.f32 %v1577, 0.0
        %v1750 = vmax.f32 %v1582, 0.0
        %v1751 = vmax.f32 %v1585, 0.0
        %v1752 = vmax.f32 %v1590, 0.0
        %v1753 = vmax.f32 %v1593, 0.0
        %v1754 = vmax.f32 %v1598, 0.0
        %v1755 = vmax.f32 %v1601, 0.0
        %v1756 = vmax.f32 %v1606, 0.0
        %v1757 = vmax.f32 %v1609, 0.0
        %v1758 = vmax.f32 %v1614, 0.0
        %v1759 = vmax.f32 %v1617, 0.0
        %v1760 = vmax.f32 %v1622, 0.0
        %v1761 = vmax.f32 %v1625, 0.0
        %v1762 = vmax.f32 %v1630, 0.0
        %v1763 = vmax.f32 %v1633, 0.0
        %v1764 = vpack.c.bf16 %v1637, %v1636
        %v1765 = vpack.c.bf16 %v1639, %v1638
        %v1766 = vpack.c.bf16 %v1641, %v1640
        %v1767 = vpack.c.bf16 %v1643, %v1642
        %v1768 = vpack.c.bf16 %v1645, %v1644
        %v1769 = vpack.c.bf16 %v1647, %v1646
        %v1770 = vpack.c.bf16 %v1649, %v1648
        %v1771 = vpack.c.bf16 %v1651, %v1650
        %v1772 = vpack.c.bf16 %v1653, %v1652
        %v1773 = vpack.c.bf16 %v1655, %v1654
        %v1774 = vpack.c.bf16 %v1657, %v1656
        %v1775 = vpack.c.bf16 %v1659, %v1658
        %v1776 = vpack.c.bf16 %v1661, %v1660
        %v1777 = vpack.c.bf16 %v1663, %v1662
        %v1778 = vpack.c.bf16 %v1665, %v1664
        %v1779 = vpack.c.bf16 %v1667, %v1666
        %v1780 = vpack.c.bf16 %v1669, %v1668
        %v1781 = vpack.c.bf16 %v1671, %v1670
        %v1782 = vpack.c.bf16 %v1673, %v1672
        %v1783 = vpack.c.bf16 %v1675, %v1674
        %v1784 = vpack.c.bf16 %v1677, %v1676
        %v1785 = vpack.c.bf16 %v1679, %v1678
        %v1786 = vpack.c.bf16 %v1681, %v1680
        %v1787 = vpack.c.bf16 %v1683, %v1682
        %v1788 = vpack.c.bf16 %v1685, %v1684
        %v1789 = vpack.c.bf16 %v1687, %v1686
        %v1790 = vpack.c.bf16 %v1689, %v1688
        %v1791 = vpack.c.bf16 %v1691, %v1690
        %v1792 = vpack.c.bf16 %v1693, %v1692
        %v1793 = vpack.c.bf16 %v1695, %v1694
        %v1794 = vpack.c.bf16 %v1697, %v1696
        %v1795 = vpack.c.bf16 %v1699, %v1698
        %v1796 = vpack.c.bf16 %v1701, %v1700
        %v1797 = vpack.c.bf16 %v1703, %v1702
        %v1798 = vpack.c.bf16 %v1705, %v1704
        %v1799 = vpack.c.bf16 %v1707, %v1706
        %v1800 = vpack.c.bf16 %v1709, %v1708
        %v1801 = vpack.c.bf16 %v1711, %v1710
        %v1802 = vpack.c.bf16 %v1713, %v1712
        %v1803 = vpack.c.bf16 %v1715, %v1714
        %v1804 = vpack.c.bf16 %v1717, %v1716
        %v1805 = vpack.c.bf16 %v1719, %v1718
        %v1806 = vpack.c.bf16 %v1721, %v1720
        %v1807 = vpack.c.bf16 %v1723, %v1722
        %v1808 = vpack.c.bf16 %v1725, %v1724
        %v1809 = vpack.c.bf16 %v1727, %v1726
        %v1810 = vpack.c.bf16 %v1729, %v1728
        %v1811 = vpack.c.bf16 %v1731, %v1730
        %v1812 = vpack.c.bf16 %v1733, %v1732
        %v1813 = vpack.c.bf16 %v1735, %v1734
        %v1814 = vpack.c.bf16 %v1737, %v1736
        %v1815 = vpack.c.bf16 %v1739, %v1738
        %v1816 = vpack.c.bf16 %v1741, %v1740
        %v1817 = vpack.c.bf16 %v1743, %v1742
        %v1818 = vpack.c.bf16 %v1745, %v1744
        %v1819 = vpack.c.bf16 %v1747, %v1746
        %v1820 = vpack.c.bf16 %v1749, %v1748
        %v1821 = vpack.c.bf16 %v1751, %v1750
        %v1822 = vpack.c.bf16 %v1753, %v1752
        %v1823 = vpack.c.bf16 %v1755, %v1754
        %v1824 = vpack.c.bf16 %v1757, %v1756
        %v1825 = vpack.c.bf16 %v1759, %v1758
        %v1826 = vpack.c.bf16 %v1761, %v1760
        %v1827 = vpack.c.bf16 %v1763, %v1762
        %v1828 = vld [vmem:[%s4] sm:$0xf]
        %v1829 = vld [vmem:[%s4 + $0x4] sm:$0xf]
        %v1830 = vld [vmem:[%s4 + $0x8] sm:$0xf]
        %v1831 = vld [vmem:[%s4 + $0xc] sm:$0xf]
        %v1832 = vld [vmem:[%s5] sm:$0x1]
        %v1834 = vlaneseq
        %v1835 = vshrl.u32 %v1834, 7
        %v1836 = vsub.s32 0, %v1835
        %v1837 = vrot.slane %v1832, %v1836
        %v1843 = vunpack.c.l.b16 %v1828
        %v1844 = vunpack.c.l.b16 %v1829
        %v1845 = vunpack.c.l.b16 %v1830
        %v1846 = vunpack.c.l.b16 %v1831
        %v1847 = vpack.c.b16 %v1844, %v1843
        %v1848 = vpack.c.b16 %v1846, %v1845
        %vm1851 = vcmask 261120
        %v1853 = vsel %vm1851, %v1764, 0
        %v1856 = vsel %vm1851, %v1765, 0
        %v1859 = vsel %vm1851, %v1766, 0
        %v1862 = vsel %vm1851, %v1767, 0
        %v1865 = vsel %vm1851, %v1768, 0
        %v1868 = vsel %vm1851, %v1769, 0
        %v1871 = vsel %vm1851, %v1770, 0
        %v1874 = vsel %vm1851, %v1771, 0
        %v1877 = vsel %vm1851, %v1772, 0
        %v1880 = vsel %vm1851, %v1773, 0
        %v1883 = vsel %vm1851, %v1774, 0
        %v1886 = vsel %vm1851, %v1775, 0
        %v1889 = vsel %vm1851, %v1776, 0
        %v1892 = vsel %vm1851, %v1777, 0
        %v1895 = vsel %vm1851, %v1778, 0
        %v1898 = vsel %vm1851, %v1779, 0
        %v1901 = vsel %vm1851, %v1780, 0
        %v1904 = vsel %vm1851, %v1781, 0
        %v1907 = vsel %vm1851, %v1782, 0
        %v1910 = vsel %vm1851, %v1783, 0
        %v1913 = vsel %vm1851, %v1784, 0
        %v1916 = vsel %vm1851, %v1785, 0
        %v1919 = vsel %vm1851, %v1786, 0
        %v1922 = vsel %vm1851, %v1787, 0
        %v1925 = vsel %vm1851, %v1788, 0
        %v1928 = vsel %vm1851, %v1789, 0
        %v1931 = vsel %vm1851, %v1790, 0
        %v1934 = vsel %vm1851, %v1791, 0
        %v1937 = vsel %vm1851, %v1792, 0
        %v1940 = vsel %vm1851, %v1793, 0
        %v1943 = vsel %vm1851, %v1794, 0
        %v1946 = vsel %vm1851, %v1795, 0
        %v1949 = vsel %vm1851, %v1796, 0
        %v1952 = vsel %vm1851, %v1797, 0
        %v1955 = vsel %vm1851, %v1798, 0
        %v1958 = vsel %vm1851, %v1799, 0
        %v1961 = vsel %vm1851, %v1800, 0
        %v1964 = vsel %vm1851, %v1801, 0
        %v1967 = vsel %vm1851, %v1802, 0
        %v1970 = vsel %vm1851, %v1803, 0
        %v1973 = vsel %vm1851, %v1804, 0
        %v1976 = vsel %vm1851, %v1805, 0
        %v1979 = vsel %vm1851, %v1806, 0
        %v1982 = vsel %vm1851, %v1807, 0
        %v1985 = vsel %vm1851, %v1808, 0
        %v1988 = vsel %vm1851, %v1809, 0
        %v1991 = vsel %vm1851, %v1810, 0
        %v1994 = vsel %vm1851, %v1811, 0
        %v1997 = vsel %vm1851, %v1812, 0
        %v2000 = vsel %vm1851, %v1813, 0
        %v2003 = vsel %vm1851, %v1814, 0
        %v2006 = vsel %vm1851, %v1815, 0
        %v2009 = vsel %vm1851, %v1816, 0
        %v2012 = vsel %vm1851, %v1817, 0
        %v2015 = vsel %vm1851, %v1818, 0
        %v2018 = vsel %vm1851, %v1819, 0
        %v2021 = vsel %vm1851, %v1820, 0
        %v2024 = vsel %vm1851, %v1821, 0
        %v2027 = vsel %vm1851, %v1822, 0
        %v2030 = vsel %vm1851, %v1823, 0
        %v2033 = vsel %vm1851, %v1824, 0
        %v2036 = vsel %vm1851, %v1825, 0
        %v2039 = vsel %vm1851, %v1826, 0
        %v2042 = vsel %vm1851, %v1827, 0
        %2044 = vmatprep.subr.bf16.mxu0 0
        %2045 = vmatpush1.bf16.msra.mxu0 0
        %2046 = vmatprep.subr.bf16.mxu0 0
        %2047 = vmatpush1.bf16.msra.mxu0 0
        %2048 = vmatprep.subr.bf16.mxu0 0
        %2049 = vmatpush1.bf16.msra.mxu0 0
        %2050 = vmatprep.subr.bf16.mxu0 0
        %2051 = vmatpush1.bf16.msra.mxu0 0
        %2052 = vmatprep.subr.bf16.mxu0 0
        %2053 = vmatpush1.bf16.msra.mxu0 0
        %2054 = vmatprep.subr.bf16.mxu0 0
        %2055 = vmatpush1.bf16.msra.mxu0 0
        %2056 = vmatprep.subr.bf16.mxu0 0
        %2057 = vmatpush1.bf16.msra.mxu0 %v1848
        %2058 = vmatprep.subr.bf16.mxu0 0
        %2059 = vmatpush1.bf16.msra.mxu0 %v1847
        %2060 = vmatprep.subr.bf16.mxu0 0
        %2061 = vmatpush2.bf16.msra.mxu0 0
        %2062 = vmatprep.subr.bf16.mxu0 0
        %2063 = vmatpush2.bf16.msra.mxu0 0
        %2064 = vmatprep.subr.bf16.mxu0 0
        %2065 = vmatpush2.bf16.msra.mxu0 0
        %2066 = vmatprep.subr.bf16.mxu0 0
        %2067 = vmatpush2.bf16.msra.mxu0 0
        %2068 = vmatprep.subr.bf16.mxu0 0
        %2069 = vmatpush2.bf16.msra.mxu0 0
        %2070 = vmatprep.subr.bf16.mxu0 0
        %2071 = vmatpush2.bf16.msra.mxu0 0
        %2072 = vmatprep.subr.bf16.mxu0 0
        %2073 = vmatpush2.bf16.msra.mxu0 0
        %2074 = vmatprep.subr.bf16.mxu0 0
        %2075 = vmatpush2.bf16.msra.mxu0 0
        %2076 = vmatprep.mubr.bf16.mxu0 0
        %2077 = vmatmul.mubr.bf16.gmra.mxu0 %v1853
        %v2078 = vpop.f32.mrf.mxu0
        %v2079 = vadd.f32 %v1837, %v2078
        %v2080 = vpop.f32.mrf.mxu0
        %v2081 = vpop.f32.mrf.mxu0
        %v2082 = vadd.f32 %v1837, %v2081
        %v2083 = vpop.f32.mrf.mxu0
        %2084 = vmatprep.mubr.bf16.mxu0 0
        %2085 = vmatmul.mubr.bf16.gmra.mxu0 %v1856
        %v2086 = vpop.f32.mrf.mxu0
        %v2087 = vadd.f32 %v1837, %v2086
        %v2088 = vpop.f32.mrf.mxu0
        %v2089 = vpop.f32.mrf.mxu0
        %v2090 = vadd.f32 %v1837, %v2089
        %v2091 = vpop.f32.mrf.mxu0
        %2092 = vmatprep.mubr.bf16.mxu0 0
        %2093 = vmatmul.mubr.bf16.gmra.mxu0 %v1859
        %v2094 = vpop.f32.mrf.mxu0
        %v2095 = vadd.f32 %v1837, %v2094
        %v2096 = vpop.f32.mrf.mxu0
        %v2097 = vpop.f32.mrf.mxu0
        %v2098 = vadd.f32 %v1837, %v2097
        %v2099 = vpop.f32.mrf.mxu0
        %2100 = vmatprep.mubr.bf16.mxu0 0
        %2101 = vmatmul.mubr.bf16.gmra.mxu0 %v1862
        %v2102 = vpop.f32.mrf.mxu0
        %v2103 = vadd.f32 %v1837, %v2102
        %v2104 = vpop.f32.mrf.mxu0
        %v2105 = vpop.f32.mrf.mxu0
        %v2106 = vadd.f32 %v1837, %v2105
        %v2107 = vpop.f32.mrf.mxu0
        %2108 = vmatprep.mubr.bf16.mxu0 0
        %2109 = vmatmul.mubr.bf16.gmra.mxu0 %v1865
        %v2110 = vpop.f32.mrf.mxu0
        %v2111 = vadd.f32 %v1837, %v2110
        %v2112 = vpop.f32.mrf.mxu0
        %v2113 = vpop.f32.mrf.mxu0
        %v2114 = vadd.f32 %v1837, %v2113
        %v2115 = vpop.f32.mrf.mxu0
        %2116 = vmatprep.mubr.bf16.mxu0 0
        %2117 = vmatmul.mubr.bf16.gmra.mxu0 %v1868
        %v2118 = vpop.f32.mrf.mxu0
        %v2119 = vadd.f32 %v1837, %v2118
        %v2120 = vpop.f32.mrf.mxu0
        %v2121 = vpop.f32.mrf.mxu0
        %v2122 = vadd.f32 %v1837, %v2121
        %v2123 = vpop.f32.mrf.mxu0
        %2124 = vmatprep.mubr.bf16.mxu0 0
        %2125 = vmatmul.mubr.bf16.gmra.mxu0 %v1871
        %v2126 = vpop.f32.mrf.mxu0
        %v2127 = vadd.f32 %v1837, %v2126
        %v2128 = vpop.f32.mrf.mxu0
        %v2129 = vpop.f32.mrf.mxu0
        %v2130 = vadd.f32 %v1837, %v2129
        %v2131 = vpop.f32.mrf.mxu0
        %2132 = vmatprep.mubr.bf16.mxu0 0
        %2133 = vmatmul.mubr.bf16.gmra.mxu0 %v1874
        %v2134 = vpop.f32.mrf.mxu0
        %v2135 = vadd.f32 %v1837, %v2134
        %v2136 = vpop.f32.mrf.mxu0
        %v2137 = vpop.f32.mrf.mxu0
        %v2138 = vadd.f32 %v1837, %v2137
        %v2139 = vpop.f32.mrf.mxu0
        %2140 = vmatprep.mubr.bf16.mxu0 0
        %2141 = vmatmul.mubr.bf16.gmra.mxu0 %v1877
        %v2142 = vpop.f32.mrf.mxu0
        %v2143 = vadd.f32 %v1837, %v2142
        %v2144 = vpop.f32.mrf.mxu0
        %v2145 = vpop.f32.mrf.mxu0
        %v2146 = vadd.f32 %v1837, %v2145
        %v2147 = vpop.f32.mrf.mxu0
        %2148 = vmatprep.mubr.bf16.mxu0 0
        %2149 = vmatmul.mubr.bf16.gmra.mxu0 %v1880
        %v2150 = vpop.f32.mrf.mxu0
        %v2151 = vadd.f32 %v1837, %v2150
        %v2152 = vpop.f32.mrf.mxu0
        %v2153 = vpop.f32.mrf.mxu0
        %v2154 = vadd.f32 %v1837, %v2153
        %v2155 = vpop.f32.mrf.mxu0
        %2156 = vmatprep.mubr.bf16.mxu0 0
        %2157 = vmatmul.mubr.bf16.gmra.mxu0 %v1883
        %v2158 = vpop.f32.mrf.mxu0
        %v2159 = vadd.f32 %v1837, %v2158
        %v2160 = vpop.f32.mrf.mxu0
        %v2161 = vpop.f32.mrf.mxu0
        %v2162 = vadd.f32 %v1837, %v2161
        %v2163 = vpop.f32.mrf.mxu0
        %2164 = vmatprep.mubr.bf16.mxu0 0
        %2165 = vmatmul.mubr.bf16.gmra.mxu0 %v1886
        %v2166 = vpop.f32.mrf.mxu0
        %v2167 = vadd.f32 %v1837, %v2166
        %v2168 = vpop.f32.mrf.mxu0
        %v2169 = vpop.f32.mrf.mxu0
        %v2170 = vadd.f32 %v1837, %v2169
        %v2171 = vpop.f32.mrf.mxu0
        %2172 = vmatprep.mubr.bf16.mxu0 0
        %2173 = vmatmul.mubr.bf16.gmra.mxu0 %v1889
        %v2174 = vpop.f32.mrf.mxu0
        %v2175 = vadd.f32 %v1837, %v2174
        %v2176 = vpop.f32.mrf.mxu0
        %v2177 = vpop.f32.mrf.mxu0
        %v2178 = vadd.f32 %v1837, %v2177
        %v2179 = vpop.f32.mrf.mxu0
        %2180 = vmatprep.mubr.bf16.mxu0 0
        %2181 = vmatmul.mubr.bf16.gmra.mxu0 %v1892
        %v2182 = vpop.f32.mrf.mxu0
        %v2183 = vadd.f32 %v1837, %v2182
        %v2184 = vpop.f32.mrf.mxu0
        %v2185 = vpop.f32.mrf.mxu0
        %v2186 = vadd.f32 %v1837, %v2185
        %v2187 = vpop.f32.mrf.mxu0
        %2188 = vmatprep.mubr.bf16.mxu0 0
        %2189 = vmatmul.mubr.bf16.gmra.mxu0 %v1895
        %v2190 = vpop.f32.mrf.mxu0
        %v2191 = vadd.f32 %v1837, %v2190
        %v2192 = vpop.f32.mrf.mxu0
        %v2193 = vpop.f32.mrf.mxu0
        %v2194 = vadd.f32 %v1837, %v2193
        %v2195 = vpop.f32.mrf.mxu0
        %2196 = vmatprep.mubr.bf16.mxu0 0
        %2197 = vmatmul.mubr.bf16.gmra.mxu0 %v1898
        %v2198 = vpop.f32.mrf.mxu0
        %v2199 = vadd.f32 %v1837, %v2198
        %v2200 = vpop.f32.mrf.mxu0
        %v2201 = vpop.f32.mrf.mxu0
        %v2202 = vadd.f32 %v1837, %v2201
        %v2203 = vpop.f32.mrf.mxu0
        %2204 = vmatprep.mubr.bf16.mxu0 0
        %2205 = vmatmul.mubr.bf16.gmra.mxu0 %v1901
        %v2206 = vpop.f32.mrf.mxu0
        %v2207 = vadd.f32 %v1837, %v2206
        %v2208 = vpop.f32.mrf.mxu0
        %v2209 = vpop.f32.mrf.mxu0
        %v2210 = vadd.f32 %v1837, %v2209
        %v2211 = vpop.f32.mrf.mxu0
        %2212 = vmatprep.mubr.bf16.mxu0 0
        %2213 = vmatmul.mubr.bf16.gmra.mxu0 %v1904
        %v2214 = vpop.f32.mrf.mxu0
        %v2215 = vadd.f32 %v1837, %v2214
        %v2216 = vpop.f32.mrf.mxu0
        %v2217 = vpop.f32.mrf.mxu0
        %v2218 = vadd.f32 %v1837, %v2217
        %v2219 = vpop.f32.mrf.mxu0
        %2220 = vmatprep.mubr.bf16.mxu0 0
        %2221 = vmatmul.mubr.bf16.gmra.mxu0 %v1907
        %v2222 = vpop.f32.mrf.mxu0
        %v2223 = vadd.f32 %v1837, %v2222
        %v2224 = vpop.f32.mrf.mxu0
        %v2225 = vpop.f32.mrf.mxu0
        %v2226 = vadd.f32 %v1837, %v2225
        %v2227 = vpop.f32.mrf.mxu0
        %2228 = vmatprep.mubr.bf16.mxu0 0
        %2229 = vmatmul.mubr.bf16.gmra.mxu0 %v1910
        %v2230 = vpop.f32.mrf.mxu0
        %v2231 = vadd.f32 %v1837, %v2230
        %v2232 = vpop.f32.mrf.mxu0
        %v2233 = vpop.f32.mrf.mxu0
        %v2234 = vadd.f32 %v1837, %v2233
        %v2235 = vpop.f32.mrf.mxu0
        %2236 = vmatprep.mubr.bf16.mxu0 0
        %2237 = vmatmul.mubr.bf16.gmra.mxu0 %v1913
        %v2238 = vpop.f32.mrf.mxu0
        %v2239 = vadd.f32 %v1837, %v2238
        %v2240 = vpop.f32.mrf.mxu0
        %v2241 = vpop.f32.mrf.mxu0
        %v2242 = vadd.f32 %v1837, %v2241
        %v2243 = vpop.f32.mrf.mxu0
        %2244 = vmatprep.mubr.bf16.mxu0 0
        %2245 = vmatmul.mubr.bf16.gmra.mxu0 %v1916
        %v2246 = vpop.f32.mrf.mxu0
        %v2247 = vadd.f32 %v1837, %v2246
        %v2248 = vpop.f32.mrf.mxu0
        %v2249 = vpop.f32.mrf.mxu0
        %v2250 = vadd.f32 %v1837, %v2249
        %v2251 = vpop.f32.mrf.mxu0
        %2252 = vmatprep.mubr.bf16.mxu0 0
        %2253 = vmatmul.mubr.bf16.gmra.mxu0 %v1919
        %v2254 = vpop.f32.mrf.mxu0
        %v2255 = vadd.f32 %v1837, %v2254
        %v2256 = vpop.f32.mrf.mxu0
        %v2257 = vpop.f32.mrf.mxu0
        %v2258 = vadd.f32 %v1837, %v2257
        %v2259 = vpop.f32.mrf.mxu0
        %2260 = vmatprep.mubr.bf16.mxu0 0
        %2261 = vmatmul.mubr.bf16.gmra.mxu0 %v1922
        %v2262 = vpop.f32.mrf.mxu0
        %v2263 = vadd.f32 %v1837, %v2262
        %v2264 = vpop.f32.mrf.mxu0
        %v2265 = vpop.f32.mrf.mxu0
        %v2266 = vadd.f32 %v1837, %v2265
        %v2267 = vpop.f32.mrf.mxu0
        %2268 = vmatprep.mubr.bf16.mxu0 0
        %2269 = vmatmul.mubr.bf16.gmra.mxu0 %v1925
        %v2270 = vpop.f32.mrf.mxu0
        %v2271 = vadd.f32 %v1837, %v2270
        %v2272 = vpop.f32.mrf.mxu0
        %v2273 = vpop.f32.mrf.mxu0
        %v2274 = vadd.f32 %v1837, %v2273
        %v2275 = vpop.f32.mrf.mxu0
        %2276 = vmatprep.mubr.bf16.mxu0 0
        %2277 = vmatmul.mubr.bf16.gmra.mxu0 %v1928
        %v2278 = vpop.f32.mrf.mxu0
        %v2279 = vadd.f32 %v1837, %v2278
        %v2280 = vpop.f32.mrf.mxu0
        %v2281 = vpop.f32.mrf.mxu0
        %v2282 = vadd.f32 %v1837, %v2281
        %v2283 = vpop.f32.mrf.mxu0
        %2284 = vmatprep.mubr.bf16.mxu0 0
        %2285 = vmatmul.mubr.bf16.gmra.mxu0 %v1931
        %v2286 = vpop.f32.mrf.mxu0
        %v2287 = vadd.f32 %v1837, %v2286
        %v2288 = vpop.f32.mrf.mxu0
        %v2289 = vpop.f32.mrf.mxu0
        %v2290 = vadd.f32 %v1837, %v2289
        %v2291 = vpop.f32.mrf.mxu0
        %2292 = vmatprep.mubr.bf16.mxu0 0
        %2293 = vmatmul.mubr.bf16.gmra.mxu0 %v1934
        %v2294 = vpop.f32.mrf.mxu0
        %v2295 = vadd.f32 %v1837, %v2294
        %v2296 = vpop.f32.mrf.mxu0
        %v2297 = vpop.f32.mrf.mxu0
        %v2298 = vadd.f32 %v1837, %v2297
        %v2299 = vpop.f32.mrf.mxu0
        %2300 = vmatprep.mubr.bf16.mxu0 0
        %2301 = vmatmul.mubr.bf16.gmra.mxu0 %v1937
        %v2302 = vpop.f32.mrf.mxu0
        %v2303 = vadd.f32 %v1837, %v2302
        %v2304 = vpop.f32.mrf.mxu0
        %v2305 = vpop.f32.mrf.mxu0
        %v2306 = vadd.f32 %v1837, %v2305
        %v2307 = vpop.f32.mrf.mxu0
        %2308 = vmatprep.mubr.bf16.mxu0 0
        %2309 = vmatmul.mubr.bf16.gmra.mxu0 %v1940
        %v2310 = vpop.f32.mrf.mxu0
        %v2311 = vadd.f32 %v1837, %v2310
        %v2312 = vpop.f32.mrf.mxu0
        %v2313 = vpop.f32.mrf.mxu0
        %v2314 = vadd.f32 %v1837, %v2313
        %v2315 = vpop.f32.mrf.mxu0
        %2316 = vmatprep.mubr.bf16.mxu0 0
        %2317 = vmatmul.mubr.bf16.gmra.mxu0 %v1943
        %v2318 = vpop.f32.mrf.mxu0
        %v2319 = vadd.f32 %v1837, %v2318
        %v2320 = vpop.f32.mrf.mxu0
        %v2321 = vpop.f32.mrf.mxu0
        %v2322 = vadd.f32 %v1837, %v2321
        %v2323 = vpop.f32.mrf.mxu0
        %2324 = vmatprep.mubr.bf16.mxu0 0
        %2325 = vmatmul.mubr.bf16.gmra.mxu0 %v1946
        %v2326 = vpop.f32.mrf.mxu0
        %v2327 = vadd.f32 %v1837, %v2326
        %v2328 = vpop.f32.mrf.mxu0
        %v2329 = vpop.f32.mrf.mxu0
        %v2330 = vadd.f32 %v1837, %v2329
        %v2331 = vpop.f32.mrf.mxu0
        %2332 = vmatprep.mubr.bf16.mxu0 0
        %2333 = vmatmul.mubr.bf16.gmra.mxu0 %v1949
        %v2334 = vpop.f32.mrf.mxu0
        %v2335 = vadd.f32 %v1837, %v2334
        %v2336 = vpop.f32.mrf.mxu0
        %v2337 = vpop.f32.mrf.mxu0
        %v2338 = vadd.f32 %v1837, %v2337
        %v2339 = vpop.f32.mrf.mxu0
        %2340 = vmatprep.mubr.bf16.mxu0 0
        %2341 = vmatmul.mubr.bf16.gmra.mxu0 %v1952
        %v2342 = vpop.f32.mrf.mxu0
        %v2343 = vadd.f32 %v1837, %v2342
        %v2344 = vpop.f32.mrf.mxu0
        %v2345 = vpop.f32.mrf.mxu0
        %v2346 = vadd.f32 %v1837, %v2345
        %v2347 = vpop.f32.mrf.mxu0
        %2348 = vmatprep.mubr.bf16.mxu0 0
        %2349 = vmatmul.mubr.bf16.gmra.mxu0 %v1955
        %v2350 = vpop.f32.mrf.mxu0
        %v2351 = vadd.f32 %v1837, %v2350
        %v2352 = vpop.f32.mrf.mxu0
        %v2353 = vpop.f32.mrf.mxu0
        %v2354 = vadd.f32 %v1837, %v2353
        %v2355 = vpop.f32.mrf.mxu0
        %2356 = vmatprep.mubr.bf16.mxu0 0
        %2357 = vmatmul.mubr.bf16.gmra.mxu0 %v1958
        %v2358 = vpop.f32.mrf.mxu0
        %v2359 = vadd.f32 %v1837, %v2358
        %v2360 = vpop.f32.mrf.mxu0
        %v2361 = vpop.f32.mrf.mxu0
        %v2362 = vadd.f32 %v1837, %v2361
        %v2363 = vpop.f32.mrf.mxu0
        %2364 = vmatprep.mubr.bf16.mxu0 0
        %2365 = vmatmul.mubr.bf16.gmra.mxu0 %v1961
        %v2366 = vpop.f32.mrf.mxu0
        %v2367 = vadd.f32 %v1837, %v2366
        %v2368 = vpop.f32.mrf.mxu0
        %v2369 = vpop.f32.mrf.mxu0
        %v2370 = vadd.f32 %v1837, %v2369
        %v2371 = vpop.f32.mrf.mxu0
        %2372 = vmatprep.mubr.bf16.mxu0 0
        %2373 = vmatmul.mubr.bf16.gmra.mxu0 %v1964
        %v2374 = vpop.f32.mrf.mxu0
        %v2375 = vadd.f32 %v1837, %v2374
        %v2376 = vpop.f32.mrf.mxu0
        %v2377 = vpop.f32.mrf.mxu0
        %v2378 = vadd.f32 %v1837, %v2377
        %v2379 = vpop.f32.mrf.mxu0
        %2380 = vmatprep.mubr.bf16.mxu0 0
        %2381 = vmatmul.mubr.bf16.gmra.mxu0 %v1967
        %v2382 = vpop.f32.mrf.mxu0
        %v2383 = vadd.f32 %v1837, %v2382
        %v2384 = vpop.f32.mrf.mxu0
        %v2385 = vpop.f32.mrf.mxu0
        %v2386 = vadd.f32 %v1837, %v2385
        %v2387 = vpop.f32.mrf.mxu0
        %2388 = vmatprep.mubr.bf16.mxu0 0
        %2389 = vmatmul.mubr.bf16.gmra.mxu0 %v1970
        %v2390 = vpop.f32.mrf.mxu0
        %v2391 = vadd.f32 %v1837, %v2390
        %v2392 = vpop.f32.mrf.mxu0
        %v2393 = vpop.f32.mrf.mxu0
        %v2394 = vadd.f32 %v1837, %v2393
        %v2395 = vpop.f32.mrf.mxu0
        %2396 = vmatprep.mubr.bf16.mxu0 0
        %2397 = vmatmul.mubr.bf16.gmra.mxu0 %v1973
        %v2398 = vpop.f32.mrf.mxu0
        %v2399 = vadd.f32 %v1837, %v2398
        %v2400 = vpop.f32.mrf.mxu0
        %v2401 = vpop.f32.mrf.mxu0
        %v2402 = vadd.f32 %v1837, %v2401
        %v2403 = vpop.f32.mrf.mxu0
        %2404 = vmatprep.mubr.bf16.mxu0 0
        %2405 = vmatmul.mubr.bf16.gmra.mxu0 %v1976
        %v2406 = vpop.f32.mrf.mxu0
        %v2407 = vadd.f32 %v1837, %v2406
        %v2408 = vpop.f32.mrf.mxu0
        %v2409 = vpop.f32.mrf.mxu0
        %v2410 = vadd.f32 %v1837, %v2409
        %v2411 = vpop.f32.mrf.mxu0
        %2412 = vmatprep.mubr.bf16.mxu0 0
        %2413 = vmatmul.mubr.bf16.gmra.mxu0 %v1979
        %v2414 = vpop.f32.mrf.mxu0
        %v2415 = vadd.f32 %v1837, %v2414
        %v2416 = vpop.f32.mrf.mxu0
        %v2417 = vpop.f32.mrf.mxu0
        %v2418 = vadd.f32 %v1837, %v2417
        %v2419 = vpop.f32.mrf.mxu0
        %2420 = vmatprep.mubr.bf16.mxu0 0
        %2421 = vmatmul.mubr.bf16.gmra.mxu0 %v1982
        %v2422 = vpop.f32.mrf.mxu0
        %v2423 = vadd.f32 %v1837, %v2422
        %v2424 = vpop.f32.mrf.mxu0
        %v2425 = vpop.f32.mrf.mxu0
        %v2426 = vadd.f32 %v1837, %v2425
        %v2427 = vpop.f32.mrf.mxu0
        %2428 = vmatprep.mubr.bf16.mxu0 0
        %2429 = vmatmul.mubr.bf16.gmra.mxu0 %v1985
        %v2430 = vpop.f32.mrf.mxu0
        %v2431 = vadd.f32 %v1837, %v2430
        %v2432 = vpop.f32.mrf.mxu0
        %v2433 = vpop.f32.mrf.mxu0
        %v2434 = vadd.f32 %v1837, %v2433
        %v2435 = vpop.f32.mrf.mxu0
        %2436 = vmatprep.mubr.bf16.mxu0 0
        %2437 = vmatmul.mubr.bf16.gmra.mxu0 %v1988
        %v2438 = vpop.f32.mrf.mxu0
        %v2439 = vadd.f32 %v1837, %v2438
        %v2440 = vpop.f32.mrf.mxu0
        %v2441 = vpop.f32.mrf.mxu0
        %v2442 = vadd.f32 %v1837, %v2441
        %v2443 = vpop.f32.mrf.mxu0
        %2444 = vmatprep.mubr.bf16.mxu0 0
        %2445 = vmatmul.mubr.bf16.gmra.mxu0 %v1991
        %v2446 = vpop.f32.mrf.mxu0
        %v2447 = vadd.f32 %v1837, %v2446
        %v2448 = vpop.f32.mrf.mxu0
        %v2449 = vpop.f32.mrf.mxu0
        %v2450 = vadd.f32 %v1837, %v2449
        %v2451 = vpop.f32.mrf.mxu0
        %2452 = vmatprep.mubr.bf16.mxu0 0
        %2453 = vmatmul.mubr.bf16.gmra.mxu0 %v1994
        %v2454 = vpop.f32.mrf.mxu0
        %v2455 = vadd.f32 %v1837, %v2454
        %v2456 = vpop.f32.mrf.mxu0
        %v2457 = vpop.f32.mrf.mxu0
        %v2458 = vadd.f32 %v1837, %v2457
        %v2459 = vpop.f32.mrf.mxu0
        %2460 = vmatprep.mubr.bf16.mxu0 0
        %2461 = vmatmul.mubr.bf16.gmra.mxu0 %v1997
        %v2462 = vpop.f32.mrf.mxu0
        %v2463 = vadd.f32 %v1837, %v2462
        %v2464 = vpop.f32.mrf.mxu0
        %v2465 = vpop.f32.mrf.mxu0
        %v2466 = vadd.f32 %v1837, %v2465
        %v2467 = vpop.f32.mrf.mxu0
        %2468 = vmatprep.mubr.bf16.mxu0 0
        %2469 = vmatmul.mubr.bf16.gmra.mxu0 %v2000
        %v2470 = vpop.f32.mrf.mxu0
        %v2471 = vadd.f32 %v1837, %v2470
        %v2472 = vpop.f32.mrf.mxu0
        %v2473 = vpop.f32.mrf.mxu0
        %v2474 = vadd.f32 %v1837, %v2473
        %v2475 = vpop.f32.mrf.mxu0
        %2476 = vmatprep.mubr.bf16.mxu0 0
        %2477 = vmatmul.mubr.bf16.gmra.mxu0 %v2003
        %v2478 = vpop.f32.mrf.mxu0
        %v2479 = vadd.f32 %v1837, %v2478
        %v2480 = vpop.f32.mrf.mxu0
        %v2481 = vpop.f32.mrf.mxu0
        %v2482 = vadd.f32 %v1837, %v2481
        %v2483 = vpop.f32.mrf.mxu0
        %2484 = vmatprep.mubr.bf16.mxu0 0
        %2485 = vmatmul.mubr.bf16.gmra.mxu0 %v2006
        %v2486 = vpop.f32.mrf.mxu0
        %v2487 = vadd.f32 %v1837, %v2486
        %v2488 = vpop.f32.mrf.mxu0
        %v2489 = vpop.f32.mrf.mxu0
        %v2490 = vadd.f32 %v1837, %v2489
        %v2491 = vpop.f32.mrf.mxu0
        %2492 = vmatprep.mubr.bf16.mxu0 0
        %2493 = vmatmul.mubr.bf16.gmra.mxu0 %v2009
        %v2494 = vpop.f32.mrf.mxu0
        %v2495 = vadd.f32 %v1837, %v2494
        %v2496 = vpop.f32.mrf.mxu0
        %v2497 = vpop.f32.mrf.mxu0
        %v2498 = vadd.f32 %v1837, %v2497
        %v2499 = vpop.f32.mrf.mxu0
        %2500 = vmatprep.mubr.bf16.mxu0 0
        %2501 = vmatmul.mubr.bf16.gmra.mxu0 %v2012
        %v2502 = vpop.f32.mrf.mxu0
        %v2503 = vadd.f32 %v1837, %v2502
        %v2504 = vpop.f32.mrf.mxu0
        %v2505 = vpop.f32.mrf.mxu0
        %v2506 = vadd.f32 %v1837, %v2505
        %v2507 = vpop.f32.mrf.mxu0
        %2508 = vmatprep.mubr.bf16.mxu0 0
        %2509 = vmatmul.mubr.bf16.gmra.mxu0 %v2015
        %v2510 = vpop.f32.mrf.mxu0
        %v2511 = vadd.f32 %v1837, %v2510
        %v2512 = vpop.f32.mrf.mxu0
        %v2513 = vpop.f32.mrf.mxu0
        %v2514 = vadd.f32 %v1837, %v2513
        %v2515 = vpop.f32.mrf.mxu0
        %2516 = vmatprep.mubr.bf16.mxu0 0
        %2517 = vmatmul.mubr.bf16.gmra.mxu0 %v2018
        %v2518 = vpop.f32.mrf.mxu0
        %v2519 = vadd.f32 %v1837, %v2518
        %v2520 = vpop.f32.mrf.mxu0
        %v2521 = vpop.f32.mrf.mxu0
        %v2522 = vadd.f32 %v1837, %v2521
        %v2523 = vpop.f32.mrf.mxu0
        %2524 = vmatprep.mubr.bf16.mxu0 0
        %2525 = vmatmul.mubr.bf16.gmra.mxu0 %v2021
        %v2526 = vpop.f32.mrf.mxu0
        %v2527 = vadd.f32 %v1837, %v2526
        %v2528 = vpop.f32.mrf.mxu0
        %v2529 = vpop.f32.mrf.mxu0
        %v2530 = vadd.f32 %v1837, %v2529
        %v2531 = vpop.f32.mrf.mxu0
        %2532 = vmatprep.mubr.bf16.mxu0 0
        %2533 = vmatmul.mubr.bf16.gmra.mxu0 %v2024
        %v2534 = vpop.f32.mrf.mxu0
        %v2535 = vadd.f32 %v1837, %v2534
        %v2536 = vpop.f32.mrf.mxu0
        %v2537 = vpop.f32.mrf.mxu0
        %v2538 = vadd.f32 %v1837, %v2537
        %v2539 = vpop.f32.mrf.mxu0
        %2540 = vmatprep.mubr.bf16.mxu0 0
        %2541 = vmatmul.mubr.bf16.gmra.mxu0 %v2027
        %v2542 = vpop.f32.mrf.mxu0
        %v2543 = vadd.f32 %v1837, %v2542
        %v2544 = vpop.f32.mrf.mxu0
        %v2545 = vpop.f32.mrf.mxu0
        %v2546 = vadd.f32 %v1837, %v2545
        %v2547 = vpop.f32.mrf.mxu0
        %2548 = vmatprep.mubr.bf16.mxu0 0
        %2549 = vmatmul.mubr.bf16.gmra.mxu0 %v2030
        %v2550 = vpop.f32.mrf.mxu0
        %v2551 = vadd.f32 %v1837, %v2550
        %v2552 = vpop.f32.mrf.mxu0
        %v2553 = vpop.f32.mrf.mxu0
        %v2554 = vadd.f32 %v1837, %v2553
        %v2555 = vpop.f32.mrf.mxu0
        %2556 = vmatprep.mubr.bf16.mxu0 0
        %2557 = vmatmul.mubr.bf16.gmra.mxu0 %v2033
        %v2558 = vpop.f32.mrf.mxu0
        %v2559 = vadd.f32 %v1837, %v2558
        %v2560 = vpop.f32.mrf.mxu0
        %v2561 = vpop.f32.mrf.mxu0
        %v2562 = vadd.f32 %v1837, %v2561
        %v2563 = vpop.f32.mrf.mxu0
        %2564 = vmatprep.mubr.bf16.mxu0 0
        %2565 = vmatmul.mubr.bf16.gmra.mxu0 %v2036
        %v2566 = vpop.f32.mrf.mxu0
        %v2567 = vadd.f32 %v1837, %v2566
        %v2568 = vpop.f32.mrf.mxu0
        %v2569 = vpop.f32.mrf.mxu0
        %v2570 = vadd.f32 %v1837, %v2569
        %v2571 = vpop.f32.mrf.mxu0
        %2572 = vmatprep.mubr.bf16.mxu0 0
        %2573 = vmatmul.mubr.bf16.gmra.mxu0 %v2039
        %v2574 = vpop.f32.mrf.mxu0
        %v2575 = vadd.f32 %v1837, %v2574
        %v2576 = vpop.f32.mrf.mxu0
        %v2577 = vpop.f32.mrf.mxu0
        %v2578 = vadd.f32 %v1837, %v2577
        %v2579 = vpop.f32.mrf.mxu0
        %2580 = vmatprep.mubr.bf16.mxu0 0
        %2581 = vmatmul.mubr.bf16.gmra.mxu0 %v2042
        %v2582 = vpop.f32.mrf.mxu0
        %v2583 = vadd.f32 %v1837, %v2582
        %v2584 = vpop.f32.mrf.mxu0
        %v2585 = vpop.f32.mrf.mxu0
        %v2586 = vadd.f32 %v1837, %v2585
        %v2587 = vpop.f32.mrf.mxu0
        %2588 = vdwg.mxu0
        %v2589 = vmax.f32 %v2079, 0.0
        %v2590 = vmax.f32 %v2082, 0.0
        %v2591 = vmax.f32 %v2087, 0.0
        %v2592 = vmax.f32 %v2090, 0.0
        %v2593 = vmax.f32 %v2095, 0.0
        %v2594 = vmax.f32 %v2098, 0.0
        %v2595 = vmax.f32 %v2103, 0.0
        %v2596 = vmax.f32 %v2106, 0.0
        %v2597 = vmax.f32 %v2111, 0.0
        %v2598 = vmax.f32 %v2114, 0.0
        %v2599 = vmax.f32 %v2119, 0.0
        %v2600 = vmax.f32 %v2122, 0.0
        %v2601 = vmax.f32 %v2127, 0.0
        %v2602 = vmax.f32 %v2130, 0.0
        %v2603 = vmax.f32 %v2135, 0.0
        %v2604 = vmax.f32 %v2138, 0.0
        %v2605 = vmax.f32 %v2143, 0.0
        %v2606 = vmax.f32 %v2146, 0.0
        %v2607 = vmax.f32 %v2151, 0.0
        %v2608 = vmax.f32 %v2154, 0.0
        %v2609 = vmax.f32 %v2159, 0.0
        %v2610 = vmax.f32 %v2162, 0.0
        %v2611 = vmax.f32 %v2167, 0.0
        %v2612 = vmax.f32 %v2170, 0.0
        %v2613 = vmax.f32 %v2175, 0.0
        %v2614 = vmax.f32 %v2178, 0.0
        %v2615 = vmax.f32 %v2183, 0.0
        %v2616 = vmax.f32 %v2186, 0.0
        %v2617 = vmax.f32 %v2191, 0.0
        %v2618 = vmax.f32 %v2194, 0.0
        %v2619 = vmax.f32 %v2199, 0.0
        %v2620 = vmax.f32 %v2202, 0.0
        %v2621 = vmax.f32 %v2207, 0.0
        %v2622 = vmax.f32 %v2210, 0.0
        %v2623 = vmax.f32 %v2215, 0.0
        %v2624 = vmax.f32 %v2218, 0.0
        %v2625 = vmax.f32 %v2223, 0.0
        %v2626 = vmax.f32 %v2226, 0.0
        %v2627 = vmax.f32 %v2231, 0.0
        %v2628 = vmax.f32 %v2234, 0.0
        %v2629 = vmax.f32 %v2239, 0.0
        %v2630 = vmax.f32 %v2242, 0.0
        %v2631 = vmax.f32 %v2247, 0.0
        %v2632 = vmax.f32 %v2250, 0.0
        %v2633 = vmax.f32 %v2255, 0.0
        %v2634 = vmax.f32 %v2258, 0.0
        %v2635 = vmax.f32 %v2263, 0.0
        %v2636 = vmax.f32 %v2266, 0.0
        %v2637 = vmax.f32 %v2271, 0.0
        %v2638 = vmax.f32 %v2274, 0.0
        %v2639 = vmax.f32 %v2279, 0.0
        %v2640 = vmax.f32 %v2282, 0.0
        %v2641 = vmax.f32 %v2287, 0.0
        %v2642 = vmax.f32 %v2290, 0.0
        %v2643 = vmax.f32 %v2295, 0.0
        %v2644 = vmax.f32 %v2298, 0.0
        %v2645 = vmax.f32 %v2303, 0.0
        %v2646 = vmax.f32 %v2306, 0.0
        %v2647 = vmax.f32 %v2311, 0.0
        %v2648 = vmax.f32 %v2314, 0.0
        %v2649 = vmax.f32 %v2319, 0.0
        %v2650 = vmax.f32 %v2322, 0.0
        %v2651 = vmax.f32 %v2327, 0.0
        %v2652 = vmax.f32 %v2330, 0.0
        %v2653 = vmax.f32 %v2335, 0.0
        %v2654 = vmax.f32 %v2338, 0.0
        %v2655 = vmax.f32 %v2343, 0.0
        %v2656 = vmax.f32 %v2346, 0.0
        %v2657 = vmax.f32 %v2351, 0.0
        %v2658 = vmax.f32 %v2354, 0.0
        %v2659 = vmax.f32 %v2359, 0.0
        %v2660 = vmax.f32 %v2362, 0.0
        %v2661 = vmax.f32 %v2367, 0.0
        %v2662 = vmax.f32 %v2370, 0.0
        %v2663 = vmax.f32 %v2375, 0.0
        %v2664 = vmax.f32 %v2378, 0.0
        %v2665 = vmax.f32 %v2383, 0.0
        %v2666 = vmax.f32 %v2386, 0.0
        %v2667 = vmax.f32 %v2391, 0.0
        %v2668 = vmax.f32 %v2394, 0.0
        %v2669 = vmax.f32 %v2399, 0.0
        %v2670 = vmax.f32 %v2402, 0.0
        %v2671 = vmax.f32 %v2407, 0.0
        %v2672 = vmax.f32 %v2410, 0.0
        %v2673 = vmax.f32 %v2415, 0.0
        %v2674 = vmax.f32 %v2418, 0.0
        %v2675 = vmax.f32 %v2423, 0.0
        %v2676 = vmax.f32 %v2426, 0.0
        %v2677 = vmax.f32 %v2431, 0.0
        %v2678 = vmax.f32 %v2434, 0.0
        %v2679 = vmax.f32 %v2439, 0.0
        %v2680 = vmax.f32 %v2442, 0.0
        %v2681 = vmax.f32 %v2447, 0.0
        %v2682 = vmax.f32 %v2450, 0.0
        %v2683 = vmax.f32 %v2455, 0.0
        %v2684 = vmax.f32 %v2458, 0.0
        %v2685 = vmax.f32 %v2463, 0.0
        %v2686 = vmax.f32 %v2466, 0.0
        %v2687 = vmax.f32 %v2471, 0.0
        %v2688 = vmax.f32 %v2474, 0.0
        %v2689 = vmax.f32 %v2479, 0.0
        %v2690 = vmax.f32 %v2482, 0.0
        %v2691 = vmax.f32 %v2487, 0.0
        %v2692 = vmax.f32 %v2490, 0.0
        %v2693 = vmax.f32 %v2495, 0.0
        %v2694 = vmax.f32 %v2498, 0.0
        %v2695 = vmax.f32 %v2503, 0.0
        %v2696 = vmax.f32 %v2506, 0.0
        %v2697 = vmax.f32 %v2511, 0.0
        %v2698 = vmax.f32 %v2514, 0.0
        %v2699 = vmax.f32 %v2519, 0.0
        %v2700 = vmax.f32 %v2522, 0.0
        %v2701 = vmax.f32 %v2527, 0.0
        %v2702 = vmax.f32 %v2530, 0.0
        %v2703 = vmax.f32 %v2535, 0.0
        %v2704 = vmax.f32 %v2538, 0.0
        %v2705 = vmax.f32 %v2543, 0.0
        %v2706 = vmax.f32 %v2546, 0.0
        %v2707 = vmax.f32 %v2551, 0.0
        %v2708 = vmax.f32 %v2554, 0.0
        %v2709 = vmax.f32 %v2559, 0.0
        %v2710 = vmax.f32 %v2562, 0.0
        %v2711 = vmax.f32 %v2567, 0.0
        %v2712 = vmax.f32 %v2570, 0.0
        %v2713 = vmax.f32 %v2575, 0.0
        %v2714 = vmax.f32 %v2578, 0.0
        %v2715 = vmax.f32 %v2583, 0.0
        %v2716 = vmax.f32 %v2586, 0.0
        %v2717 = vpack.c.bf16 %v2590, %v2589
        %v2718 = vpack.c.bf16 %v2592, %v2591
        %v2719 = vpack.c.bf16 %v2594, %v2593
        %v2720 = vpack.c.bf16 %v2596, %v2595
        %v2721 = vpack.c.bf16 %v2598, %v2597
        %v2722 = vpack.c.bf16 %v2600, %v2599
        %v2723 = vpack.c.bf16 %v2602, %v2601
        %v2724 = vpack.c.bf16 %v2604, %v2603
        %v2725 = vpack.c.bf16 %v2606, %v2605
        %v2726 = vpack.c.bf16 %v2608, %v2607
        %v2727 = vpack.c.bf16 %v2610, %v2609
        %v2728 = vpack.c.bf16 %v2612, %v2611
        %v2729 = vpack.c.bf16 %v2614, %v2613
        %v2730 = vpack.c.bf16 %v2616, %v2615
        %v2731 = vpack.c.bf16 %v2618, %v2617
        %v2732 = vpack.c.bf16 %v2620, %v2619
        %v2733 = vpack.c.bf16 %v2622, %v2621
        %v2734 = vpack.c.bf16 %v2624, %v2623
        %v2735 = vpack.c.bf16 %v2626, %v2625
        %v2736 = vpack.c.bf16 %v2628, %v2627
        %v2737 = vpack.c.bf16 %v2630, %v2629
        %v2738 = vpack.c.bf16 %v2632, %v2631
        %v2739 = vpack.c.bf16 %v2634, %v2633
        %v2740 = vpack.c.bf16 %v2636, %v2635
        %v2741 = vpack.c.bf16 %v2638, %v2637
        %v2742 = vpack.c.bf16 %v2640, %v2639
        %v2743 = vpack.c.bf16 %v2642, %v2641
        %v2744 = vpack.c.bf16 %v2644, %v2643
        %v2745 = vpack.c.bf16 %v2646, %v2645
        %v2746 = vpack.c.bf16 %v2648, %v2647
        %v2747 = vpack.c.bf16 %v2650, %v2649
        %v2748 = vpack.c.bf16 %v2652, %v2651
        %v2749 = vpack.c.bf16 %v2654, %v2653
        %v2750 = vpack.c.bf16 %v2656, %v2655
        %v2751 = vpack.c.bf16 %v2658, %v2657
        %v2752 = vpack.c.bf16 %v2660, %v2659
        %v2753 = vpack.c.bf16 %v2662, %v2661
        %v2754 = vpack.c.bf16 %v2664, %v2663
        %v2755 = vpack.c.bf16 %v2666, %v2665
        %v2756 = vpack.c.bf16 %v2668, %v2667
        %v2757 = vpack.c.bf16 %v2670, %v2669
        %v2758 = vpack.c.bf16 %v2672, %v2671
        %v2759 = vpack.c.bf16 %v2674, %v2673
        %v2760 = vpack.c.bf16 %v2676, %v2675
        %v2761 = vpack.c.bf16 %v2678, %v2677
        %v2762 = vpack.c.bf16 %v2680, %v2679
        %v2763 = vpack.c.bf16 %v2682, %v2681
        %v2764 = vpack.c.bf16 %v2684, %v2683
        %v2765 = vpack.c.bf16 %v2686, %v2685
        %v2766 = vpack.c.bf16 %v2688, %v2687
        %v2767 = vpack.c.bf16 %v2690, %v2689
        %v2768 = vpack.c.bf16 %v2692, %v2691
        %v2769 = vpack.c.bf16 %v2694, %v2693
        %v2770 = vpack.c.bf16 %v2696, %v2695
        %v2771 = vpack.c.bf16 %v2698, %v2697
        %v2772 = vpack.c.bf16 %v2700, %v2699
        %v2773 = vpack.c.bf16 %v2702, %v2701
        %v2774 = vpack.c.bf16 %v2704, %v2703
        %v2775 = vpack.c.bf16 %v2706, %v2705
        %v2776 = vpack.c.bf16 %v2708, %v2707
        %v2777 = vpack.c.bf16 %v2710, %v2709
        %v2778 = vpack.c.bf16 %v2712, %v2711
        %v2779 = vpack.c.bf16 %v2714, %v2713
        %v2780 = vpack.c.bf16 %v2716, %v2715
        %v2781 = vld [vmem:[%s6] sm:$0xf]
        %v2782 = vld [vmem:[%s6 + $0x4] sm:$0xf]
        %v2783 = vld [vmem:[%s6 + $0x8] sm:$0xf]
        %v2784 = vld [vmem:[%s6 + $0xc] sm:$0xf]
        %v2785 = vld [vmem:[%s7] sm:$0x1]
        %v2787 = vlaneseq
        %v2788 = vshrl.u32 %v2787, 7
        %v2789 = vsub.s32 0, %v2788
        %v2790 = vrot.slane %v2785, %v2789
        %v2796 = vunpack.c.l.b16 %v2781
        %v2797 = vunpack.c.l.b16 %v2782
        %v2798 = vunpack.c.l.b16 %v2783
        %v2799 = vunpack.c.l.b16 %v2784
        %v2800 = vpack.c.b16 %v2797, %v2796
        %v2801 = vpack.c.b16 %v2799, %v2798
        %v2805 = vsel %vm1851, %v2717, 0
        %v2808 = vsel %vm1851, %v2718, 0
        %v2811 = vsel %vm1851, %v2719, 0
        %v2814 = vsel %vm1851, %v2720, 0
        %v2817 = vsel %vm1851, %v2721, 0
        %v2820 = vsel %vm1851, %v2722, 0
        %v2823 = vsel %vm1851, %v2723, 0
        %v2826 = vsel %vm1851, %v2724, 0
        %v2829 = vsel %vm1851, %v2725, 0
        %v2832 = vsel %vm1851, %v2726, 0
        %v2835 = vsel %vm1851, %v2727, 0
        %v2838 = vsel %vm1851, %v2728, 0
        %v2841 = vsel %vm1851, %v2729, 0
        %v2844 = vsel %vm1851, %v2730, 0
        %v2847 = vsel %vm1851, %v2731, 0
        %v2850 = vsel %vm1851, %v2732, 0
        %v2853 = vsel %vm1851, %v2733, 0
        %v2856 = vsel %vm1851, %v2734, 0
        %v2859 = vsel %vm1851, %v2735, 0
        %v2862 = vsel %vm1851, %v2736, 0
        %v2865 = vsel %vm1851, %v2737, 0
        %v2868 = vsel %vm1851, %v2738, 0
        %v2871 = vsel %vm1851, %v2739, 0
        %v2874 = vsel %vm1851, %v2740, 0
        %v2877 = vsel %vm1851, %v2741, 0
        %v2880 = vsel %vm1851, %v2742, 0
        %v2883 = vsel %vm1851, %v2743, 0
        %v2886 = vsel %vm1851, %v2744, 0
        %v2889 = vsel %vm1851, %v2745, 0
        %v2892 = vsel %vm1851, %v2746, 0
        %v2895 = vsel %vm1851, %v2747, 0
        %v2898 = vsel %vm1851, %v2748, 0
        %v2901 = vsel %vm1851, %v2749, 0
        %v2904 = vsel %vm1851, %v2750, 0
        %v2907 = vsel %vm1851, %v2751, 0
        %v2910 = vsel %vm1851, %v2752, 0
        %v2913 = vsel %vm1851, %v2753, 0
        %v2916 = vsel %vm1851, %v2754, 0
        %v2919 = vsel %vm1851, %v2755, 0
        %v2922 = vsel %vm1851, %v2756, 0
        %v2925 = vsel %vm1851, %v2757, 0
        %v2928 = vsel %vm1851, %v2758, 0
        %v2931 = vsel %vm1851, %v2759, 0
        %v2934 = vsel %vm1851, %v2760, 0
        %v2937 = vsel %vm1851, %v2761, 0
        %v2940 = vsel %vm1851, %v2762, 0
        %v2943 = vsel %vm1851, %v2763, 0
        %v2946 = vsel %vm1851, %v2764, 0
        %v2949 = vsel %vm1851, %v2765, 0
        %v2952 = vsel %vm1851, %v2766, 0
        %v2955 = vsel %vm1851, %v2767, 0
        %v2958 = vsel %vm1851, %v2768, 0
        %v2961 = vsel %vm1851, %v2769, 0
        %v2964 = vsel %vm1851, %v2770, 0
        %v2967 = vsel %vm1851, %v2771, 0
        %v2970 = vsel %vm1851, %v2772, 0
        %v2973 = vsel %vm1851, %v2773, 0
        %v2976 = vsel %vm1851, %v2774, 0
        %v2979 = vsel %vm1851, %v2775, 0
        %v2982 = vsel %vm1851, %v2776, 0
        %v2985 = vsel %vm1851, %v2777, 0
        %v2988 = vsel %vm1851, %v2778, 0
        %v2991 = vsel %vm1851, %v2779, 0
        %v2994 = vsel %vm1851, %v2780, 0
        %2996 = vmatprep.subr.bf16.mxu0 0
        %2997 = vmatpush1.bf16.msra.mxu0 0
        %2998 = vmatprep.subr.bf16.mxu0 0
        %2999 = vmatpush1.bf16.msra.mxu0 0
        %3000 = vmatprep.subr.bf16.mxu0 0
        %3001 = vmatpush1.bf16.msra.mxu0 0
        %3002 = vmatprep.subr.bf16.mxu0 0
        %3003 = vmatpush1.bf16.msra.mxu0 0
        %3004 = vmatprep.subr.bf16.mxu0 0
        %3005 = vmatpush1.bf16.msra.mxu0 0
        %3006 = vmatprep.subr.bf16.mxu0 0
        %3007 = vmatpush1.bf16.msra.mxu0 0
        %3008 = vmatprep.subr.bf16.mxu0 0
        %3009 = vmatpush1.bf16.msra.mxu0 %v2801
        %3010 = vmatprep.subr.bf16.mxu0 0
        %3011 = vmatpush1.bf16.msra.mxu0 %v2800
        %3012 = vmatprep.subr.bf16.mxu0 0
        %3013 = vmatpush2.bf16.msra.mxu0 0
        %3014 = vmatprep.subr.bf16.mxu0 0
        %3015 = vmatpush2.bf16.msra.mxu0 0
        %3016 = vmatprep.subr.bf16.mxu0 0
        %3017 = vmatpush2.bf16.msra.mxu0 0
        %3018 = vmatprep.subr.bf16.mxu0 0
        %3019 = vmatpush2.bf16.msra.mxu0 0
        %3020 = vmatprep.subr.bf16.mxu0 0
        %3021 = vmatpush2.bf16.msra.mxu0 0
        %3022 = vmatprep.subr.bf16.mxu0 0
        %3023 = vmatpush2.bf16.msra.mxu0 0
        %3024 = vmatprep.subr.bf16.mxu0 0
        %3025 = vmatpush2.bf16.msra.mxu0 0
        %3026 = vmatprep.subr.bf16.mxu0 0
        %3027 = vmatpush2.bf16.msra.mxu0 0
        %3028 = vmatprep.mubr.bf16.mxu0 0
        %3029 = vmatmul.mubr.bf16.gmra.mxu0 %v2805
        %v3030 = vpop.f32.mrf.mxu0
        %v3031 = vadd.f32 %v2790, %v3030
        %v3032 = vpop.f32.mrf.mxu0
        %v3033 = vpop.f32.mrf.mxu0
        %v3034 = vadd.f32 %v2790, %v3033
        %v3035 = vpop.f32.mrf.mxu0
        %3036 = vmatprep.mubr.bf16.mxu0 0
        %3037 = vmatmul.mubr.bf16.gmra.mxu0 %v2808
        %v3038 = vpop.f32.mrf.mxu0
        %v3039 = vadd.f32 %v2790, %v3038
        %v3040 = vpop.f32.mrf.mxu0
        %v3041 = vpop.f32.mrf.mxu0
        %v3042 = vadd.f32 %v2790, %v3041
        %v3043 = vpop.f32.mrf.mxu0
        %3044 = vmatprep.mubr.bf16.mxu0 0
        %3045 = vmatmul.mubr.bf16.gmra.mxu0 %v2811
        %v3046 = vpop.f32.mrf.mxu0
        %v3047 = vadd.f32 %v2790, %v3046
        %v3048 = vpop.f32.mrf.mxu0
        %v3049 = vpop.f32.mrf.mxu0
        %v3050 = vadd.f32 %v2790, %v3049
        %v3051 = vpop.f32.mrf.mxu0
        %3052 = vmatprep.mubr.bf16.mxu0 0
        %3053 = vmatmul.mubr.bf16.gmra.mxu0 %v2814
        %v3054 = vpop.f32.mrf.mxu0
        %v3055 = vadd.f32 %v2790, %v3054
        %v3056 = vpop.f32.mrf.mxu0
        %v3057 = vpop.f32.mrf.mxu0
        %v3058 = vadd.f32 %v2790, %v3057
        %v3059 = vpop.f32.mrf.mxu0
        %3060 = vmatprep.mubr.bf16.mxu0 0
        %3061 = vmatmul.mubr.bf16.gmra.mxu0 %v2817
        %v3062 = vpop.f32.mrf.mxu0
        %v3063 = vadd.f32 %v2790, %v3062
        %v3064 = vpop.f32.mrf.mxu0
        %v3065 = vpop.f32.mrf.mxu0
        %v3066 = vadd.f32 %v2790, %v3065
        %v3067 = vpop.f32.mrf.mxu0
        %3068 = vmatprep.mubr.bf16.mxu0 0
        %3069 = vmatmul.mubr.bf16.gmra.mxu0 %v2820
        %v3070 = vpop.f32.mrf.mxu0
        %v3071 = vadd.f32 %v2790, %v3070
        %v3072 = vpop.f32.mrf.mxu0
        %v3073 = vpop.f32.mrf.mxu0
        %v3074 = vadd.f32 %v2790, %v3073
        %v3075 = vpop.f32.mrf.mxu0
        %3076 = vmatprep.mubr.bf16.mxu0 0
        %3077 = vmatmul.mubr.bf16.gmra.mxu0 %v2823
        %v3078 = vpop.f32.mrf.mxu0
        %v3079 = vadd.f32 %v2790, %v3078
        %v3080 = vpop.f32.mrf.mxu0
        %v3081 = vpop.f32.mrf.mxu0
        %v3082 = vadd.f32 %v2790, %v3081
        %v3083 = vpop.f32.mrf.mxu0
        %3084 = vmatprep.mubr.bf16.mxu0 0
        %3085 = vmatmul.mubr.bf16.gmra.mxu0 %v2826
        %v3086 = vpop.f32.mrf.mxu0
        %v3087 = vadd.f32 %v2790, %v3086
        %v3088 = vpop.f32.mrf.mxu0
        %v3089 = vpop.f32.mrf.mxu0
        %v3090 = vadd.f32 %v2790, %v3089
        %v3091 = vpop.f32.mrf.mxu0
        %3092 = vmatprep.mubr.bf16.mxu0 0
        %3093 = vmatmul.mubr.bf16.gmra.mxu0 %v2829
        %v3094 = vpop.f32.mrf.mxu0
        %v3095 = vadd.f32 %v2790, %v3094
        %v3096 = vpop.f32.mrf.mxu0
        %v3097 = vpop.f32.mrf.mxu0
        %v3098 = vadd.f32 %v2790, %v3097
        %v3099 = vpop.f32.mrf.mxu0
        %3100 = vmatprep.mubr.bf16.mxu0 0
        %3101 = vmatmul.mubr.bf16.gmra.mxu0 %v2832
        %v3102 = vpop.f32.mrf.mxu0
        %v3103 = vadd.f32 %v2790, %v3102
        %v3104 = vpop.f32.mrf.mxu0
        %v3105 = vpop.f32.mrf.mxu0
        %v3106 = vadd.f32 %v2790, %v3105
        %v3107 = vpop.f32.mrf.mxu0
        %3108 = vmatprep.mubr.bf16.mxu0 0
        %3109 = vmatmul.mubr.bf16.gmra.mxu0 %v2835
        %v3110 = vpop.f32.mrf.mxu0
        %v3111 = vadd.f32 %v2790, %v3110
        %v3112 = vpop.f32.mrf.mxu0
        %v3113 = vpop.f32.mrf.mxu0
        %v3114 = vadd.f32 %v2790, %v3113
        %v3115 = vpop.f32.mrf.mxu0
        %3116 = vmatprep.mubr.bf16.mxu0 0
        %3117 = vmatmul.mubr.bf16.gmra.mxu0 %v2838
        %v3118 = vpop.f32.mrf.mxu0
        %v3119 = vadd.f32 %v2790, %v3118
        %v3120 = vpop.f32.mrf.mxu0
        %v3121 = vpop.f32.mrf.mxu0
        %v3122 = vadd.f32 %v2790, %v3121
        %v3123 = vpop.f32.mrf.mxu0
        %3124 = vmatprep.mubr.bf16.mxu0 0
        %3125 = vmatmul.mubr.bf16.gmra.mxu0 %v2841
        %v3126 = vpop.f32.mrf.mxu0
        %v3127 = vadd.f32 %v2790, %v3126
        %v3128 = vpop.f32.mrf.mxu0
        %v3129 = vpop.f32.mrf.mxu0
        %v3130 = vadd.f32 %v2790, %v3129
        %v3131 = vpop.f32.mrf.mxu0
        %3132 = vmatprep.mubr.bf16.mxu0 0
        %3133 = vmatmul.mubr.bf16.gmra.mxu0 %v2844
        %v3134 = vpop.f32.mrf.mxu0
        %v3135 = vadd.f32 %v2790, %v3134
        %v3136 = vpop.f32.mrf.mxu0
        %v3137 = vpop.f32.mrf.mxu0
        %v3138 = vadd.f32 %v2790, %v3137
        %v3139 = vpop.f32.mrf.mxu0
        %3140 = vmatprep.mubr.bf16.mxu0 0
        %3141 = vmatmul.mubr.bf16.gmra.mxu0 %v2847
        %v3142 = vpop.f32.mrf.mxu0
        %v3143 = vadd.f32 %v2790, %v3142
        %v3144 = vpop.f32.mrf.mxu0
        %v3145 = vpop.f32.mrf.mxu0
        %v3146 = vadd.f32 %v2790, %v3145
        %v3147 = vpop.f32.mrf.mxu0
        %3148 = vmatprep.mubr.bf16.mxu0 0
        %3149 = vmatmul.mubr.bf16.gmra.mxu0 %v2850
        %v3150 = vpop.f32.mrf.mxu0
        %v3151 = vadd.f32 %v2790, %v3150
        %v3152 = vpop.f32.mrf.mxu0
        %v3153 = vpop.f32.mrf.mxu0
        %v3154 = vadd.f32 %v2790, %v3153
        %v3155 = vpop.f32.mrf.mxu0
        %3156 = vmatprep.mubr.bf16.mxu0 0
        %3157 = vmatmul.mubr.bf16.gmra.mxu0 %v2853
        %v3158 = vpop.f32.mrf.mxu0
        %v3159 = vadd.f32 %v2790, %v3158
        %v3160 = vpop.f32.mrf.mxu0
        %v3161 = vpop.f32.mrf.mxu0
        %v3162 = vadd.f32 %v2790, %v3161
        %v3163 = vpop.f32.mrf.mxu0
        %3164 = vmatprep.mubr.bf16.mxu0 0
        %3165 = vmatmul.mubr.bf16.gmra.mxu0 %v2856
        %v3166 = vpop.f32.mrf.mxu0
        %v3167 = vadd.f32 %v2790, %v3166
        %v3168 = vpop.f32.mrf.mxu0
        %v3169 = vpop.f32.mrf.mxu0
        %v3170 = vadd.f32 %v2790, %v3169
        %v3171 = vpop.f32.mrf.mxu0
        %3172 = vmatprep.mubr.bf16.mxu0 0
        %3173 = vmatmul.mubr.bf16.gmra.mxu0 %v2859
        %v3174 = vpop.f32.mrf.mxu0
        %v3175 = vadd.f32 %v2790, %v3174
        %v3176 = vpop.f32.mrf.mxu0
        %v3177 = vpop.f32.mrf.mxu0
        %v3178 = vadd.f32 %v2790, %v3177
        %v3179 = vpop.f32.mrf.mxu0
        %3180 = vmatprep.mubr.bf16.mxu0 0
        %3181 = vmatmul.mubr.bf16.gmra.mxu0 %v2862
        %v3182 = vpop.f32.mrf.mxu0
        %v3183 = vadd.f32 %v2790, %v3182
        %v3184 = vpop.f32.mrf.mxu0
        %v3185 = vpop.f32.mrf.mxu0
        %v3186 = vadd.f32 %v2790, %v3185
        %v3187 = vpop.f32.mrf.mxu0
        %3188 = vmatprep.mubr.bf16.mxu0 0
        %3189 = vmatmul.mubr.bf16.gmra.mxu0 %v2865
        %v3190 = vpop.f32.mrf.mxu0
        %v3191 = vadd.f32 %v2790, %v3190
        %v3192 = vpop.f32.mrf.mxu0
        %v3193 = vpop.f32.mrf.mxu0
        %v3194 = vadd.f32 %v2790, %v3193
        %v3195 = vpop.f32.mrf.mxu0
        %3196 = vmatprep.mubr.bf16.mxu0 0
        %3197 = vmatmul.mubr.bf16.gmra.mxu0 %v2868
        %v3198 = vpop.f32.mrf.mxu0
        %v3199 = vadd.f32 %v2790, %v3198
        %v3200 = vpop.f32.mrf.mxu0
        %v3201 = vpop.f32.mrf.mxu0
        %v3202 = vadd.f32 %v2790, %v3201
        %v3203 = vpop.f32.mrf.mxu0
        %3204 = vmatprep.mubr.bf16.mxu0 0
        %3205 = vmatmul.mubr.bf16.gmra.mxu0 %v2871
        %v3206 = vpop.f32.mrf.mxu0
        %v3207 = vadd.f32 %v2790, %v3206
        %v3208 = vpop.f32.mrf.mxu0
        %v3209 = vpop.f32.mrf.mxu0
        %v3210 = vadd.f32 %v2790, %v3209
        %v3211 = vpop.f32.mrf.mxu0
        %3212 = vmatprep.mubr.bf16.mxu0 0
        %3213 = vmatmul.mubr.bf16.gmra.mxu0 %v2874
        %v3214 = vpop.f32.mrf.mxu0
        %v3215 = vadd.f32 %v2790, %v3214
        %v3216 = vpop.f32.mrf.mxu0
        %v3217 = vpop.f32.mrf.mxu0
        %v3218 = vadd.f32 %v2790, %v3217
        %v3219 = vpop.f32.mrf.mxu0
        %3220 = vmatprep.mubr.bf16.mxu0 0
        %3221 = vmatmul.mubr.bf16.gmra.mxu0 %v2877
        %v3222 = vpop.f32.mrf.mxu0
        %v3223 = vadd.f32 %v2790, %v3222
        %v3224 = vpop.f32.mrf.mxu0
        %v3225 = vpop.f32.mrf.mxu0
        %v3226 = vadd.f32 %v2790, %v3225
        %v3227 = vpop.f32.mrf.mxu0
        %3228 = vmatprep.mubr.bf16.mxu0 0
        %3229 = vmatmul.mubr.bf16.gmra.mxu0 %v2880
        %v3230 = vpop.f32.mrf.mxu0
        %v3231 = vadd.f32 %v2790, %v3230
        %v3232 = vpop.f32.mrf.mxu0
        %v3233 = vpop.f32.mrf.mxu0
        %v3234 = vadd.f32 %v2790, %v3233
        %v3235 = vpop.f32.mrf.mxu0
        %3236 = vmatprep.mubr.bf16.mxu0 0
        %3237 = vmatmul.mubr.bf16.gmra.mxu0 %v2883
        %v3238 = vpop.f32.mrf.mxu0
        %v3239 = vadd.f32 %v2790, %v3238
        %v3240 = vpop.f32.mrf.mxu0
        %v3241 = vpop.f32.mrf.mxu0
        %v3242 = vadd.f32 %v2790, %v3241
        %v3243 = vpop.f32.mrf.mxu0
        %3244 = vmatprep.mubr.bf16.mxu0 0
        %3245 = vmatmul.mubr.bf16.gmra.mxu0 %v2886
        %v3246 = vpop.f32.mrf.mxu0
        %v3247 = vadd.f32 %v2790, %v3246
        %v3248 = vpop.f32.mrf.mxu0
        %v3249 = vpop.f32.mrf.mxu0
        %v3250 = vadd.f32 %v2790, %v3249
        %v3251 = vpop.f32.mrf.mxu0
        %3252 = vmatprep.mubr.bf16.mxu0 0
        %3253 = vmatmul.mubr.bf16.gmra.mxu0 %v2889
        %v3254 = vpop.f32.mrf.mxu0
        %v3255 = vadd.f32 %v2790, %v3254
        %v3256 = vpop.f32.mrf.mxu0
        %v3257 = vpop.f32.mrf.mxu0
        %v3258 = vadd.f32 %v2790, %v3257
        %v3259 = vpop.f32.mrf.mxu0
        %3260 = vmatprep.mubr.bf16.mxu0 0
        %3261 = vmatmul.mubr.bf16.gmra.mxu0 %v2892
        %v3262 = vpop.f32.mrf.mxu0
        %v3263 = vadd.f32 %v2790, %v3262
        %v3264 = vpop.f32.mrf.mxu0
        %v3265 = vpop.f32.mrf.mxu0
        %v3266 = vadd.f32 %v2790, %v3265
        %v3267 = vpop.f32.mrf.mxu0
        %3268 = vmatprep.mubr.bf16.mxu0 0
        %3269 = vmatmul.mubr.bf16.gmra.mxu0 %v2895
        %v3270 = vpop.f32.mrf.mxu0
        %v3271 = vadd.f32 %v2790, %v3270
        %v3272 = vpop.f32.mrf.mxu0
        %v3273 = vpop.f32.mrf.mxu0
        %v3274 = vadd.f32 %v2790, %v3273
        %v3275 = vpop.f32.mrf.mxu0
        %3276 = vmatprep.mubr.bf16.mxu0 0
        %3277 = vmatmul.mubr.bf16.gmra.mxu0 %v2898
        %v3278 = vpop.f32.mrf.mxu0
        %v3279 = vadd.f32 %v2790, %v3278
        %v3280 = vpop.f32.mrf.mxu0
        %v3281 = vpop.f32.mrf.mxu0
        %v3282 = vadd.f32 %v2790, %v3281
        %v3283 = vpop.f32.mrf.mxu0
        %3284 = vmatprep.mubr.bf16.mxu0 0
        %3285 = vmatmul.mubr.bf16.gmra.mxu0 %v2901
        %v3286 = vpop.f32.mrf.mxu0
        %v3287 = vadd.f32 %v2790, %v3286
        %v3288 = vpop.f32.mrf.mxu0
        %v3289 = vpop.f32.mrf.mxu0
        %v3290 = vadd.f32 %v2790, %v3289
        %v3291 = vpop.f32.mrf.mxu0
        %3292 = vmatprep.mubr.bf16.mxu0 0
        %3293 = vmatmul.mubr.bf16.gmra.mxu0 %v2904
        %v3294 = vpop.f32.mrf.mxu0
        %v3295 = vadd.f32 %v2790, %v3294
        %v3296 = vpop.f32.mrf.mxu0
        %v3297 = vpop.f32.mrf.mxu0
        %v3298 = vadd.f32 %v2790, %v3297
        %v3299 = vpop.f32.mrf.mxu0
        %3300 = vmatprep.mubr.bf16.mxu0 0
        %3301 = vmatmul.mubr.bf16.gmra.mxu0 %v2907
        %v3302 = vpop.f32.mrf.mxu0
        %v3303 = vadd.f32 %v2790, %v3302
        %v3304 = vpop.f32.mrf.mxu0
        %v3305 = vpop.f32.mrf.mxu0
        %v3306 = vadd.f32 %v2790, %v3305
        %v3307 = vpop.f32.mrf.mxu0
        %3308 = vmatprep.mubr.bf16.mxu0 0
        %3309 = vmatmul.mubr.bf16.gmra.mxu0 %v2910
        %v3310 = vpop.f32.mrf.mxu0
        %v3311 = vadd.f32 %v2790, %v3310
        %v3312 = vpop.f32.mrf.mxu0
        %v3313 = vpop.f32.mrf.mxu0
        %v3314 = vadd.f32 %v2790, %v3313
        %v3315 = vpop.f32.mrf.mxu0
        %3316 = vmatprep.mubr.bf16.mxu0 0
        %3317 = vmatmul.mubr.bf16.gmra.mxu0 %v2913
        %v3318 = vpop.f32.mrf.mxu0
        %v3319 = vadd.f32 %v2790, %v3318
        %v3320 = vpop.f32.mrf.mxu0
        %v3321 = vpop.f32.mrf.mxu0
        %v3322 = vadd.f32 %v2790, %v3321
        %v3323 = vpop.f32.mrf.mxu0
        %3324 = vmatprep.mubr.bf16.mxu0 0
        %3325 = vmatmul.mubr.bf16.gmra.mxu0 %v2916
        %v3326 = vpop.f32.mrf.mxu0
        %v3327 = vadd.f32 %v2790, %v3326
        %v3328 = vpop.f32.mrf.mxu0
        %v3329 = vpop.f32.mrf.mxu0
        %v3330 = vadd.f32 %v2790, %v3329
        %v3331 = vpop.f32.mrf.mxu0
        %3332 = vmatprep.mubr.bf16.mxu0 0
        %3333 = vmatmul.mubr.bf16.gmra.mxu0 %v2919
        %v3334 = vpop.f32.mrf.mxu0
        %v3335 = vadd.f32 %v2790, %v3334
        %v3336 = vpop.f32.mrf.mxu0
        %v3337 = vpop.f32.mrf.mxu0
        %v3338 = vadd.f32 %v2790, %v3337
        %v3339 = vpop.f32.mrf.mxu0
        %3340 = vmatprep.mubr.bf16.mxu0 0
        %3341 = vmatmul.mubr.bf16.gmra.mxu0 %v2922
        %v3342 = vpop.f32.mrf.mxu0
        %v3343 = vadd.f32 %v2790, %v3342
        %v3344 = vpop.f32.mrf.mxu0
        %v3345 = vpop.f32.mrf.mxu0
        %v3346 = vadd.f32 %v2790, %v3345
        %v3347 = vpop.f32.mrf.mxu0
        %3348 = vmatprep.mubr.bf16.mxu0 0
        %3349 = vmatmul.mubr.bf16.gmra.mxu0 %v2925
        %v3350 = vpop.f32.mrf.mxu0
        %v3351 = vadd.f32 %v2790, %v3350
        %v3352 = vpop.f32.mrf.mxu0
        %v3353 = vpop.f32.mrf.mxu0
        %v3354 = vadd.f32 %v2790, %v3353
        %v3355 = vpop.f32.mrf.mxu0
        %3356 = vmatprep.mubr.bf16.mxu0 0
        %3357 = vmatmul.mubr.bf16.gmra.mxu0 %v2928
        %v3358 = vpop.f32.mrf.mxu0
        %v3359 = vadd.f32 %v2790, %v3358
        %v3360 = vpop.f32.mrf.mxu0
        %v3361 = vpop.f32.mrf.mxu0
        %v3362 = vadd.f32 %v2790, %v3361
        %v3363 = vpop.f32.mrf.mxu0
        %3364 = vmatprep.mubr.bf16.mxu0 0
        %3365 = vmatmul.mubr.bf16.gmra.mxu0 %v2931
        %v3366 = vpop.f32.mrf.mxu0
        %v3367 = vadd.f32 %v2790, %v3366
        %v3368 = vpop.f32.mrf.mxu0
        %v3369 = vpop.f32.mrf.mxu0
        %v3370 = vadd.f32 %v2790, %v3369
        %v3371 = vpop.f32.mrf.mxu0
        %3372 = vmatprep.mubr.bf16.mxu0 0
        %3373 = vmatmul.mubr.bf16.gmra.mxu0 %v2934
        %v3374 = vpop.f32.mrf.mxu0
        %v3375 = vadd.f32 %v2790, %v3374
        %v3376 = vpop.f32.mrf.mxu0
        %v3377 = vpop.f32.mrf.mxu0
        %v3378 = vadd.f32 %v2790, %v3377
        %v3379 = vpop.f32.mrf.mxu0
        %3380 = vmatprep.mubr.bf16.mxu0 0
        %3381 = vmatmul.mubr.bf16.gmra.mxu0 %v2937
        %v3382 = vpop.f32.mrf.mxu0
        %v3383 = vadd.f32 %v2790, %v3382
        %v3384 = vpop.f32.mrf.mxu0
        %v3385 = vpop.f32.mrf.mxu0
        %v3386 = vadd.f32 %v2790, %v3385
        %v3387 = vpop.f32.mrf.mxu0
        %3388 = vmatprep.mubr.bf16.mxu0 0
        %3389 = vmatmul.mubr.bf16.gmra.mxu0 %v2940
        %v3390 = vpop.f32.mrf.mxu0
        %v3391 = vadd.f32 %v2790, %v3390
        %v3392 = vpop.f32.mrf.mxu0
        %v3393 = vpop.f32.mrf.mxu0
        %v3394 = vadd.f32 %v2790, %v3393
        %v3395 = vpop.f32.mrf.mxu0
        %3396 = vmatprep.mubr.bf16.mxu0 0
        %3397 = vmatmul.mubr.bf16.gmra.mxu0 %v2943
        %v3398 = vpop.f32.mrf.mxu0
        %v3399 = vadd.f32 %v2790, %v3398
        %v3400 = vpop.f32.mrf.mxu0
        %v3401 = vpop.f32.mrf.mxu0
        %v3402 = vadd.f32 %v2790, %v3401
        %v3403 = vpop.f32.mrf.mxu0
        %3404 = vmatprep.mubr.bf16.mxu0 0
        %3405 = vmatmul.mubr.bf16.gmra.mxu0 %v2946
        %v3406 = vpop.f32.mrf.mxu0
        %v3407 = vadd.f32 %v2790, %v3406
        %v3408 = vpop.f32.mrf.mxu0
        %v3409 = vpop.f32.mrf.mxu0
        %v3410 = vadd.f32 %v2790, %v3409
        %v3411 = vpop.f32.mrf.mxu0
        %3412 = vmatprep.mubr.bf16.mxu0 0
        %3413 = vmatmul.mubr.bf16.gmra.mxu0 %v2949
        %v3414 = vpop.f32.mrf.mxu0
        %v3415 = vadd.f32 %v2790, %v3414
        %v3416 = vpop.f32.mrf.mxu0
        %v3417 = vpop.f32.mrf.mxu0
        %v3418 = vadd.f32 %v2790, %v3417
        %v3419 = vpop.f32.mrf.mxu0
        %3420 = vmatprep.mubr.bf16.mxu0 0
        %3421 = vmatmul.mubr.bf16.gmra.mxu0 %v2952
        %v3422 = vpop.f32.mrf.mxu0
        %v3423 = vadd.f32 %v2790, %v3422
        %v3424 = vpop.f32.mrf.mxu0
        %v3425 = vpop.f32.mrf.mxu0
        %v3426 = vadd.f32 %v2790, %v3425
        %v3427 = vpop.f32.mrf.mxu0
        %3428 = vmatprep.mubr.bf16.mxu0 0
        %3429 = vmatmul.mubr.bf16.gmra.mxu0 %v2955
        %v3430 = vpop.f32.mrf.mxu0
        %v3431 = vadd.f32 %v2790, %v3430
        %v3432 = vpop.f32.mrf.mxu0
        %v3433 = vpop.f32.mrf.mxu0
        %v3434 = vadd.f32 %v2790, %v3433
        %v3435 = vpop.f32.mrf.mxu0
        %3436 = vmatprep.mubr.bf16.mxu0 0
        %3437 = vmatmul.mubr.bf16.gmra.mxu0 %v2958
        %v3438 = vpop.f32.mrf.mxu0
        %v3439 = vadd.f32 %v2790, %v3438
        %v3440 = vpop.f32.mrf.mxu0
        %v3441 = vpop.f32.mrf.mxu0
        %v3442 = vadd.f32 %v2790, %v3441
        %v3443 = vpop.f32.mrf.mxu0
        %3444 = vmatprep.mubr.bf16.mxu0 0
        %3445 = vmatmul.mubr.bf16.gmra.mxu0 %v2961
        %v3446 = vpop.f32.mrf.mxu0
        %v3447 = vadd.f32 %v2790, %v3446
        %v3448 = vpop.f32.mrf.mxu0
        %v3449 = vpop.f32.mrf.mxu0
        %v3450 = vadd.f32 %v2790, %v3449
        %v3451 = vpop.f32.mrf.mxu0
        %3452 = vmatprep.mubr.bf16.mxu0 0
        %3453 = vmatmul.mubr.bf16.gmra.mxu0 %v2964
        %v3454 = vpop.f32.mrf.mxu0
        %v3455 = vadd.f32 %v2790, %v3454
        %v3456 = vpop.f32.mrf.mxu0
        %v3457 = vpop.f32.mrf.mxu0
        %v3458 = vadd.f32 %v2790, %v3457
        %v3459 = vpop.f32.mrf.mxu0
        %3460 = vmatprep.mubr.bf16.mxu0 0
        %3461 = vmatmul.mubr.bf16.gmra.mxu0 %v2967
        %v3462 = vpop.f32.mrf.mxu0
        %v3463 = vadd.f32 %v2790, %v3462
        %v3464 = vpop.f32.mrf.mxu0
        %v3465 = vpop.f32.mrf.mxu0
        %v3466 = vadd.f32 %v2790, %v3465
        %v3467 = vpop.f32.mrf.mxu0
        %3468 = vmatprep.mubr.bf16.mxu0 0
        %3469 = vmatmul.mubr.bf16.gmra.mxu0 %v2970
        %v3470 = vpop.f32.mrf.mxu0
        %v3471 = vadd.f32 %v2790, %v3470
        %v3472 = vpop.f32.mrf.mxu0
        %v3473 = vpop.f32.mrf.mxu0
        %v3474 = vadd.f32 %v2790, %v3473
        %v3475 = vpop.f32.mrf.mxu0
        %3476 = vmatprep.mubr.bf16.mxu0 0
        %3477 = vmatmul.mubr.bf16.gmra.mxu0 %v2973
        %v3478 = vpop.f32.mrf.mxu0
        %v3479 = vadd.f32 %v2790, %v3478
        %v3480 = vpop.f32.mrf.mxu0
        %v3481 = vpop.f32.mrf.mxu0
        %v3482 = vadd.f32 %v2790, %v3481
        %v3483 = vpop.f32.mrf.mxu0
        %3484 = vmatprep.mubr.bf16.mxu0 0
        %3485 = vmatmul.mubr.bf16.gmra.mxu0 %v2976
        %v3486 = vpop.f32.mrf.mxu0
        %v3487 = vadd.f32 %v2790, %v3486
        %v3488 = vpop.f32.mrf.mxu0
        %v3489 = vpop.f32.mrf.mxu0
        %v3490 = vadd.f32 %v2790, %v3489
        %v3491 = vpop.f32.mrf.mxu0
        %3492 = vmatprep.mubr.bf16.mxu0 0
        %3493 = vmatmul.mubr.bf16.gmra.mxu0 %v2979
        %v3494 = vpop.f32.mrf.mxu0
        %v3495 = vadd.f32 %v2790, %v3494
        %v3496 = vpop.f32.mrf.mxu0
        %v3497 = vpop.f32.mrf.mxu0
        %v3498 = vadd.f32 %v2790, %v3497
        %v3499 = vpop.f32.mrf.mxu0
        %3500 = vmatprep.mubr.bf16.mxu0 0
        %3501 = vmatmul.mubr.bf16.gmra.mxu0 %v2982
        %v3502 = vpop.f32.mrf.mxu0
        %v3503 = vadd.f32 %v2790, %v3502
        %v3504 = vpop.f32.mrf.mxu0
        %v3505 = vpop.f32.mrf.mxu0
        %v3506 = vadd.f32 %v2790, %v3505
        %v3507 = vpop.f32.mrf.mxu0
        %3508 = vmatprep.mubr.bf16.mxu0 0
        %3509 = vmatmul.mubr.bf16.gmra.mxu0 %v2985
        %v3510 = vpop.f32.mrf.mxu0
        %v3511 = vadd.f32 %v2790, %v3510
        %v3512 = vpop.f32.mrf.mxu0
        %v3513 = vpop.f32.mrf.mxu0
        %v3514 = vadd.f32 %v2790, %v3513
        %v3515 = vpop.f32.mrf.mxu0
        %3516 = vmatprep.mubr.bf16.mxu0 0
        %3517 = vmatmul.mubr.bf16.gmra.mxu0 %v2988
        %v3518 = vpop.f32.mrf.mxu0
        %v3519 = vadd.f32 %v2790, %v3518
        %v3520 = vpop.f32.mrf.mxu0
        %v3521 = vpop.f32.mrf.mxu0
        %v3522 = vadd.f32 %v2790, %v3521
        %v3523 = vpop.f32.mrf.mxu0
        %3524 = vmatprep.mubr.bf16.mxu0 0
        %3525 = vmatmul.mubr.bf16.gmra.mxu0 %v2991
        %v3526 = vpop.f32.mrf.mxu0
        %v3527 = vadd.f32 %v2790, %v3526
        %v3528 = vpop.f32.mrf.mxu0
        %v3529 = vpop.f32.mrf.mxu0
        %v3530 = vadd.f32 %v2790, %v3529
        %v3531 = vpop.f32.mrf.mxu0
        %3532 = vmatprep.mubr.bf16.mxu0 0
        %3533 = vmatmul.mubr.bf16.gmra.mxu0 %v2994
        %v3534 = vpop.f32.mrf.mxu0
        %v3535 = vadd.f32 %v2790, %v3534
        %v3536 = vpop.f32.mrf.mxu0
        %v3537 = vpop.f32.mrf.mxu0
        %v3538 = vadd.f32 %v2790, %v3537
        %v3539 = vpop.f32.mrf.mxu0
        %3540 = vdwg.mxu0
        %v3541 = vmax.f32 %v3031, 0.0
        %v3542 = vmax.f32 %v3034, 0.0
        %v3543 = vmax.f32 %v3039, 0.0
        %v3544 = vmax.f32 %v3042, 0.0
        %v3545 = vmax.f32 %v3047, 0.0
        %v3546 = vmax.f32 %v3050, 0.0
        %v3547 = vmax.f32 %v3055, 0.0
        %v3548 = vmax.f32 %v3058, 0.0
        %v3549 = vmax.f32 %v3063, 0.0
        %v3550 = vmax.f32 %v3066, 0.0
        %v3551 = vmax.f32 %v3071, 0.0
        %v3552 = vmax.f32 %v3074, 0.0
        %v3553 = vmax.f32 %v3079, 0.0
        %v3554 = vmax.f32 %v3082, 0.0
        %v3555 = vmax.f32 %v3087, 0.0
        %v3556 = vmax.f32 %v3090, 0.0
        %v3557 = vmax.f32 %v3095, 0.0
        %v3558 = vmax.f32 %v3098, 0.0
        %v3559 = vmax.f32 %v3103, 0.0
        %v3560 = vmax.f32 %v3106, 0.0
        %v3561 = vmax.f32 %v3111, 0.0
        %v3562 = vmax.f32 %v3114, 0.0
        %v3563 = vmax.f32 %v3119, 0.0
        %v3564 = vmax.f32 %v3122, 0.0
        %v3565 = vmax.f32 %v3127, 0.0
        %v3566 = vmax.f32 %v3130, 0.0
        %v3567 = vmax.f32 %v3135, 0.0
        %v3568 = vmax.f32 %v3138, 0.0
        %v3569 = vmax.f32 %v3143, 0.0
        %v3570 = vmax.f32 %v3146, 0.0
        %v3571 = vmax.f32 %v3151, 0.0
        %v3572 = vmax.f32 %v3154, 0.0
        %v3573 = vmax.f32 %v3159, 0.0
        %v3574 = vmax.f32 %v3162, 0.0
        %v3575 = vmax.f32 %v3167, 0.0
        %v3576 = vmax.f32 %v3170, 0.0
        %v3577 = vmax.f32 %v3175, 0.0
        %v3578 = vmax.f32 %v3178, 0.0
        %v3579 = vmax.f32 %v3183, 0.0
        %v3580 = vmax.f32 %v3186, 0.0
        %v3581 = vmax.f32 %v3191, 0.0
        %v3582 = vmax.f32 %v3194, 0.0
        %v3583 = vmax.f32 %v3199, 0.0
        %v3584 = vmax.f32 %v3202, 0.0
        %v3585 = vmax.f32 %v3207, 0.0
        %v3586 = vmax.f32 %v3210, 0.0
        %v3587 = vmax.f32 %v3215, 0.0
        %v3588 = vmax.f32 %v3218, 0.0
        %v3589 = vmax.f32 %v3223, 0.0
        %v3590 = vmax.f32 %v3226, 0.0
        %v3591 = vmax.f32 %v3231, 0.0
        %v3592 = vmax.f32 %v3234, 0.0
        %v3593 = vmax.f32 %v3239, 0.0
        %v3594 = vmax.f32 %v3242, 0.0
        %v3595 = vmax.f32 %v3247, 0.0
        %v3596 = vmax.f32 %v3250, 0.0
        %v3597 = vmax.f32 %v3255, 0.0
        %v3598 = vmax.f32 %v3258, 0.0
        %v3599 = vmax.f32 %v3263, 0.0
        %v3600 = vmax.f32 %v3266, 0.0
        %v3601 = vmax.f32 %v3271, 0.0
        %v3602 = vmax.f32 %v3274, 0.0
        %v3603 = vmax.f32 %v3279, 0.0
        %v3604 = vmax.f32 %v3282, 0.0
        %v3605 = vmax.f32 %v3287, 0.0
        %v3606 = vmax.f32 %v3290, 0.0
        %v3607 = vmax.f32 %v3295, 0.0
        %v3608 = vmax.f32 %v3298, 0.0
        %v3609 = vmax.f32 %v3303, 0.0
        %v3610 = vmax.f32 %v3306, 0.0
        %v3611 = vmax.f32 %v3311, 0.0
        %v3612 = vmax.f32 %v3314, 0.0
        %v3613 = vmax.f32 %v3319, 0.0
        %v3614 = vmax.f32 %v3322, 0.0
        %v3615 = vmax.f32 %v3327, 0.0
        %v3616 = vmax.f32 %v3330, 0.0
        %v3617 = vmax.f32 %v3335, 0.0
        %v3618 = vmax.f32 %v3338, 0.0
        %v3619 = vmax.f32 %v3343, 0.0
        %v3620 = vmax.f32 %v3346, 0.0
        %v3621 = vmax.f32 %v3351, 0.0
        %v3622 = vmax.f32 %v3354, 0.0
        %v3623 = vmax.f32 %v3359, 0.0
        %v3624 = vmax.f32 %v3362, 0.0
        %v3625 = vmax.f32 %v3367, 0.0
        %v3626 = vmax.f32 %v3370, 0.0
        %v3627 = vmax.f32 %v3375, 0.0
        %v3628 = vmax.f32 %v3378, 0.0
        %v3629 = vmax.f32 %v3383, 0.0
        %v3630 = vmax.f32 %v3386, 0.0
        %v3631 = vmax.f32 %v3391, 0.0
        %v3632 = vmax.f32 %v3394, 0.0
        %v3633 = vmax.f32 %v3399, 0.0
        %v3634 = vmax.f32 %v3402, 0.0
        %v3635 = vmax.f32 %v3407, 0.0
        %v3636 = vmax.f32 %v3410, 0.0
        %v3637 = vmax.f32 %v3415, 0.0
        %v3638 = vmax.f32 %v3418, 0.0
        %v3639 = vmax.f32 %v3423, 0.0
        %v3640 = vmax.f32 %v3426, 0.0
        %v3641 = vmax.f32 %v3431, 0.0
        %v3642 = vmax.f32 %v3434, 0.0
        %v3643 = vmax.f32 %v3439, 0.0
        %v3644 = vmax.f32 %v3442, 0.0
        %v3645 = vmax.f32 %v3447, 0.0
        %v3646 = vmax.f32 %v3450, 0.0
        %v3647 = vmax.f32 %v3455, 0.0
        %v3648 = vmax.f32 %v3458, 0.0
        %v3649 = vmax.f32 %v3463, 0.0
        %v3650 = vmax.f32 %v3466, 0.0
        %v3651 = vmax.f32 %v3471, 0.0
        %v3652 = vmax.f32 %v3474, 0.0
        %v3653 = vmax.f32 %v3479, 0.0
        %v3654 = vmax.f32 %v3482, 0.0
        %v3655 = vmax.f32 %v3487, 0.0
        %v3656 = vmax.f32 %v3490, 0.0
        %v3657 = vmax.f32 %v3495, 0.0
        %v3658 = vmax.f32 %v3498, 0.0
        %v3659 = vmax.f32 %v3503, 0.0
        %v3660 = vmax.f32 %v3506, 0.0
        %v3661 = vmax.f32 %v3511, 0.0
        %v3662 = vmax.f32 %v3514, 0.0
        %v3663 = vmax.f32 %v3519, 0.0
        %v3664 = vmax.f32 %v3522, 0.0
        %v3665 = vmax.f32 %v3527, 0.0
        %v3666 = vmax.f32 %v3530, 0.0
        %v3667 = vmax.f32 %v3535, 0.0
        %v3668 = vmax.f32 %v3538, 0.0
        %v3669 = vld [vmem:[%s8] sm:$0x1]
        %v3671 = vlaneseq
        %v3672 = vshrl.u32 %v3671, 7
        %v3673 = vsub.s32 0, %v3672
        %v3674 = vrot.slane %v3669, %v3673
        %v3676 = vmul.f32 %v3541, %v3674
        %v3677 = vmul.f32 %v3542, %v3674
        %v3678 = vmul.f32 %v3543, %v3674
        %v3679 = vmul.f32 %v3544, %v3674
        %v3680 = vmul.f32 %v3545, %v3674
        %v3681 = vmul.f32 %v3546, %v3674
        %v3682 = vmul.f32 %v3547, %v3674
        %v3683 = vmul.f32 %v3548, %v3674
        %v3684 = vmul.f32 %v3549, %v3674
        %v3685 = vmul.f32 %v3550, %v3674
        %v3686 = vmul.f32 %v3551, %v3674
        %v3687 = vmul.f32 %v3552, %v3674
        %v3688 = vmul.f32 %v3553, %v3674
        %v3689 = vmul.f32 %v3554, %v3674
        %v3690 = vmul.f32 %v3555, %v3674
        %v3691 = vmul.f32 %v3556, %v3674
        %v3692 = vmul.f32 %v3557, %v3674
        %v3693 = vmul.f32 %v3558, %v3674
        %v3694 = vmul.f32 %v3559, %v3674
        %v3695 = vmul.f32 %v3560, %v3674
        %v3696 = vmul.f32 %v3561, %v3674
        %v3697 = vmul.f32 %v3562, %v3674
        %v3698 = vmul.f32 %v3563, %v3674
        %v3699 = vmul.f32 %v3564, %v3674
        %v3700 = vmul.f32 %v3565, %v3674
        %v3701 = vmul.f32 %v3566, %v3674
        %v3702 = vmul.f32 %v3567, %v3674
        %v3703 = vmul.f32 %v3568, %v3674
        %v3704 = vmul.f32 %v3569, %v3674
        %v3705 = vmul.f32 %v3570, %v3674
        %v3706 = vmul.f32 %v3571, %v3674
        %v3707 = vmul.f32 %v3572, %v3674
        %v3708 = vmul.f32 %v3573, %v3674
        %v3709 = vmul.f32 %v3574, %v3674
        %v3710 = vmul.f32 %v3575, %v3674
        %v3711 = vmul.f32 %v3576, %v3674
        %v3712 = vmul.f32 %v3577, %v3674
        %v3713 = vmul.f32 %v3578, %v3674
        %v3714 = vmul.f32 %v3579, %v3674
        %v3715 = vmul.f32 %v3580, %v3674
        %v3716 = vmul.f32 %v3581, %v3674
        %v3717 = vmul.f32 %v3582, %v3674
        %v3718 = vmul.f32 %v3583, %v3674
        %v3719 = vmul.f32 %v3584, %v3674
        %v3720 = vmul.f32 %v3585, %v3674
        %v3721 = vmul.f32 %v3586, %v3674
        %v3722 = vmul.f32 %v3587, %v3674
        %v3723 = vmul.f32 %v3588, %v3674
        %v3724 = vmul.f32 %v3589, %v3674
        %v3725 = vmul.f32 %v3590, %v3674
        %v3726 = vmul.f32 %v3591, %v3674
        %v3727 = vmul.f32 %v3592, %v3674
        %v3728 = vmul.f32 %v3593, %v3674
        %v3729 = vmul.f32 %v3594, %v3674
        %v3730 = vmul.f32 %v3595, %v3674
        %v3731 = vmul.f32 %v3596, %v3674
        %v3732 = vmul.f32 %v3597, %v3674
        %v3733 = vmul.f32 %v3598, %v3674
        %v3734 = vmul.f32 %v3599, %v3674
        %v3735 = vmul.f32 %v3600, %v3674
        %v3736 = vmul.f32 %v3601, %v3674
        %v3737 = vmul.f32 %v3602, %v3674
        %v3738 = vmul.f32 %v3603, %v3674
        %v3739 = vmul.f32 %v3604, %v3674
        %v3740 = vmul.f32 %v3605, %v3674
        %v3741 = vmul.f32 %v3606, %v3674
        %v3742 = vmul.f32 %v3607, %v3674
        %v3743 = vmul.f32 %v3608, %v3674
        %v3744 = vmul.f32 %v3609, %v3674
        %v3745 = vmul.f32 %v3610, %v3674
        %v3746 = vmul.f32 %v3611, %v3674
        %v3747 = vmul.f32 %v3612, %v3674
        %v3748 = vmul.f32 %v3613, %v3674
        %v3749 = vmul.f32 %v3614, %v3674
        %v3750 = vmul.f32 %v3615, %v3674
        %v3751 = vmul.f32 %v3616, %v3674
        %v3752 = vmul.f32 %v3617, %v3674
        %v3753 = vmul.f32 %v3618, %v3674
        %v3754 = vmul.f32 %v3619, %v3674
        %v3755 = vmul.f32 %v3620, %v3674
        %v3756 = vmul.f32 %v3621, %v3674
        %v3757 = vmul.f32 %v3622, %v3674
        %v3758 = vmul.f32 %v3623, %v3674
        %v3759 = vmul.f32 %v3624, %v3674
        %v3760 = vmul.f32 %v3625, %v3674
        %v3761 = vmul.f32 %v3626, %v3674
        %v3762 = vmul.f32 %v3627, %v3674
        %v3763 = vmul.f32 %v3628, %v3674
        %v3764 = vmul.f32 %v3629, %v3674
        %v3765 = vmul.f32 %v3630, %v3674
        %v3766 = vmul.f32 %v3631, %v3674
        %v3767 = vmul.f32 %v3632, %v3674
        %v3768 = vmul.f32 %v3633, %v3674
        %v3769 = vmul.f32 %v3634, %v3674
        %v3770 = vmul.f32 %v3635, %v3674
        %v3771 = vmul.f32 %v3636, %v3674
        %v3772 = vmul.f32 %v3637, %v3674
        %v3773 = vmul.f32 %v3638, %v3674
        %v3774 = vmul.f32 %v3639, %v3674
        %v3775 = vmul.f32 %v3640, %v3674
        %v3776 = vmul.f32 %v3641, %v3674
        %v3777 = vmul.f32 %v3642, %v3674
        %v3778 = vmul.f32 %v3643, %v3674
        %v3779 = vmul.f32 %v3644, %v3674
        %v3780 = vmul.f32 %v3645, %v3674
        %v3781 = vmul.f32 %v3646, %v3674
        %v3782 = vmul.f32 %v3647, %v3674
        %v3783 = vmul.f32 %v3648, %v3674
        %v3784 = vmul.f32 %v3649, %v3674
        %v3785 = vmul.f32 %v3650, %v3674
        %v3786 = vmul.f32 %v3651, %v3674
        %v3787 = vmul.f32 %v3652, %v3674
        %v3788 = vmul.f32 %v3653, %v3674
        %v3789 = vmul.f32 %v3654, %v3674
        %v3790 = vmul.f32 %v3655, %v3674
        %v3791 = vmul.f32 %v3656, %v3674
        %v3792 = vmul.f32 %v3657, %v3674
        %v3793 = vmul.f32 %v3658, %v3674
        %v3794 = vmul.f32 %v3659, %v3674
        %v3795 = vmul.f32 %v3660, %v3674
        %v3796 = vmul.f32 %v3661, %v3674
        %v3797 = vmul.f32 %v3662, %v3674
        %v3798 = vmul.f32 %v3663, %v3674
        %v3799 = vmul.f32 %v3664, %v3674
        %v3800 = vmul.f32 %v3665, %v3674
        %v3801 = vmul.f32 %v3666, %v3674
        %v3802 = vmul.f32 %v3667, %v3674
        %v3803 = vmul.f32 %v3668, %v3674
        %v3804 = vld [vmem:[%s9] sm:$0x1]
        %v3806 = vlaneseq
        %v3807 = vshrl.u32 %v3806, 7
        %v3808 = vsub.s32 0, %v3807
        %v3809 = vrot.slane %v3804, %v3808
        %v3811 = vadd.f32 %v3676, %v3809
        %v3812 = vadd.f32 %v3677, %v3809
        %v3813 = vadd.f32 %v3678, %v3809
        %v3814 = vadd.f32 %v3679, %v3809
        %v3815 = vadd.f32 %v3680, %v3809
        %v3816 = vadd.f32 %v3681, %v3809
        %v3817 = vadd.f32 %v3682, %v3809
        %v3818 = vadd.f32 %v3683, %v3809
        %v3819 = vadd.f32 %v3684, %v3809
        %v3820 = vadd.f32 %v3685, %v3809
        %v3821 = vadd.f32 %v3686, %v3809
        %v3822 = vadd.f32 %v3687, %v3809
        %v3823 = vadd.f32 %v3688, %v3809
        %v3824 = vadd.f32 %v3689, %v3809
        %v3825 = vadd.f32 %v3690, %v3809
        %v3826 = vadd.f32 %v3691, %v3809
        %v3827 = vadd.f32 %v3692, %v3809
        %v3828 = vadd.f32 %v3693, %v3809
        %v3829 = vadd.f32 %v3694, %v3809
        %v3830 = vadd.f32 %v3695, %v3809
        %v3831 = vadd.f32 %v3696, %v3809
        %v3832 = vadd.f32 %v3697, %v3809
        %v3833 = vadd.f32 %v3698, %v3809
        %v3834 = vadd.f32 %v3699, %v3809
        %v3835 = vadd.f32 %v3700, %v3809
        %v3836 = vadd.f32 %v3701, %v3809
        %v3837 = vadd.f32 %v3702, %v3809
        %v3838 = vadd.f32 %v3703, %v3809
        %v3839 = vadd.f32 %v3704, %v3809
        %v3840 = vadd.f32 %v3705, %v3809
        %v3841 = vadd.f32 %v3706, %v3809
        %v3842 = vadd.f32 %v3707, %v3809
        %v3843 = vadd.f32 %v3708, %v3809
        %v3844 = vadd.f32 %v3709, %v3809
        %v3845 = vadd.f32 %v3710, %v3809
        %v3846 = vadd.f32 %v3711, %v3809
        %v3847 = vadd.f32 %v3712, %v3809
        %v3848 = vadd.f32 %v3713, %v3809
        %v3849 = vadd.f32 %v3714, %v3809
        %v3850 = vadd.f32 %v3715, %v3809
        %v3851 = vadd.f32 %v3716, %v3809
        %v3852 = vadd.f32 %v3717, %v3809
        %v3853 = vadd.f32 %v3718, %v3809
        %v3854 = vadd.f32 %v3719, %v3809
        %v3855 = vadd.f32 %v3720, %v3809
        %v3856 = vadd.f32 %v3721, %v3809
        %v3857 = vadd.f32 %v3722, %v3809
        %v3858 = vadd.f32 %v3723, %v3809
        %v3859 = vadd.f32 %v3724, %v3809
        %v3860 = vadd.f32 %v3725, %v3809
        %v3861 = vadd.f32 %v3726, %v3809
        %v3862 = vadd.f32 %v3727, %v3809
        %v3863 = vadd.f32 %v3728, %v3809
        %v3864 = vadd.f32 %v3729, %v3809
        %v3865 = vadd.f32 %v3730, %v3809
        %v3866 = vadd.f32 %v3731, %v3809
        %v3867 = vadd.f32 %v3732, %v3809
        %v3868 = vadd.f32 %v3733, %v3809
        %v3869 = vadd.f32 %v3734, %v3809
        %v3870 = vadd.f32 %v3735, %v3809
        %v3871 = vadd.f32 %v3736, %v3809
        %v3872 = vadd.f32 %v3737, %v3809
        %v3873 = vadd.f32 %v3738, %v3809
        %v3874 = vadd.f32 %v3739, %v3809
        %v3875 = vadd.f32 %v3740, %v3809
        %v3876 = vadd.f32 %v3741, %v3809
        %v3877 = vadd.f32 %v3742, %v3809
        %v3878 = vadd.f32 %v3743, %v3809
        %v3879 = vadd.f32 %v3744, %v3809
        %v3880 = vadd.f32 %v3745, %v3809
        %v3881 = vadd.f32 %v3746, %v3809
        %v3882 = vadd.f32 %v3747, %v3809
        %v3883 = vadd.f32 %v3748, %v3809
        %v3884 = vadd.f32 %v3749, %v3809
        %v3885 = vadd.f32 %v3750, %v3809
        %v3886 = vadd.f32 %v3751, %v3809
        %v3887 = vadd.f32 %v3752, %v3809
        %v3888 = vadd.f32 %v3753, %v3809
        %v3889 = vadd.f32 %v3754, %v3809
        %v3890 = vadd.f32 %v3755, %v3809
        %v3891 = vadd.f32 %v3756, %v3809
        %v3892 = vadd.f32 %v3757, %v3809
        %v3893 = vadd.f32 %v3758, %v3809
        %v3894 = vadd.f32 %v3759, %v3809
        %v3895 = vadd.f32 %v3760, %v3809
        %v3896 = vadd.f32 %v3761, %v3809
        %v3897 = vadd.f32 %v3762, %v3809
        %v3898 = vadd.f32 %v3763, %v3809
        %v3899 = vadd.f32 %v3764, %v3809
        %v3900 = vadd.f32 %v3765, %v3809
        %v3901 = vadd.f32 %v3766, %v3809
        %v3902 = vadd.f32 %v3767, %v3809
        %v3903 = vadd.f32 %v3768, %v3809
        %v3904 = vadd.f32 %v3769, %v3809
        %v3905 = vadd.f32 %v3770, %v3809
        %v3906 = vadd.f32 %v3771, %v3809
        %v3907 = vadd.f32 %v3772, %v3809
        %v3908 = vadd.f32 %v3773, %v3809
        %v3909 = vadd.f32 %v3774, %v3809
        %v3910 = vadd.f32 %v3775, %v3809
        %v3911 = vadd.f32 %v3776, %v3809
        %v3912 = vadd.f32 %v3777, %v3809
        %v3913 = vadd.f32 %v3778, %v3809
        %v3914 = vadd.f32 %v3779, %v3809
        %v3915 = vadd.f32 %v3780, %v3809
        %v3916 = vadd.f32 %v3781, %v3809
        %v3917 = vadd.f32 %v3782, %v3809
        %v3918 = vadd.f32 %v3783, %v3809
        %v3919 = vadd.f32 %v3784, %v3809
        %v3920 = vadd.f32 %v3785, %v3809
        %v3921 = vadd.f32 %v3786, %v3809
        %v3922 = vadd.f32 %v3787, %v3809
        %v3923 = vadd.f32 %v3788, %v3809
        %v3924 = vadd.f32 %v3789, %v3809
        %v3925 = vadd.f32 %v3790, %v3809
        %v3926 = vadd.f32 %v3791, %v3809
        %v3927 = vadd.f32 %v3792, %v3809
        %v3928 = vadd.f32 %v3793, %v3809
        %v3929 = vadd.f32 %v3794, %v3809
        %v3930 = vadd.f32 %v3795, %v3809
        %v3931 = vadd.f32 %v3796, %v3809
        %v3932 = vadd.f32 %v3797, %v3809
        %v3933 = vadd.f32 %v3798, %v3809
        %v3934 = vadd.f32 %v3799, %v3809
        %v3935 = vadd.f32 %v3800, %v3809
        %v3936 = vadd.f32 %v3801, %v3809
        %v3937 = vadd.f32 %v3802, %v3809
        %v3938 = vadd.f32 %v3803, %v3809
        %v3939 = vld [vmem:[%s425] sm:$0xff]
        %v3940 = vld [vmem:[%s425 + $0x8] sm:$0xff]
        %v3941 = vlaneseq
        %v3942 = vshrl.u32 %v3941, 7
        %v3943 = vsub.s32 0, %v3942
        %v3944 = vrot.slane %v3939, %v3943
        %3946 = vbcast.lane.b32.xlu0 %v3944, 256
        %v3947 = vpop.permute.xlu0 %3946
        %s3949 = sor.u32 256, 8
        %3950 = vbcast.lane.b32.xlu0 %v3944, %s3949
        %v3951 = vpop.permute.xlu0 %3950
        %s3953 = sor.u32 256, 16
        %3954 = vbcast.lane.b32.xlu0 %v3944, %s3953
        %v3955 = vpop.permute.xlu0 %3954
        %s3957 = sor.u32 256, 24
        %3958 = vbcast.lane.b32.xlu0 %v3944, %s3957
        %v3959 = vpop.permute.xlu0 %3958
        %s3961 = sor.u32 256, 32
        %3962 = vbcast.lane.b32.xlu0 %v3944, %s3961
        %v3963 = vpop.permute.xlu0 %3962
        %s3965 = sor.u32 256, 40
        %3966 = vbcast.lane.b32.xlu0 %v3944, %s3965
        %v3967 = vpop.permute.xlu0 %3966
        %s3969 = sor.u32 256, 48
        %3970 = vbcast.lane.b32.xlu0 %v3944, %s3969
        %v3971 = vpop.permute.xlu0 %3970
        %s3973 = sor.u32 256, 56
        %3974 = vbcast.lane.b32.xlu0 %v3944, %s3973
        %v3975 = vpop.permute.xlu0 %3974
        %v3976 = vlaneseq
        %v3977 = vshrl.u32 %v3976, 7
        %v3978 = vsub.s32 1, %v3977
        %v3979 = vrot.slane %v3939, %v3978
        %3981 = vbcast.lane.b32.xlu0 %v3979, 256
        %v3982 = vpop.permute.xlu0 %3981
        %s3984 = sor.u32 256, 8
        %3985 = vbcast.lane.b32.xlu0 %v3979, %s3984
        %v3986 = vpop.permute.xlu0 %3985
        %s3988 = sor.u32 256, 16
        %3989 = vbcast.lane.b32.xlu0 %v3979, %s3988
        %v3990 = vpop.permute.xlu0 %3989
        %s3992 = sor.u32 256, 24
        %3993 = vbcast.lane.b32.xlu0 %v3979, %s3992
        %v3994 = vpop.permute.xlu0 %3993
        %s3996 = sor.u32 256, 32
        %3997 = vbcast.lane.b32.xlu0 %v3979, %s3996
        %v3998 = vpop.permute.xlu0 %3997
        %s4000 = sor.u32 256, 40
        %4001 = vbcast.lane.b32.xlu0 %v3979, %s4000
        %v4002 = vpop.permute.xlu0 %4001
        %s4004 = sor.u32 256, 48
        %4005 = vbcast.lane.b32.xlu0 %v3979, %s4004
        %v4006 = vpop.permute.xlu0 %4005
        %s4008 = sor.u32 256, 56
        %4009 = vbcast.lane.b32.xlu0 %v3979, %s4008
        %v4010 = vpop.permute.xlu0 %4009
        %v4011 = vlaneseq
        %v4012 = vshrl.u32 %v4011, 7
        %v4013 = vsub.s32 2, %v4012
        %v4014 = vrot.slane %v3939, %v4013
        %4016 = vbcast.lane.b32.xlu0 %v4014, 256
        %v4017 = vpop.permute.xlu0 %4016
        %s4019 = sor.u32 256, 8
        %4020 = vbcast.lane.b32.xlu0 %v4014, %s4019
        %v4021 = vpop.permute.xlu0 %4020
        %s4023 = sor.u32 256, 16
        %4024 = vbcast.lane.b32.xlu0 %v4014, %s4023
        %v4025 = vpop.permute.xlu0 %4024
        %s4027 = sor.u32 256, 24
        %4028 = vbcast.lane.b32.xlu0 %v4014, %s4027
        %v4029 = vpop.permute.xlu0 %4028
        %s4031 = sor.u32 256, 32
        %4032 = vbcast.lane.b32.xlu0 %v4014, %s4031
        %v4033 = vpop.permute.xlu0 %4032
        %s4035 = sor.u32 256, 40
        %4036 = vbcast.lane.b32.xlu0 %v4014, %s4035
        %v4037 = vpop.permute.xlu0 %4036
        %s4039 = sor.u32 256, 48
        %4040 = vbcast.lane.b32.xlu0 %v4014, %s4039
        %v4041 = vpop.permute.xlu0 %4040
        %s4043 = sor.u32 256, 56
        %4044 = vbcast.lane.b32.xlu0 %v4014, %s4043
        %v4045 = vpop.permute.xlu0 %4044
        %v4046 = vlaneseq
        %v4047 = vshrl.u32 %v4046, 7
        %v4048 = vsub.s32 3, %v4047
        %v4049 = vrot.slane %v3939, %v4048
        %4051 = vbcast.lane.b32.xlu0 %v4049, 256
        %v4052 = vpop.permute.xlu0 %4051
        %s4054 = sor.u32 256, 8
        %4055 = vbcast.lane.b32.xlu0 %v4049, %s4054
        %v4056 = vpop.permute.xlu0 %4055
        %s4058 = sor.u32 256, 16
        %4059 = vbcast.lane.b32.xlu0 %v4049, %s4058
        %v4060 = vpop.permute.xlu0 %4059
        %s4062 = sor.u32 256, 24
        %4063 = vbcast.lane.b32.xlu0 %v4049, %s4062
        %v4064 = vpop.permute.xlu0 %4063
        %s4066 = sor.u32 256, 32
        %4067 = vbcast.lane.b32.xlu0 %v4049, %s4066
        %v4068 = vpop.permute.xlu0 %4067
        %s4070 = sor.u32 256, 40
        %4071 = vbcast.lane.b32.xlu0 %v4049, %s4070
        %v4072 = vpop.permute.xlu0 %4071
        %s4074 = sor.u32 256, 48
        %4075 = vbcast.lane.b32.xlu0 %v4049, %s4074
        %v4076 = vpop.permute.xlu0 %4075
        %s4078 = sor.u32 256, 56
        %4079 = vbcast.lane.b32.xlu0 %v4049, %s4078
        %v4080 = vpop.permute.xlu0 %4079
        %v4081 = vlaneseq
        %v4082 = vshrl.u32 %v4081, 7
        %v4083 = vsub.s32 4, %v4082
        %v4084 = vrot.slane %v3939, %v4083
        %4086 = vbcast.lane.b32.xlu0 %v4084, 256
        %v4087 = vpop.permute.xlu0 %4086
        %s4089 = sor.u32 256, 8
        %4090 = vbcast.lane.b32.xlu0 %v4084, %s4089
        %v4091 = vpop.permute.xlu0 %4090
        %s4093 = sor.u32 256, 16
        %4094 = vbcast.lane.b32.xlu0 %v4084, %s4093
        %v4095 = vpop.permute.xlu0 %4094
        %s4097 = sor.u32 256, 24
        %4098 = vbcast.lane.b32.xlu0 %v4084, %s4097
        %v4099 = vpop.permute.xlu0 %4098
        %s4101 = sor.u32 256, 32
        %4102 = vbcast.lane.b32.xlu0 %v4084, %s4101
        %v4103 = vpop.permute.xlu0 %4102
        %s4105 = sor.u32 256, 40
        %4106 = vbcast.lane.b32.xlu0 %v4084, %s4105
        %v4107 = vpop.permute.xlu0 %4106
        %s4109 = sor.u32 256, 48
        %4110 = vbcast.lane.b32.xlu0 %v4084, %s4109
        %v4111 = vpop.permute.xlu0 %4110
        %s4113 = sor.u32 256, 56
        %4114 = vbcast.lane.b32.xlu0 %v4084, %s4113
        %v4115 = vpop.permute.xlu0 %4114
        %v4116 = vlaneseq
        %v4117 = vshrl.u32 %v4116, 7
        %v4118 = vsub.s32 5, %v4117
        %v4119 = vrot.slane %v3939, %v4118
        %4121 = vbcast.lane.b32.xlu0 %v4119, 256
        %v4122 = vpop.permute.xlu0 %4121
        %s4124 = sor.u32 256, 8
        %4125 = vbcast.lane.b32.xlu0 %v4119, %s4124
        %v4126 = vpop.permute.xlu0 %4125
        %s4128 = sor.u32 256, 16
        %4129 = vbcast.lane.b32.xlu0 %v4119, %s4128
        %v4130 = vpop.permute.xlu0 %4129
        %s4132 = sor.u32 256, 24
        %4133 = vbcast.lane.b32.xlu0 %v4119, %s4132
        %v4134 = vpop.permute.xlu0 %4133
        %s4136 = sor.u32 256, 32
        %4137 = vbcast.lane.b32.xlu0 %v4119, %s4136
        %v4138 = vpop.permute.xlu0 %4137
        %s4140 = sor.u32 256, 40
        %4141 = vbcast.lane.b32.xlu0 %v4119, %s4140
        %v4142 = vpop.permute.xlu0 %4141
        %s4144 = sor.u32 256, 48
        %4145 = vbcast.lane.b32.xlu0 %v4119, %s4144
        %v4146 = vpop.permute.xlu0 %4145
        %s4148 = sor.u32 256, 56
        %4149 = vbcast.lane.b32.xlu0 %v4119, %s4148
        %v4150 = vpop.permute.xlu0 %4149
        %v4151 = vlaneseq
        %v4152 = vshrl.u32 %v4151, 7
        %v4153 = vsub.s32 6, %v4152
        %v4154 = vrot.slane %v3939, %v4153
        %4156 = vbcast.lane.b32.xlu0 %v4154, 256
        %v4157 = vpop.permute.xlu0 %4156
        %s4159 = sor.u32 256, 8
        %4160 = vbcast.lane.b32.xlu0 %v4154, %s4159
        %v4161 = vpop.permute.xlu0 %4160
        %s4163 = sor.u32 256, 16
        %4164 = vbcast.lane.b32.xlu0 %v4154, %s4163
        %v4165 = vpop.permute.xlu0 %4164
        %s4167 = sor.u32 256, 24
        %4168 = vbcast.lane.b32.xlu0 %v4154, %s4167
        %v4169 = vpop.permute.xlu0 %4168
        %s4171 = sor.u32 256, 32
        %4172 = vbcast.lane.b32.xlu0 %v4154, %s4171
        %v4173 = vpop.permute.xlu0 %4172
        %s4175 = sor.u32 256, 40
        %4176 = vbcast.lane.b32.xlu0 %v4154, %s4175
        %v4177 = vpop.permute.xlu0 %4176
        %s4179 = sor.u32 256, 48
        %4180 = vbcast.lane.b32.xlu0 %v4154, %s4179
        %v4181 = vpop.permute.xlu0 %4180
        %s4183 = sor.u32 256, 56
        %4184 = vbcast.lane.b32.xlu0 %v4154, %s4183
        %v4185 = vpop.permute.xlu0 %4184
        %v4186 = vlaneseq
        %v4187 = vshrl.u32 %v4186, 7
        %v4188 = vsub.s32 7, %v4187
        %v4189 = vrot.slane %v3939, %v4188
        %4191 = vbcast.lane.b32.xlu0 %v4189, 256
        %v4192 = vpop.permute.xlu0 %4191
        %s4194 = sor.u32 256, 8
        %4195 = vbcast.lane.b32.xlu0 %v4189, %s4194
        %v4196 = vpop.permute.xlu0 %4195
        %s4198 = sor.u32 256, 16
        %4199 = vbcast.lane.b32.xlu0 %v4189, %s4198
        %v4200 = vpop.permute.xlu0 %4199
        %s4202 = sor.u32 256, 24
        %4203 = vbcast.lane.b32.xlu0 %v4189, %s4202
        %v4204 = vpop.permute.xlu0 %4203
        %s4206 = sor.u32 256, 32
        %4207 = vbcast.lane.b32.xlu0 %v4189, %s4206
        %v4208 = vpop.permute.xlu0 %4207
        %s4210 = sor.u32 256, 40
        %4211 = vbcast.lane.b32.xlu0 %v4189, %s4210
        %v4212 = vpop.permute.xlu0 %4211
        %s4214 = sor.u32 256, 48
        %4215 = vbcast.lane.b32.xlu0 %v4189, %s4214
        %v4216 = vpop.permute.xlu0 %4215
        %s4218 = sor.u32 256, 56
        %4219 = vbcast.lane.b32.xlu0 %v4189, %s4218
        %v4220 = vpop.permute.xlu0 %4219
        %v4221 = vlaneseq
        %v4222 = vshrl.u32 %v4221, 7
        %v4223 = vsub.s32 0, %v4222
        %v4224 = vrot.slane %v3940, %v4223
        %4226 = vbcast.lane.b32.xlu0 %v4224, 256
        %v4227 = vpop.permute.xlu0 %4226
        %s4229 = sor.u32 256, 8
        %4230 = vbcast.lane.b32.xlu0 %v4224, %s4229
        %v4231 = vpop.permute.xlu0 %4230
        %s4233 = sor.u32 256, 16
        %4234 = vbcast.lane.b32.xlu0 %v4224, %s4233
        %v4235 = vpop.permute.xlu0 %4234
        %s4237 = sor.u32 256, 24
        %4238 = vbcast.lane.b32.xlu0 %v4224, %s4237
        %v4239 = vpop.permute.xlu0 %4238
        %s4241 = sor.u32 256, 32
        %4242 = vbcast.lane.b32.xlu0 %v4224, %s4241
        %v4243 = vpop.permute.xlu0 %4242
        %s4245 = sor.u32 256, 40
        %4246 = vbcast.lane.b32.xlu0 %v4224, %s4245
        %v4247 = vpop.permute.xlu0 %4246
        %s4249 = sor.u32 256, 48
        %4250 = vbcast.lane.b32.xlu0 %v4224, %s4249
        %v4251 = vpop.permute.xlu0 %4250
        %s4253 = sor.u32 256, 56
        %4254 = vbcast.lane.b32.xlu0 %v4224, %s4253
        %v4255 = vpop.permute.xlu0 %4254
        %v4256 = vlaneseq
        %v4257 = vshrl.u32 %v4256, 7
        %v4258 = vsub.s32 1, %v4257
        %v4259 = vrot.slane %v3940, %v4258
        %4261 = vbcast.lane.b32.xlu0 %v4259, 256
        %v4262 = vpop.permute.xlu0 %4261
        %s4264 = sor.u32 256, 8
        %4265 = vbcast.lane.b32.xlu0 %v4259, %s4264
        %v4266 = vpop.permute.xlu0 %4265
        %s4268 = sor.u32 256, 16
        %4269 = vbcast.lane.b32.xlu0 %v4259, %s4268
        %v4270 = vpop.permute.xlu0 %4269
        %s4272 = sor.u32 256, 24
        %4273 = vbcast.lane.b32.xlu0 %v4259, %s4272
        %v4274 = vpop.permute.xlu0 %4273
        %s4276 = sor.u32 256, 32
        %4277 = vbcast.lane.b32.xlu0 %v4259, %s4276
        %v4278 = vpop.permute.xlu0 %4277
        %s4280 = sor.u32 256, 40
        %4281 = vbcast.lane.b32.xlu0 %v4259, %s4280
        %v4282 = vpop.permute.xlu0 %4281
        %s4284 = sor.u32 256, 48
        %4285 = vbcast.lane.b32.xlu0 %v4259, %s4284
        %v4286 = vpop.permute.xlu0 %4285
        %s4288 = sor.u32 256, 56
        %4289 = vbcast.lane.b32.xlu0 %v4259, %s4288
        %v4290 = vpop.permute.xlu0 %4289
        %v4291 = vlaneseq
        %v4292 = vshrl.u32 %v4291, 7
        %v4293 = vsub.s32 2, %v4292
        %v4294 = vrot.slane %v3940, %v4293
        %4296 = vbcast.lane.b32.xlu0 %v4294, 256
        %v4297 = vpop.permute.xlu0 %4296
        %s4299 = sor.u32 256, 8
        %4300 = vbcast.lane.b32.xlu0 %v4294, %s4299
        %v4301 = vpop.permute.xlu0 %4300
        %s4303 = sor.u32 256, 16
        %4304 = vbcast.lane.b32.xlu0 %v4294, %s4303
        %v4305 = vpop.permute.xlu0 %4304
        %s4307 = sor.u32 256, 24
        %4308 = vbcast.lane.b32.xlu0 %v4294, %s4307
        %v4309 = vpop.permute.xlu0 %4308
        %s4311 = sor.u32 256, 32
        %4312 = vbcast.lane.b32.xlu0 %v4294, %s4311
        %v4313 = vpop.permute.xlu0 %4312
        %s4315 = sor.u32 256, 40
        %4316 = vbcast.lane.b32.xlu0 %v4294, %s4315
        %v4317 = vpop.permute.xlu0 %4316
        %s4319 = sor.u32 256, 48
        %4320 = vbcast.lane.b32.xlu0 %v4294, %s4319
        %v4321 = vpop.permute.xlu0 %4320
        %s4323 = sor.u32 256, 56
        %4324 = vbcast.lane.b32.xlu0 %v4294, %s4323
        %v4325 = vpop.permute.xlu0 %4324
        %v4326 = vlaneseq
        %v4327 = vshrl.u32 %v4326, 7
        %v4328 = vsub.s32 3, %v4327
        %v4329 = vrot.slane %v3940, %v4328
        %4331 = vbcast.lane.b32.xlu0 %v4329, 256
        %v4332 = vpop.permute.xlu0 %4331
        %s4334 = sor.u32 256, 8
        %4335 = vbcast.lane.b32.xlu0 %v4329, %s4334
        %v4336 = vpop.permute.xlu0 %4335
        %s4338 = sor.u32 256, 16
        %4339 = vbcast.lane.b32.xlu0 %v4329, %s4338
        %v4340 = vpop.permute.xlu0 %4339
        %s4342 = sor.u32 256, 24
        %4343 = vbcast.lane.b32.xlu0 %v4329, %s4342
        %v4344 = vpop.permute.xlu0 %4343
        %s4346 = sor.u32 256, 32
        %4347 = vbcast.lane.b32.xlu0 %v4329, %s4346
        %v4348 = vpop.permute.xlu0 %4347
        %s4350 = sor.u32 256, 40
        %4351 = vbcast.lane.b32.xlu0 %v4329, %s4350
        %v4352 = vpop.permute.xlu0 %4351
        %s4354 = sor.u32 256, 48
        %4355 = vbcast.lane.b32.xlu0 %v4329, %s4354
        %v4356 = vpop.permute.xlu0 %4355
        %s4358 = sor.u32 256, 56
        %4359 = vbcast.lane.b32.xlu0 %v4329, %s4358
        %v4360 = vpop.permute.xlu0 %4359
        %v4361 = vlaneseq
        %v4362 = vshrl.u32 %v4361, 7
        %v4363 = vsub.s32 4, %v4362
        %v4364 = vrot.slane %v3940, %v4363
        %4366 = vbcast.lane.b32.xlu0 %v4364, 256
        %v4367 = vpop.permute.xlu0 %4366
        %s4369 = sor.u32 256, 8
        %4370 = vbcast.lane.b32.xlu0 %v4364, %s4369
        %v4371 = vpop.permute.xlu0 %4370
        %s4373 = sor.u32 256, 16
        %4374 = vbcast.lane.b32.xlu0 %v4364, %s4373
        %v4375 = vpop.permute.xlu0 %4374
        %s4377 = sor.u32 256, 24
        %4378 = vbcast.lane.b32.xlu0 %v4364, %s4377
        %v4379 = vpop.permute.xlu0 %4378
        %s4381 = sor.u32 256, 32
        %4382 = vbcast.lane.b32.xlu0 %v4364, %s4381
        %v4383 = vpop.permute.xlu0 %4382
        %s4385 = sor.u32 256, 40
        %4386 = vbcast.lane.b32.xlu0 %v4364, %s4385
        %v4387 = vpop.permute.xlu0 %4386
        %s4389 = sor.u32 256, 48
        %4390 = vbcast.lane.b32.xlu0 %v4364, %s4389
        %v4391 = vpop.permute.xlu0 %4390
        %s4393 = sor.u32 256, 56
        %4394 = vbcast.lane.b32.xlu0 %v4364, %s4393
        %v4395 = vpop.permute.xlu0 %4394
        %v4396 = vlaneseq
        %v4397 = vshrl.u32 %v4396, 7
        %v4398 = vsub.s32 5, %v4397
        %v4399 = vrot.slane %v3940, %v4398
        %4401 = vbcast.lane.b32.xlu0 %v4399, 256
        %v4402 = vpop.permute.xlu0 %4401
        %s4404 = sor.u32 256, 8
        %4405 = vbcast.lane.b32.xlu0 %v4399, %s4404
        %v4406 = vpop.permute.xlu0 %4405
        %s4408 = sor.u32 256, 16
        %4409 = vbcast.lane.b32.xlu0 %v4399, %s4408
        %v4410 = vpop.permute.xlu0 %4409
        %s4412 = sor.u32 256, 24
        %4413 = vbcast.lane.b32.xlu0 %v4399, %s4412
        %v4414 = vpop.permute.xlu0 %4413
        %s4416 = sor.u32 256, 32
        %4417 = vbcast.lane.b32.xlu0 %v4399, %s4416
        %v4418 = vpop.permute.xlu0 %4417
        %s4420 = sor.u32 256, 40
        %4421 = vbcast.lane.b32.xlu0 %v4399, %s4420
        %v4422 = vpop.permute.xlu0 %4421
        %s4424 = sor.u32 256, 48
        %4425 = vbcast.lane.b32.xlu0 %v4399, %s4424
        %v4426 = vpop.permute.xlu0 %4425
        %s4428 = sor.u32 256, 56
        %4429 = vbcast.lane.b32.xlu0 %v4399, %s4428
        %v4430 = vpop.permute.xlu0 %4429
        %v4431 = vlaneseq
        %v4432 = vshrl.u32 %v4431, 7
        %v4433 = vsub.s32 6, %v4432
        %v4434 = vrot.slane %v3940, %v4433
        %4436 = vbcast.lane.b32.xlu0 %v4434, 256
        %v4437 = vpop.permute.xlu0 %4436
        %s4439 = sor.u32 256, 8
        %4440 = vbcast.lane.b32.xlu0 %v4434, %s4439
        %v4441 = vpop.permute.xlu0 %4440
        %s4443 = sor.u32 256, 16
        %4444 = vbcast.lane.b32.xlu0 %v4434, %s4443
        %v4445 = vpop.permute.xlu0 %4444
        %s4447 = sor.u32 256, 24
        %4448 = vbcast.lane.b32.xlu0 %v4434, %s4447
        %v4449 = vpop.permute.xlu0 %4448
        %s4451 = sor.u32 256, 32
        %4452 = vbcast.lane.b32.xlu0 %v4434, %s4451
        %v4453 = vpop.permute.xlu0 %4452
        %s4455 = sor.u32 256, 40
        %4456 = vbcast.lane.b32.xlu0 %v4434, %s4455
        %v4457 = vpop.permute.xlu0 %4456
        %s4459 = sor.u32 256, 48
        %4460 = vbcast.lane.b32.xlu0 %v4434, %s4459
        %v4461 = vpop.permute.xlu0 %4460
        %s4463 = sor.u32 256, 56
        %4464 = vbcast.lane.b32.xlu0 %v4434, %s4463
        %v4465 = vpop.permute.xlu0 %4464
        %v4466 = vlaneseq
        %v4467 = vshrl.u32 %v4466, 7
        %v4468 = vsub.s32 7, %v4467
        %v4469 = vrot.slane %v3940, %v4468
        %4471 = vbcast.lane.b32.xlu0 %v4469, 256
        %v4472 = vpop.permute.xlu0 %4471
        %s4474 = sor.u32 256, 8
        %4475 = vbcast.lane.b32.xlu0 %v4469, %s4474
        %v4476 = vpop.permute.xlu0 %4475
        %s4478 = sor.u32 256, 16
        %4479 = vbcast.lane.b32.xlu0 %v4469, %s4478
        %v4480 = vpop.permute.xlu0 %4479
        %s4482 = sor.u32 256, 24
        %4483 = vbcast.lane.b32.xlu0 %v4469, %s4482
        %v4484 = vpop.permute.xlu0 %4483
        %s4486 = sor.u32 256, 32
        %4487 = vbcast.lane.b32.xlu0 %v4469, %s4486
        %v4488 = vpop.permute.xlu0 %4487
        %s4490 = sor.u32 256, 40
        %4491 = vbcast.lane.b32.xlu0 %v4469, %s4490
        %v4492 = vpop.permute.xlu0 %4491
        %s4494 = sor.u32 256, 48
        %4495 = vbcast.lane.b32.xlu0 %v4469, %s4494
        %v4496 = vpop.permute.xlu0 %4495
        %s4498 = sor.u32 256, 56
        %4499 = vbcast.lane.b32.xlu0 %v4469, %s4498
        %v4500 = vpop.permute.xlu0 %4499
        %v4501 = vadd.f32 %v3811, %v3947
        %v4502 = vadd.f32 %v3812, %v3951
        %v4503 = vadd.f32 %v3813, %v3955
        %v4504 = vadd.f32 %v3814, %v3959
        %v4505 = vadd.f32 %v3815, %v3963
        %v4506 = vadd.f32 %v3816, %v3967
        %v4507 = vadd.f32 %v3817, %v3971
        %v4508 = vadd.f32 %v3818, %v3975
        %v4509 = vadd.f32 %v3819, %v3982
        %v4510 = vadd.f32 %v3820, %v3986
        %v4511 = vadd.f32 %v3821, %v3990
        %v4512 = vadd.f32 %v3822, %v3994
        %v4513 = vadd.f32 %v3823, %v3998
        %v4514 = vadd.f32 %v3824, %v4002
        %v4515 = vadd.f32 %v3825, %v4006
        %v4516 = vadd.f32 %v3826, %v4010
        %v4517 = vadd.f32 %v3827, %v4017
        %v4518 = vadd.f32 %v3828, %v4021
        %v4519 = vadd.f32 %v3829, %v4025
        %v4520 = vadd.f32 %v3830, %v4029
        %v4521 = vadd.f32 %v3831, %v4033
        %v4522 = vadd.f32 %v3832, %v4037
        %v4523 = vadd.f32 %v3833, %v4041
        %v4524 = vadd.f32 %v3834, %v4045
        %v4525 = vadd.f32 %v3835, %v4052
        %v4526 = vadd.f32 %v3836, %v4056
        %v4527 = vadd.f32 %v3837, %v4060
        %v4528 = vadd.f32 %v3838, %v4064
        %v4529 = vadd.f32 %v3839, %v4068
        %v4530 = vadd.f32 %v3840, %v4072
        %v4531 = vadd.f32 %v3841, %v4076
        %v4532 = vadd.f32 %v3842, %v4080
        %v4533 = vadd.f32 %v3843, %v4087
        %v4534 = vadd.f32 %v3844, %v4091
        %v4535 = vadd.f32 %v3845, %v4095
        %v4536 = vadd.f32 %v3846, %v4099
        %v4537 = vadd.f32 %v3847, %v4103
        %v4538 = vadd.f32 %v3848, %v4107
        %v4539 = vadd.f32 %v3849, %v4111
        %v4540 = vadd.f32 %v3850, %v4115
        %v4541 = vadd.f32 %v3851, %v4122
        %v4542 = vadd.f32 %v3852, %v4126
        %v4543 = vadd.f32 %v3853, %v4130
        %v4544 = vadd.f32 %v3854, %v4134
        %v4545 = vadd.f32 %v3855, %v4138
        %v4546 = vadd.f32 %v3856, %v4142
        %v4547 = vadd.f32 %v3857, %v4146
        %v4548 = vadd.f32 %v3858, %v4150
        %v4549 = vadd.f32 %v3859, %v4157
        %v4550 = vadd.f32 %v3860, %v4161
        %v4551 = vadd.f32 %v3861, %v4165
        %v4552 = vadd.f32 %v3862, %v4169
        %v4553 = vadd.f32 %v3863, %v4173
        %v4554 = vadd.f32 %v3864, %v4177
        %v4555 = vadd.f32 %v3865, %v4181
        %v4556 = vadd.f32 %v3866, %v4185
        %v4557 = vadd.f32 %v3867, %v4192
        %v4558 = vadd.f32 %v3868, %v4196
        %v4559 = vadd.f32 %v3869, %v4200
        %v4560 = vadd.f32 %v3870, %v4204
        %v4561 = vadd.f32 %v3871, %v4208
        %v4562 = vadd.f32 %v3872, %v4212
        %v4563 = vadd.f32 %v3873, %v4216
        %v4564 = vadd.f32 %v3874, %v4220
        %v4565 = vadd.f32 %v3875, %v4227
        %v4566 = vadd.f32 %v3876, %v4231
        %v4567 = vadd.f32 %v3877, %v4235
        %v4568 = vadd.f32 %v3878, %v4239
        %v4569 = vadd.f32 %v3879, %v4243
        %v4570 = vadd.f32 %v3880, %v4247
        %v4571 = vadd.f32 %v3881, %v4251
        %v4572 = vadd.f32 %v3882, %v4255
        %v4573 = vadd.f32 %v3883, %v4262
        %v4574 = vadd.f32 %v3884, %v4266
        %v4575 = vadd.f32 %v3885, %v4270
        %v4576 = vadd.f32 %v3886, %v4274
        %v4577 = vadd.f32 %v3887, %v4278
        %v4578 = vadd.f32 %v3888, %v4282
        %v4579 = vadd.f32 %v3889, %v4286
        %v4580 = vadd.f32 %v3890, %v4290
        %v4581 = vadd.f32 %v3891, %v4297
        %v4582 = vadd.f32 %v3892, %v4301
        %v4583 = vadd.f32 %v3893, %v4305
        %v4584 = vadd.f32 %v3894, %v4309
        %v4585 = vadd.f32 %v3895, %v4313
        %v4586 = vadd.f32 %v3896, %v4317
        %v4587 = vadd.f32 %v3897, %v4321
        %v4588 = vadd.f32 %v3898, %v4325
        %v4589 = vadd.f32 %v3899, %v4332
        %v4590 = vadd.f32 %v3900, %v4336
        %v4591 = vadd.f32 %v3901, %v4340
        %v4592 = vadd.f32 %v3902, %v4344
        %v4593 = vadd.f32 %v3903, %v4348
        %v4594 = vadd.f32 %v3904, %v4352
        %v4595 = vadd.f32 %v3905, %v4356
        %v4596 = vadd.f32 %v3906, %v4360
        %v4597 = vadd.f32 %v3907, %v4367
        %v4598 = vadd.f32 %v3908, %v4371
        %v4599 = vadd.f32 %v3909, %v4375
        %v4600 = vadd.f32 %v3910, %v4379
        %v4601 = vadd.f32 %v3911, %v4383
        %v4602 = vadd.f32 %v3912, %v4387
        %v4603 = vadd.f32 %v3913, %v4391
        %v4604 = vadd.f32 %v3914, %v4395
        %v4605 = vadd.f32 %v3915, %v4402
        %v4606 = vadd.f32 %v3916, %v4406
        %v4607 = vadd.f32 %v3917, %v4410
        %v4608 = vadd.f32 %v3918, %v4414
        %v4609 = vadd.f32 %v3919, %v4418
        %v4610 = vadd.f32 %v3920, %v4422
        %v4611 = vadd.f32 %v3921, %v4426
        %v4612 = vadd.f32 %v3922, %v4430
        %v4613 = vadd.f32 %v3923, %v4437
        %v4614 = vadd.f32 %v3924, %v4441
        %v4615 = vadd.f32 %v3925, %v4445
        %v4616 = vadd.f32 %v3926, %v4449
        %v4617 = vadd.f32 %v3927, %v4453
        %v4618 = vadd.f32 %v3928, %v4457
        %v4619 = vadd.f32 %v3929, %v4461
        %v4620 = vadd.f32 %v3930, %v4465
        %v4621 = vadd.f32 %v3931, %v4472
        %v4622 = vadd.f32 %v3932, %v4476
        %v4623 = vadd.f32 %v3933, %v4480
        %v4624 = vadd.f32 %v3934, %v4484
        %v4625 = vadd.f32 %v3935, %v4488
        %v4626 = vadd.f32 %v3936, %v4492
        %v4627 = vadd.f32 %v3937, %v4496
        %v4628 = vadd.f32 %v3938, %v4500
        %v4629 = vld [vmem:[%s404] sm:$0xff]
        %v4630 = vld [vmem:[%s404 + $0x8] sm:$0xff]
        %v4631 = vmax.f32 %v4501, %v4502
        %v4632 = vmax.f32 %v4631, %v4503
        %v4633 = vmax.f32 %v4632, %v4504
        %v4634 = vmax.f32 %v4633, %v4505
        %v4635 = vmax.f32 %v4634, %v4506
        %v4636 = vmax.f32 %v4635, %v4507
        %v4637 = vmax.f32 %v4636, %v4508
        %v4638 = vrot.slane %v4637, 4
        %v4639 = vmax.f32 %v4637, %v4638
        %v4640 = vrot.slane %v4639, 2
        %v4641 = vmax.f32 %v4639, %v4640
        %v4642 = vrot.slane %v4641, 1
        %v4643 = vmax.f32 %v4641, %v4642
        %v4644 = vmax.f32 %v4509, %v4510
        %v4645 = vmax.f32 %v4644, %v4511
        %v4646 = vmax.f32 %v4645, %v4512
        %v4647 = vmax.f32 %v4646, %v4513
        %v4648 = vmax.f32 %v4647, %v4514
        %v4649 = vmax.f32 %v4648, %v4515
        %v4650 = vmax.f32 %v4649, %v4516
        %v4651 = vrot.slane %v4650, 4
        %v4652 = vmax.f32 %v4650, %v4651
        %v4653 = vrot.slane %v4652, 2
        %v4654 = vmax.f32 %v4652, %v4653
        %v4655 = vrot.slane %v4654, 1
        %v4656 = vmax.f32 %v4654, %v4655
        %v4657 = vmax.f32 %v4517, %v4518
        %v4658 = vmax.f32 %v4657, %v4519
        %v4659 = vmax.f32 %v4658, %v4520
        %v4660 = vmax.f32 %v4659, %v4521
        %v4661 = vmax.f32 %v4660, %v4522
        %v4662 = vmax.f32 %v4661, %v4523
        %v4663 = vmax.f32 %v4662, %v4524
        %v4664 = vrot.slane %v4663, 4
        %v4665 = vmax.f32 %v4663, %v4664
        %v4666 = vrot.slane %v4665, 2
        %v4667 = vmax.f32 %v4665, %v4666
        %v4668 = vrot.slane %v4667, 1
        %v4669 = vmax.f32 %v4667, %v4668
        %v4670 = vmax.f32 %v4525, %v4526
        %v4671 = vmax.f32 %v4670, %v4527
        %v4672 = vmax.f32 %v4671, %v4528
        %v4673 = vmax.f32 %v4672, %v4529
        %v4674 = vmax.f32 %v4673, %v4530
        %v4675 = vmax.f32 %v4674, %v4531
        %v4676 = vmax.f32 %v4675, %v4532
        %v4677 = vrot.slane %v4676, 4
        %v4678 = vmax.f32 %v4676, %v4677
        %v4679 = vrot.slane %v4678, 2
        %v4680 = vmax.f32 %v4678, %v4679
        %v4681 = vrot.slane %v4680, 1
        %v4682 = vmax.f32 %v4680, %v4681
        %v4683 = vmax.f32 %v4533, %v4534
        %v4684 = vmax.f32 %v4683, %v4535
        %v4685 = vmax.f32 %v4684, %v4536
        %v4686 = vmax.f32 %v4685, %v4537
        %v4687 = vmax.f32 %v4686, %v4538
        %v4688 = vmax.f32 %v4687, %v4539
        %v4689 = vmax.f32 %v4688, %v4540
        %v4690 = vrot.slane %v4689, 4
        %v4691 = vmax.f32 %v4689, %v4690
        %v4692 = vrot.slane %v4691, 2
        %v4693 = vmax.f32 %v4691, %v4692
        %v4694 = vrot.slane %v4693, 1
        %v4695 = vmax.f32 %v4693, %v4694
        %v4696 = vmax.f32 %v4541, %v4542
        %v4697 = vmax.f32 %v4696, %v4543
        %v4698 = vmax.f32 %v4697, %v4544
        %v4699 = vmax.f32 %v4698, %v4545
        %v4700 = vmax.f32 %v4699, %v4546
        %v4701 = vmax.f32 %v4700, %v4547
        %v4702 = vmax.f32 %v4701, %v4548
        %v4703 = vrot.slane %v4702, 4
        %v4704 = vmax.f32 %v4702, %v4703
        %v4705 = vrot.slane %v4704, 2
        %v4706 = vmax.f32 %v4704, %v4705
        %v4707 = vrot.slane %v4706, 1
        %v4708 = vmax.f32 %v4706, %v4707
        %v4709 = vmax.f32 %v4549, %v4550
        %v4710 = vmax.f32 %v4709, %v4551
        %v4711 = vmax.f32 %v4710, %v4552
        %v4712 = vmax.f32 %v4711, %v4553
        %v4713 = vmax.f32 %v4712, %v4554
        %v4714 = vmax.f32 %v4713, %v4555
        %v4715 = vmax.f32 %v4714, %v4556
        %v4716 = vrot.slane %v4715, 4
        %v4717 = vmax.f32 %v4715, %v4716
        %v4718 = vrot.slane %v4717, 2
        %v4719 = vmax.f32 %v4717, %v4718
        %v4720 = vrot.slane %v4719, 1
        %v4721 = vmax.f32 %v4719, %v4720
        %v4722 = vmax.f32 %v4557, %v4558
        %v4723 = vmax.f32 %v4722, %v4559
        %v4724 = vmax.f32 %v4723, %v4560
        %v4725 = vmax.f32 %v4724, %v4561
        %v4726 = vmax.f32 %v4725, %v4562
        %v4727 = vmax.f32 %v4726, %v4563
        %v4728 = vmax.f32 %v4727, %v4564
        %v4729 = vrot.slane %v4728, 4
        %v4730 = vmax.f32 %v4728, %v4729
        %v4731 = vrot.slane %v4730, 2
        %v4732 = vmax.f32 %v4730, %v4731
        %v4733 = vrot.slane %v4732, 1
        %v4734 = vmax.f32 %v4732, %v4733
        %v4735 = vmax.f32 %v4565, %v4566
        %v4736 = vmax.f32 %v4735, %v4567
        %v4737 = vmax.f32 %v4736, %v4568
        %v4738 = vmax.f32 %v4737, %v4569
        %v4739 = vmax.f32 %v4738, %v4570
        %v4740 = vmax.f32 %v4739, %v4571
        %v4741 = vmax.f32 %v4740, %v4572
        %v4742 = vrot.slane %v4741, 4
        %v4743 = vmax.f32 %v4741, %v4742
        %v4744 = vrot.slane %v4743, 2
        %v4745 = vmax.f32 %v4743, %v4744
        %v4746 = vrot.slane %v4745, 1
        %v4747 = vmax.f32 %v4745, %v4746
        %v4748 = vmax.f32 %v4573, %v4574
        %v4749 = vmax.f32 %v4748, %v4575
        %v4750 = vmax.f32 %v4749, %v4576
        %v4751 = vmax.f32 %v4750, %v4577
        %v4752 = vmax.f32 %v4751, %v4578
        %v4753 = vmax.f32 %v4752, %v4579
        %v4754 = vmax.f32 %v4753, %v4580
        %v4755 = vrot.slane %v4754, 4
        %v4756 = vmax.f32 %v4754, %v4755
        %v4757 = vrot.slane %v4756, 2
        %v4758 = vmax.f32 %v4756, %v4757
        %v4759 = vrot.slane %v4758, 1
        %v4760 = vmax.f32 %v4758, %v4759
        %v4761 = vmax.f32 %v4581, %v4582
        %v4762 = vmax.f32 %v4761, %v4583
        %v4763 = vmax.f32 %v4762, %v4584
        %v4764 = vmax.f32 %v4763, %v4585
        %v4765 = vmax.f32 %v4764, %v4586
        %v4766 = vmax.f32 %v4765, %v4587
        %v4767 = vmax.f32 %v4766, %v4588
        %v4768 = vrot.slane %v4767, 4
        %v4769 = vmax.f32 %v4767, %v4768
        %v4770 = vrot.slane %v4769, 2
        %v4771 = vmax.f32 %v4769, %v4770
        %v4772 = vrot.slane %v4771, 1
        %v4773 = vmax.f32 %v4771, %v4772
        %v4774 = vmax.f32 %v4589, %v4590
        %v4775 = vmax.f32 %v4774, %v4591
        %v4776 = vmax.f32 %v4775, %v4592
        %v4777 = vmax.f32 %v4776, %v4593
        %v4778 = vmax.f32 %v4777, %v4594
        %v4779 = vmax.f32 %v4778, %v4595
        %v4780 = vmax.f32 %v4779, %v4596
        %v4781 = vrot.slane %v4780, 4
        %v4782 = vmax.f32 %v4780, %v4781
        %v4783 = vrot.slane %v4782, 2
        %v4784 = vmax.f32 %v4782, %v4783
        %v4785 = vrot.slane %v4784, 1
        %v4786 = vmax.f32 %v4784, %v4785
        %v4787 = vmax.f32 %v4597, %v4598
        %v4788 = vmax.f32 %v4787, %v4599
        %v4789 = vmax.f32 %v4788, %v4600
        %v4790 = vmax.f32 %v4789, %v4601
        %v4791 = vmax.f32 %v4790, %v4602
        %v4792 = vmax.f32 %v4791, %v4603
        %v4793 = vmax.f32 %v4792, %v4604
        %v4794 = vrot.slane %v4793, 4
        %v4795 = vmax.f32 %v4793, %v4794
        %v4796 = vrot.slane %v4795, 2
        %v4797 = vmax.f32 %v4795, %v4796
        %v4798 = vrot.slane %v4797, 1
        %v4799 = vmax.f32 %v4797, %v4798
        %v4800 = vmax.f32 %v4605, %v4606
        %v4801 = vmax.f32 %v4800, %v4607
        %v4802 = vmax.f32 %v4801, %v4608
        %v4803 = vmax.f32 %v4802, %v4609
        %v4804 = vmax.f32 %v4803, %v4610
        %v4805 = vmax.f32 %v4804, %v4611
        %v4806 = vmax.f32 %v4805, %v4612
        %v4807 = vrot.slane %v4806, 4
        %v4808 = vmax.f32 %v4806, %v4807
        %v4809 = vrot.slane %v4808, 2
        %v4810 = vmax.f32 %v4808, %v4809
        %v4811 = vrot.slane %v4810, 1
        %v4812 = vmax.f32 %v4810, %v4811
        %v4813 = vmax.f32 %v4613, %v4614
        %v4814 = vmax.f32 %v4813, %v4615
        %v4815 = vmax.f32 %v4814, %v4616
        %v4816 = vmax.f32 %v4815, %v4617
        %v4817 = vmax.f32 %v4816, %v4618
        %v4818 = vmax.f32 %v4817, %v4619
        %v4819 = vmax.f32 %v4818, %v4620
        %v4820 = vrot.slane %v4819, 4
        %v4821 = vmax.f32 %v4819, %v4820
        %v4822 = vrot.slane %v4821, 2
        %v4823 = vmax.f32 %v4821, %v4822
        %v4824 = vrot.slane %v4823, 1
        %v4825 = vmax.f32 %v4823, %v4824
        %v4826 = vmax.f32 %v4621, %v4622
        %v4827 = vmax.f32 %v4826, %v4623
        %v4828 = vmax.f32 %v4827, %v4624
        %v4829 = vmax.f32 %v4828, %v4625
        %v4830 = vmax.f32 %v4829, %v4626
        %v4831 = vmax.f32 %v4830, %v4627
        %v4832 = vmax.f32 %v4831, %v4628
        %v4833 = vrot.slane %v4832, 4
        %v4834 = vmax.f32 %v4832, %v4833
        %v4835 = vrot.slane %v4834, 2
        %v4836 = vmax.f32 %v4834, %v4835
        %v4837 = vrot.slane %v4836, 1
        %v4838 = vmax.f32 %v4836, %v4837
        %vm4855 = vcmask 1041409
        %v4856 = vsel %vm4855, %v4656, %v4643
        %vm4857 = vcmask 1042434
        %v4858 = vsel %vm4857, %v4669, %v4856
        %vm4859 = vcmask 1043459
        %v4860 = vsel %vm4859, %v4682, %v4858
        %vm4861 = vcmask 1044484
        %v4862 = vsel %vm4861, %v4695, %v4860
        %vm4863 = vcmask 1045509
        %v4864 = vsel %vm4863, %v4708, %v4862
        %vm4865 = vcmask 1046534
        %v4866 = vsel %vm4865, %v4721, %v4864
        %vm4867 = vcmask 1047559
        %v4868 = vsel %vm4867, %v4734, %v4866
        %v4869 = vsel %vm4855, %v4760, %v4747
        %v4870 = vsel %vm4857, %v4773, %v4869
        %v4871 = vsel %vm4859, %v4786, %v4870
        %v4872 = vsel %vm4861, %v4799, %v4871
        %v4873 = vsel %vm4863, %v4812, %v4872
        %v4874 = vsel %vm4865, %v4825, %v4873
        %v4875 = vsel %vm4867, %v4838, %v4874
        %v4878 = vmax.f32 %v4629, %v4868
        %v4879 = vmax.f32 %v4630, %v4875
        %4880 = vst [vmem:[%s404] sm:$0xff] %v4878
        %4881 = vst [vmem:[%s404 + $0x8] sm:$0xff] %v4879
        %s4882 = sand.u32 %s268, 1
        %s4883 = scalar_lea.sflag [#allocation3], %s4882
        %s4884 = sand.u32 %s268, 1
        %s4885 = smul.addr %s4884, 16
        %s4886 = scalar_lea.vmem [#allocation2], %s4885
        // Predicated region
        $region65: #{tpu_custom_call.1} parent=59 // pred_check
          %p4887 = pneg %p278
        $region66: #{tpu_custom_call.1} parent=59 // pred_check_branch
          %4889 = sbr.rel (%p4887) target = $region68
        $region67: #{tpu_custom_call.1} parent=59 // pred_region
          %s4890 = smul.u32 2, %s28
          %s4892 = ssub.s32 256, 256
          %4893 = vsyncadd %s4883, %s4892
          %s4894 = smul.addr %s4890, 128
          %s4895 = scalar_lea.hbm %s10, %s4894
          %s4896 = sshll.u32 %s4886, 4
          %s4897 = int_to_ptr.vmem [resolvable:$true] %s4896
          %4902 = dma.vmem_to_hbm [thread:$0]  %s4897, 256, %s4895, %s4883, 128, 128, 8
        $region68: #{tpu_custom_call.1} parent=59 // pred_fallthru
          _
      $region60: #{tpu_custom_call.1} parent=5 // pred_fallthru
        _
      %p4903 = scmp.le.s32.totalorder 2, %s19
      // Predicated region
      $region69: #{tpu_custom_call.1} parent=5 // pred_check
        %p4904 = pneg %p4903
      $region70: #{tpu_custom_call.1} parent=5 // pred_check_branch
        %4906 = sbr.rel (%p4904) target = $region72
      $region71: #{tpu_custom_call.1} parent=5 // pred_region
        %s4907 = ssub.s32 %s19, 2
        // Predicated region
        $region73: #{tpu_custom_call.1} parent=71 // pred_check
          %p4908 = pneg %p284
        $region74: #{tpu_custom_call.1} parent=71 // pred_check_branch
          %4910 = sbr.rel (%p4908) target = $region76
        $region75: #{tpu_custom_call.1} parent=71 // pred_region
          %s4911 = sand.u32 %s269, 1
          %s4912 = scalar_lea.sflag [#allocation3], %s4911
          %s4913 = sand.u32 %s269, 1
          %s4914 = smul.addr %s4913, 16
          %s4915 = scalar_lea.vmem [#allocation2], %s4914
          %4916 = dma.done %s4912, 256
        $region76: #{tpu_custom_call.1} parent=71 // pred_fallthru
          _
      $region72: #{tpu_custom_call.1} parent=5 // pred_fallthru
        _
    $region6: #{tpu_custom_call.1} parent=1 // loop_footer
      %s23 = sadd.s32 1, %s19
    $region7: #{tpu_custom_call.1} parent=1 // loop_footer_branch
      %18 = sbr.rel target = $region3
    $region8: #{tpu_custom_call.1} parent=1 // loop_exit
      _
    %4917 = vsyncpa [#allocation3], 1
    %s4918 = scalar_lea.sflag [#allocation3], 1
    %4919 = vsyncpa %s4918, 1

</llo_original>
